<compile_context>
chip_gen: v5e
topology: v5e:2x2
jax: 0.10.0
libtpu: 0.0.40
codegen_flags: <defaults>
</compile_context>

<pallas_src>
import jax
import jax.numpy as jnp
from jax.experimental import pallas as pl
from jax.experimental.pallas import tpu as pltpu

X_DIM = 784
Z_DIM = 50
Z_PAD = 64            # z / W1_z padded 50 -> 64 (clean contraction layout)
HID = 1024
TN = 256              # layer-2 feature-chunk width (grid axis)
BN_EPS = 1e-5
NEG_SLOPE = 0.2
VMEM_LIMIT = 32 << 20  # explicit; leaves headroom on v7x's 64 MiB physical VMEM


def _leaky_relu(v):
    return jnp.where(v > 0, v, NEG_SLOPE * v)


def discriminator_kernel(x_ref, z_ref, w1x_ref, w1z_ref, b1_ref,
                         w2_ref, w3_ref, b3_ref, out_ref, h1_ref):
    j = pl.program_id(0)

    @pl.when(j == 0)
    def _():
        # Layer 1 (concat fused): h1 = LeakyReLU(x@W1_x + z@W1_z + b1).
        # bf16 operands feed the MXU natively; accumulation stays f32.
        xb = x_ref[...].astype(jnp.bfloat16)
        zb = z_ref[...].astype(jnp.bfloat16)
        h1 = jnp.dot(xb, w1x_ref[...], preferred_element_type=jnp.float32)
        h1 = h1 + jnp.dot(zb, w1z_ref[...], preferred_element_type=jnp.float32)
        h1 = _leaky_relu(h1 + b1_ref[...])
        h1_ref[...] = h1.astype(jnp.bfloat16)      # reused by every chunk
        out_ref[...] = jnp.zeros_like(out_ref)     # logit accumulator init

    # Layer 2, feature chunk j: LeakyReLU(BatchNorm1d_noaffine(h1 @ W2[:, chunk])).
    # b2 omitted: under affine=False training-mode BN, the per-feature batch-mean
    # subtraction cancels any constant per-feature shift exactly.
    h2 = jnp.dot(h1_ref[...], w2_ref[...], preferred_element_type=jnp.float32)
    mean = jnp.mean(h2, axis=0, keepdims=True)                   # (1, TN)
    var = jnp.mean((h2 - mean) ** 2, axis=0, keepdims=True)      # biased (train mode)
    h2 = _leaky_relu((h2 - mean) * jax.lax.rsqrt(var + BN_EPS))

    # Layer 3 partial: lane-dense (1, TN) W3 row chunk; VPU multiply + row reduce
    # (no lane-sparse N=1 MXU matmul).
    w3_row = w3_ref[...].astype(jnp.float32)
    out_ref[...] += jnp.sum(h2 * w3_row, axis=1, keepdims=True)  # (B, 1)

    @pl.when(j == pl.num_programs(0) - 1)
    def _():
        logits = out_ref[...] + b3_ref[...]
        out_ref[...] = 1.0 / (1.0 + jnp.exp(-logits))  # exact sigmoid


def _vmem_bytes_estimate(batch, tn):
    """Rough resident-VMEM accounting: bf16 weights + f32 activations/temps."""
    bf16, f32 = 2, 4
    dbl = 2  # Pallas double-buffers each BlockSpec-managed buffer
    fixed = dbl * (X_DIM * HID * bf16        # W1_x
                   + Z_PAD * HID * bf16      # W1_z
                   + HID * f32               # b1
                   + HID * tn * bf16         # W2 chunk (streamed per grid step)
                   + tn * bf16               # W3 row chunk
                   + 128 * f32)              # b3 (lane-padded)
    per_row = (dbl * (X_DIM + Z_PAD) * f32   # x, z input blocks
               + HID * bf16                  # h1 scratch (bf16)
               + dbl * 128 * f32             # output block (lane-padded)
               + HID * f32                   # f32 h1 temporary (layer 1)
               + (X_DIM + Z_PAD + HID) * bf16  # bf16 operand copies
               + 3 * tn * f32)               # h2 chunk temporaries
    return fixed + batch * per_row


def discriminator_forward(x, z, kernel_params):
    """x: (B, 784), z: (B, 50) -> (B, 1) probabilities."""
    w1x, w1z, b1, w2, w3_row, b3 = kernel_params
    B = x.shape[0]
    assert x.shape == (B, X_DIM) and z.shape == (B, Z_DIM)
    assert HID % TN == 0
    x = x.astype(jnp.float32)
    z = jnp.pad(z.astype(jnp.float32), ((0, 0), (0, Z_PAD - Z_DIM)))

    assert _vmem_bytes_estimate(B, TN) < VMEM_LIMIT, (
        "batch too large for the VMEM budget; shrink TN or tile the batch")

    const = lambda a: pl.BlockSpec(a.shape, lambda j, _nd=a.ndim: (0,) * _nd)
    n_chunks = HID // TN

    # TODO(synk): v7x 2-TC variant — make the chunk axis "parallel" with
    # per-chunk partial-logit outputs of shape (n_chunks, B, 1) summed in a
    # trivial XLA epilogue (h1 recomputed/duplicated per core).
    return pl.pallas_call(
        discriminator_kernel,
        out_shape=jax.ShapeDtypeStruct((B, 1), jnp.float32),
        grid=(n_chunks,),
        in_specs=[const(x), const(z), const(w1x), const(w1z), const(b1),
                  pl.BlockSpec((HID, TN), lambda j: (0, j)),   # W2 chunk
                  pl.BlockSpec((1, TN), lambda j: (0, j)),     # W3 row chunk
                  const(b3)],
        out_specs=pl.BlockSpec((B, 1), lambda j: (0, 0)),
        scratch_shapes=[pltpu.VMEM((B, HID), jnp.bfloat16)],    # h1
        compiler_params=pltpu.CompilerParams(
            dimension_semantics=("arbitrary",),
            vmem_limit_bytes=VMEM_LIMIT),
    )(x, z, w1x, w1z, b1, w2, w3_row, b3)


def init_params(key, weight_dtype=jnp.bfloat16):
    """PyTorch-style uniform(-1/sqrt(fan_in), 1/sqrt(fan_in)) init.

    Returns (kernel_params, ref_params):
      kernel_params: W1 split into x/z parts (z part zero-padded to 64 rows),
                     weight matrices in bf16, W3 stored as a (1, 1024) row,
                     b2 dropped (cancels under affine=False BatchNorm).
      ref_params:    same (bf16-quantized) weights in f32, unsplit, with b2,
                     for the pure-JAX reference.
    """
    def linear(k, fan_in, fan_out):
        kw, kb = jax.random.split(k)
        bound = float(fan_in) ** -0.5
        w = jax.random.uniform(kw, (fan_in, fan_out), jnp.float32, -bound, bound)
        b = jax.random.uniform(kb, (1, fan_out), jnp.float32, -bound, bound)
        return w, b

    k1, k2, k3 = jax.random.split(key, 3)
    w1, b1 = linear(k1, X_DIM + Z_DIM, HID)   # rows [0:50]=z, [50:834]=x (cat(z, x))
    w2, b2 = linear(k2, HID, HID)
    w3, b3 = linear(k3, HID, 1)

    # Quantize weight matrices once at init (biases stay f32).
    w1q = w1.astype(weight_dtype)
    w2q = w2.astype(weight_dtype)
    w3q = w3.astype(weight_dtype)

    w1z = jnp.zeros((Z_PAD, HID), weight_dtype).at[:Z_DIM].set(w1q[:Z_DIM])
    kernel_params = (w1q[Z_DIM:], w1z, b1, w2q,
                     w3q.reshape(HID, 1).T, b3)          # W3 as lane-dense row
    ref_params = (w1q.astype(jnp.float32), b1,
                  w2q.astype(jnp.float32), b2,
                  w3q.astype(jnp.float32), b3)
    return kernel_params, ref_params


def reference_forward(x, z, ref_params):
    """Pure-JAX f32 reference (includes b2, which the kernel provably drops)."""
    w1, b1, w2, b2, w3, b3 = ref_params
    xz = jnp.concatenate([z, x], axis=1)
    h1 = xz @ w1 + b1
    h1 = jnp.where(h1 > 0, h1, NEG_SLOPE * h1)
    h2 = h1 @ w2 + b2
    mean = jnp.mean(h2, axis=0, keepdims=True)
    var = jnp.mean((h2 - mean) ** 2, axis=0, keepdims=True)
    h2 = (h2 - mean) / jnp.sqrt(var + BN_EPS)
    h2 = jnp.where(h2 > 0, h2, NEG_SLOPE * h2)
    return jax.nn.sigmoid(h2 @ w3 + b3)


if __name__ == "__main__":
    key = jax.random.PRNGKey(0)
    kp, kx, kz = jax.random.split(key, 3)

    B = 8
    kernel_params, ref_params = init_params(kp)
    x = jax.random.uniform(kx, (B, X_DIM), jnp.float32)   # flattened "image"
    z = jax.random.normal(kz, (B, Z_DIM), jnp.float32)    # latent code

    out = jax.block_until_ready(discriminator_forward(x, z, kernel_params))
    ref = reference_forward(x, z, ref_params)

    assert out.shape == (B, 1), out.shape
    max_err = float(jnp.max(jnp.abs(out - ref)))
    # Tolerance covers bf16 MXU operands (weights + activations) and the
    # chunked accumulation order vs. the all-f32 reference.
    assert max_err < 5e-3, f"max abs err {max_err}"

    print("KERNEL_OK")
</pallas_src>

<mosaic_0001>
module attributes {stable_mosaic.version = 11 : i64} {
  func.func @discriminator_kernel(%arg0: i32, %arg1: memref<8x784xf32, #tpu.memory_space<vmem>>, %arg2: memref<8x64xf32, #tpu.memory_space<vmem>>, %arg3: memref<784x1024xbf16, #tpu.memory_space<vmem>>, %arg4: memref<64x1024xbf16, #tpu.memory_space<vmem>>, %arg5: memref<1x1024xf32, #tpu.memory_space<vmem>>, %arg6: memref<1024x256xbf16, #tpu.memory_space<vmem>>, %arg7: memref<1x256xbf16, #tpu.memory_space<vmem>>, %arg8: memref<1x1xf32, #tpu.memory_space<vmem>>, %arg9: memref<8x1xf32, #tpu.memory_space<vmem>>, %arg10: memref<8x1024xbf16, #tpu.memory_space<vmem>>) attributes {dimension_semantics = [#tpu.dimension_semantics<arbitrary>], iteration_bounds = array<i64: 4>, scalar_prefetch = 0 : i64, scratch_operands = 1 : i64, tpu.core_type = #tpu.core_type<tc>, window_params = [{pipeline_mode = #tpu.pipeline_mode<synchronous>, transform_indices = @transform_0, window_bounds = array<i64: 8, 784>}, {pipeline_mode = #tpu.pipeline_mode<synchronous>, transform_indices = @transform_1, window_bounds = array<i64: 8, 64>}, {pipeline_mode = #tpu.pipeline_mode<synchronous>, transform_indices = @transform_2, window_bounds = array<i64: 784, 1024>}, {pipeline_mode = #tpu.pipeline_mode<synchronous>, transform_indices = @transform_3, window_bounds = array<i64: 64, 1024>}, {pipeline_mode = #tpu.pipeline_mode<synchronous>, transform_indices = @transform_4, window_bounds = array<i64: 1, 1024>}, {transform_indices = @transform_5, window_bounds = array<i64: 1024, 256>}, {transform_indices = @transform_6, window_bounds = array<i64: 1, 256>}, {pipeline_mode = #tpu.pipeline_mode<synchronous>, transform_indices = @transform_7, window_bounds = array<i64: 1, 1>}, {pipeline_mode = #tpu.pipeline_mode<synchronous>, transform_indices = @transform_8, window_bounds = array<i64: 8, 1>}]} {
    %c0_i32 = arith.constant 0 : i32
    %0 = arith.cmpi eq, %arg0, %c0_i32 : i32
    %1 = arith.extui %0 : i1 to i32
    %c0_i32_0 = arith.constant 0 : i32
    %2 = arith.cmpi ne, %1, %c0_i32_0 : i32
    scf.if %2 {
      %c0_19 = arith.constant 0 : index
      %c0_20 = arith.constant 0 : index
      %41 = vector.load %arg1[%c0_19, %c0_20] : memref<8x784xf32, #tpu.memory_space<vmem>>, vector<8x784xf32>
      %42 = arith.truncf %41 : vector<8x784xf32> to vector<8x784xbf16>
      %c0_21 = arith.constant 0 : index
      %c0_22 = arith.constant 0 : index
      %43 = vector.load %arg2[%c0_21, %c0_22] : memref<8x64xf32, #tpu.memory_space<vmem>>, vector<8x64xf32>
      %44 = arith.truncf %43 : vector<8x64xf32> to vector<8x64xbf16>
      %c0_23 = arith.constant 0 : index
      %c0_24 = arith.constant 0 : index
      %45 = vector.load %arg3[%c0_23, %c0_24] : memref<784x1024xbf16, #tpu.memory_space<vmem>>, vector<784x1024xbf16>
      %cst_25 = arith.constant dense<0.000000e+00> : vector<8x1024xf32>
      %46 = tpu.matmul %42, %45, %cst_25 {dimension_numbers = #tpu.dot_dimension_numbers<[1], [0], [0], [1], [0, 0, 1, 1], [], []>} : vector<8x784xbf16>, vector<784x1024xbf16>, vector<8x1024xf32> -> vector<8x1024xf32>
      %c0_26 = arith.constant 0 : index
      %c0_27 = arith.constant 0 : index
      %47 = vector.load %arg4[%c0_26, %c0_27] : memref<64x1024xbf16, #tpu.memory_space<vmem>>, vector<64x1024xbf16>
      %cst_28 = arith.constant dense<0.000000e+00> : vector<8x1024xf32>
      %48 = tpu.matmul %44, %47, %cst_28 {dimension_numbers = #tpu.dot_dimension_numbers<[1], [0], [0], [1], [0, 0, 1, 1], [], []>} : vector<8x64xbf16>, vector<64x1024xbf16>, vector<8x1024xf32> -> vector<8x1024xf32>
      %49 = arith.addf %46, %48 : vector<8x1024xf32>
      %c0_29 = arith.constant 0 : index
      %c0_30 = arith.constant 0 : index
      %50 = vector.load %arg5[%c0_29, %c0_30] : memref<1x1024xf32, #tpu.memory_space<vmem>>, vector<1x1024xf32>
      %51 = vector.broadcast %50 : vector<1x1024xf32> to vector<8x1024xf32>
      %52 = arith.addf %49, %51 : vector<8x1024xf32>
      %cst_31 = arith.constant 0.000000e+00 : f32
      %53 = vector.broadcast %cst_31 : f32 to vector<8x1024xf32>
      %54 = arith.cmpf ogt, %52, %53 : vector<8x1024xf32>
      %cst_32 = arith.constant 2.000000e-01 : f32
      %55 = vector.broadcast %cst_32 : f32 to vector<8x1024xf32>
      %56 = arith.mulf %55, %52 : vector<8x1024xf32>
      %57 = arith.select %54, %52, %56 : vector<8x1024xi1>, vector<8x1024xf32>
      %58 = arith.truncf %57 : vector<8x1024xf32> to vector<8x1024xbf16>
      %c0_33 = arith.constant 0 : index
      %c0_34 = arith.constant 0 : index
      %59 = vector.load %arg10[%c0_33, %c0_34] : memref<8x1024xbf16, #tpu.memory_space<vmem>>, vector<8x1024xbf16>
      tpu.vector_store %arg10[%c0_33, %c0_34], %58 {strides = array<i32>} : memref<8x1024xbf16, #tpu.memory_space<vmem>>, vector<8x1024xbf16>,
      %cst_35 = arith.constant 0.000000e+00 : f32
      %60 = vector.broadcast %cst_35 : f32 to vector<8x1xf32>
      %c0_36 = arith.constant 0 : index
      %c0_37 = arith.constant 0 : index
      %61 = vector.load %arg9[%c0_36, %c0_37] : memref<8x1xf32, #tpu.memory_space<vmem>>, vector<8x1xf32>
      tpu.vector_store %arg9[%c0_36, %c0_37], %60 {strides = array<i32>} : memref<8x1xf32, #tpu.memory_space<vmem>>, vector<8x1xf32>,
    } else {
    }
    %c0 = arith.constant 0 : index
    %c0_1 = arith.constant 0 : index
    %3 = vector.load %arg10[%c0, %c0_1] : memref<8x1024xbf16, #tpu.memory_space<vmem>>, vector<8x1024xbf16>
    %c0_2 = arith.constant 0 : index
    %c0_3 = arith.constant 0 : index
    %4 = vector.load %arg6[%c0_2, %c0_3] : memref<1024x256xbf16, #tpu.memory_space<vmem>>, vector<1024x256xbf16>
    %cst = arith.constant dense<0.000000e+00> : vector<8x256xf32>
    %5 = tpu.matmul %3, %4, %cst {dimension_numbers = #tpu.dot_dimension_numbers<[1], [0], [0], [1], [0, 0, 1, 1], [], []>} : vector<8x1024xbf16>, vector<1024x256xbf16>, vector<8x256xf32> -> vector<8x256xf32>
    %cst_4 = arith.constant dense<0.000000e+00> : vector<256xf32>
    %6 = vector.multi_reduction <add>, %5, %cst_4 [0] : vector<8x256xf32> to vector<256xf32>
    %7 = vector.shape_cast %6 : vector<256xf32> to vector<1x256xf32>
    %cst_5 = arith.constant 8.000000e+00 : f32
    %8 = vector.broadcast %cst_5 : f32 to vector<1x256xf32>
    %9 = arith.divf %7, %8 : vector<1x256xf32>
    %10 = vector.broadcast %9 : vector<1x256xf32> to vector<8x256xf32>
    %11 = arith.subf %5, %10 : vector<8x256xf32>
    %12 = arith.mulf %11, %11 : vector<8x256xf32>
    %cst_6 = arith.constant dense<0.000000e+00> : vector<256xf32>
    %13 = vector.multi_reduction <add>, %12, %cst_6 [0] : vector<8x256xf32> to vector<256xf32>
    %14 = vector.shape_cast %13 : vector<256xf32> to vector<1x256xf32>
    %cst_7 = arith.constant 8.000000e+00 : f32
    %15 = vector.broadcast %cst_7 : f32 to vector<1x256xf32>
    %16 = arith.divf %14, %15 : vector<1x256xf32>
    %17 = vector.broadcast %9 : vector<1x256xf32> to vector<8x256xf32>
    %18 = arith.subf %5, %17 : vector<8x256xf32>
    %cst_8 = arith.constant 9.99999974E-6 : f32
    %19 = vector.broadcast %cst_8 : f32 to vector<1x256xf32>
    %20 = arith.addf %16, %19 : vector<1x256xf32>
    %21 = math.rsqrt %20 : vector<1x256xf32>
    %22 = vector.broadcast %21 : vector<1x256xf32> to vector<8x256xf32>
    %23 = arith.mulf %18, %22 : vector<8x256xf32>
    %cst_9 = arith.constant 0.000000e+00 : f32
    %24 = vector.broadcast %cst_9 : f32 to vector<8x256xf32>
    %25 = arith.cmpf ogt, %23, %24 : vector<8x256xf32>
    %cst_10 = arith.constant 2.000000e-01 : f32
    %26 = vector.broadcast %cst_10 : f32 to vector<8x256xf32>
    %27 = arith.mulf %26, %23 : vector<8x256xf32>
    %28 = arith.select %25, %23, %27 : vector<8x256xi1>, vector<8x256xf32>
    %c0_11 = arith.constant 0 : index
    %c0_12 = arith.constant 0 : index
    %29 = vector.load %arg7[%c0_11, %c0_12] : memref<1x256xbf16, #tpu.memory_space<vmem>>, vector<1x256xbf16>
    %30 = arith.extf %29 : vector<1x256xbf16> to vector<1x256xf32>
    %c0_13 = arith.constant 0 : index
    %c0_14 = arith.constant 0 : index
    %31 = vector.load %arg9[%c0_13, %c0_14] : memref<8x1xf32, #tpu.memory_space<vmem>>, vector<8x1xf32>
    %32 = vector.broadcast %30 : vector<1x256xf32> to vector<8x256xf32>
    %33 = arith.mulf %28, %32 : vector<8x256xf32>
    %cst_15 = arith.constant dense<0.000000e+00> : vector<8xf32>
    %34 = vector.multi_reduction <add>, %33, %cst_15 [1] : vector<8x256xf32> to vector<8xf32>
    %35 = vector.shape_cast %34 : vector<8xf32> to vector<8x1xf32>
    %36 = arith.addf %31, %35 : vector<8x1xf32>
    %c0_16 = arith.constant 0 : index
    %c0_17 = arith.constant 0 : index
    %37 = vector.load %arg9[%c0_16, %c0_17] : memref<8x1xf32, #tpu.memory_space<vmem>>, vector<8x1xf32>
    tpu.vector_store %arg9[%c0_16, %c0_17], %36 {strides = array<i32>} : memref<8x1xf32, #tpu.memory_space<vmem>>, vector<8x1xf32>,
    %c3_i32 = arith.constant 3 : i32
    %38 = arith.cmpi eq, %arg0, %c3_i32 : i32
    %39 = arith.extui %38 : i1 to i32
    %c0_i32_18 = arith.constant 0 : i32
    %40 = arith.cmpi ne, %39, %c0_i32_18 : i32
    scf.if %40 {
      %c0_19 = arith.constant 0 : index
      %c0_20 = arith.constant 0 : index
      %41 = vector.load %arg9[%c0_19, %c0_20] : memref<8x1xf32, #tpu.memory_space<vmem>>, vector<8x1xf32>
      %c0_21 = arith.constant 0 : index
      %c0_22 = arith.constant 0 : index
      %42 = vector.load %arg8[%c0_21, %c0_22] : memref<1x1xf32, #tpu.memory_space<vmem>>, vector<1x1xf32>
      %43 = vector.broadcast %42 : vector<1x1xf32> to vector<8x1xf32>
      %44 = arith.addf %41, %43 : vector<8x1xf32>
      %cst_23 = arith.constant 0.000000e+00 : f32
      %45 = vector.broadcast %cst_23 : f32 to vector<8x1xf32>
      %46 = arith.subf %45, %44 : vector<8x1xf32>
      %47 = math.exp %46 : vector<8x1xf32>
      %cst_24 = arith.constant 1.000000e+00 : f32
      %48 = vector.broadcast %cst_24 : f32 to vector<8x1xf32>
      %49 = arith.addf %48, %47 : vector<8x1xf32>
      %cst_25 = arith.constant 1.000000e+00 : f32
      %50 = vector.broadcast %cst_25 : f32 to vector<8x1xf32>
      %51 = arith.divf %50, %49 : vector<8x1xf32>
      %c0_26 = arith.constant 0 : index
      %c0_27 = arith.constant 0 : index
      %52 = vector.load %arg9[%c0_26, %c0_27] : memref<8x1xf32, #tpu.memory_space<vmem>>, vector<8x1xf32>
      tpu.vector_store %arg9[%c0_26, %c0_27], %51 {strides = array<i32>} : memref<8x1xf32, #tpu.memory_space<vmem>>, vector<8x1xf32>,
    } else {
    }
    return
  }
  func.func @transform_0(%arg0: i32) -> (i32, i32) {
    %c0_i32 = arith.constant 0 : i32
    %c0_i32_0 = arith.constant 0 : i32
    %c0_i32_1 = arith.constant 0 : i32
    return %c0_i32, %c0_i32_0 : i32, i32
  }
  func.func @transform_1(%arg0: i32) -> (i32, i32) {
    %c0_i32 = arith.constant 0 : i32
    %c0_i32_0 = arith.constant 0 : i32
    %c0_i32_1 = arith.constant 0 : i32
    return %c0_i32, %c0_i32_0 : i32, i32
  }
  func.func @transform_2(%arg0: i32) -> (i32, i32) {
    %c0_i32 = arith.constant 0 : i32
    %c0_i32_0 = arith.constant 0 : i32
    %c0_i32_1 = arith.constant 0 : i32
    return %c0_i32, %c0_i32_0 : i32, i32
  }
  func.func @transform_3(%arg0: i32) -> (i32, i32) {
    %c0_i32 = arith.constant 0 : i32
    %c0_i32_0 = arith.constant 0 : i32
    %c0_i32_1 = arith.constant 0 : i32
    return %c0_i32, %c0_i32_0 : i32, i32
  }
  func.func @transform_4(%arg0: i32) -> (i32, i32) {
    %c0_i32 = arith.constant 0 : i32
    %c0_i32_0 = arith.constant 0 : i32
    %c0_i32_1 = arith.constant 0 : i32
    return %c0_i32, %c0_i32_0 : i32, i32
  }
  func.func @transform_5(%arg0: i32) -> (i32, i32) {
    %c0_i32 = arith.constant 0 : i32
    %c0_i32_0 = arith.constant 0 : i32
    return %c0_i32, %arg0 : i32, i32
  }
  func.func @transform_6(%arg0: i32) -> (i32, i32) {
    %c0_i32 = arith.constant 0 : i32
    %c0_i32_0 = arith.constant 0 : i32
    return %c0_i32, %arg0 : i32, i32
  }
  func.func @transform_7(%arg0: i32) -> (i32, i32) {
    %c0_i32 = arith.constant 0 : i32
    %c0_i32_0 = arith.constant 0 : i32
    %c0_i32_1 = arith.constant 0 : i32
    return %c0_i32, %c0_i32_0 : i32, i32
  }
  func.func @transform_8(%arg0: i32) -> (i32, i32) {
    %c0_i32 = arith.constant 0 : i32
    %c0_i32_0 = arith.constant 0 : i32
    %c0_i32_1 = arith.constant 0 : i32
    return %c0_i32, %c0_i32_0 : i32, i32
  }
}

</mosaic_0001>

<llo_original>
// kernel: tpu_custom_call.1
$region0: #{tpu_custom_call.1}
  #allocation0 [shape = 'u32[]', space=smem, size = 0x4, offset = 0x4, fixed_abs, tag = 'smem constant byte address 0x4 - core index']
  #allocation1 [shape = 'u32[72,128]{1,0:T(1,128)}', space=vmem, size = 0x9000, scoped, tag = 'internal scratch']
  #allocation2 [shape = 'bf16[8,1024]{1,0:T(8,128)(2,1)}', space=vmem, size = 0x4000, scoped, tag = 'scratch operand']
  #allocation3 [shape = 'f32[1,1]{1,0:T(1,128)S(1)}', space=vmem, size = 0x200, scoped, tag = 'scoped memory for tpu_custom_call.1']
  %s0 = inlined_call_operand.hbm [shape: f32[8,784], index: 0, kind: input, shape index: {}]
  %s1 = inlined_call_operand.hbm [shape: f32[8,64], index: 1, kind: input, shape index: {}]
  %s2 = inlined_call_operand.hbm [shape: bf16[784,1024], index: 2, kind: input, shape index: {}]
  %s3 = inlined_call_operand.hbm [shape: bf16[64,1024], index: 3, kind: input, shape index: {}]
  %s4 = inlined_call_operand.hbm [shape: f32[1,1024], index: 4, kind: input, shape index: {}]
  %s5 = inlined_call_operand.hbm [shape: bf16[1024,1024], index: 5, kind: input, shape index: {}]
  %s6 = inlined_call_operand.hbm [shape: bf16[1,1024], index: 6, kind: input, shape index: {}]
  %s7 = inlined_call_operand.<no memory space> [shape: f32[1,1], index: 7, kind: input, shape index: {}]
  %s8 = inlined_call_operand.vmem [shape: f32[8,1], index: 8, kind: output, shape index: {}]
  %s9 = sld [smem:[#allocation0]]
  $region101: #{tpu_custom_call.1} parent=0
    _
  %s11 = ssub.s32 1, %s9
  %s12 = scalar_select 0, %s11, %s9
  %v13 = vstv %s7
  %14 = vst [vmem:[#allocation3] sm:$0x1] %v13
  $region1: #{tpu_custom_call.1} parent=0
    #allocation4 [shape = 'u8[28672]{0}', space=vmem, size = 0x7000, scoped, tag = 'input window, operand 0, single buffered']
    #allocation5 [shape = 's32[2]{0}', space=sflag, size = 0x8, scoped, tag = 'scoped memory for tpu_custom_call.1']
    #allocation6 [shape = 'u8[4096]{0}', space=vmem, size = 0x1000, scoped, tag = 'input window, operand 1, single buffered']
    #allocation7 [shape = 's32[1]{0}', space=sflag, size = 0x4, scoped, tag = 'scoped memory for tpu_custom_call.1']
    #allocation8 [shape = 'u8[1605632]{0}', space=vmem, size = 0x188000, scoped, tag = 'input window, operand 2, single buffered']
    #allocation9 [shape = 'u8[131072]{0}', space=vmem, size = 0x20000, scoped, tag = 'input window, operand 3, single buffered']
    #allocation10 [shape = 's32[1]{0}', space=sflag, size = 0x4, scoped, tag = 'scoped memory for tpu_custom_call.1']
    #allocation11 [shape = 'u8[4096]{0}', space=vmem, size = 0x1000, scoped, tag = 'input window, operand 4, single buffered']
    #allocation12 [shape = 'u8[1048576]{0}', space=vmem, size = 0x100000, scoped, tag = 'input window, operand 5']
    #allocation13 [shape = 's32[2]{0}', space=sflag, size = 0x8, scoped, tag = 'scoped memory for tpu_custom_call.1']
    #allocation14 [shape = 'u8[2048]{0}', space=vmem, size = 0x800, scoped, tag = 'input window, operand 6']
    %15 = vsyncpa [#allocation5], 0
    %16 = vsyncpa [#allocation7], 0
    %17 = vsyncpa [#allocation10], 0
    %18 = vsyncpa [#allocation13], 0
    %s19 = scalar_lea.sflag [#allocation13], 1
    %20 = vsyncpa %s19, 0
    loop: start=0, step=1, limit=6
    $region2: #{tpu_custom_call.1} parent=1 // loop_pre_header
      _
    $region3: #{tpu_custom_call.1} parent=1 // loop_header
      %s22 = sphi 0, %s26
      %p23 = scmp.ge.s32.totalorder %s22, 6
      %s30 = sphi 0, %s30
      %s32 = sphi 0, %s30
      %s33 = sphi 0, %s32
      %s47 = sphi 0, %s33
      %s51 = sphi 0, %s51
      %s53 = sphi 0, %s51
      %s54 = sphi 0, %s53
      %s68 = sphi 0, %s54
      %s72 = sphi 0, %s72
      %s74 = sphi 0, %s72
      %s75 = sphi 0, %s74
      %s89 = sphi 0, %s75
      %s93 = sphi 0, %s93
      %s95 = sphi 0, %s93
      %s96 = sphi 0, %s95
      %s110 = sphi 0, %s96
      %s114 = sphi 0, %s114
      %s116 = sphi 0, %s114
      %s117 = sphi 0, %s116
      %s131 = sphi 0, %s117
      %s137 = sphi 0, %s139
      %s140 = sphi 0, %s137
      %s141 = sphi 0, %s140
      %s157 = sphi 0, %s141
      %s163 = sphi 0, %s165
      %s166 = sphi 0, %s163
      %s167 = sphi 0, %s166
      %s183 = sphi 0, %s167
      %s187 = sphi 0, %s187
      %s189 = sphi 0, %s187
      %s190 = sphi 0, %s189
      %s204 = sphi 0, %s190
      %s208 = sphi 0, %s208
      %s210 = sphi 0, %s208
      %s211 = sphi 0, %s210
      %s225 = sphi 0, %s211
    $region4: #{tpu_custom_call.1} parent=1 // loop_header_branch
      %25 = sbr.rel (%p23) target = $region8
    $region5: #{tpu_custom_call.1} parent=1 // loop_body
      %s27 = ssub.s32 %s22, 1
      %s28 = ssub.s32 %s22, 2
      %s29 = sadd.s32 %s22, 1
      %s31 = sadd.s32 %s30, 1
      %p34 = scmp.eq.s32.totalorder %s22, 3
      %p35 = scmp.ne.s32.totalorder %s30, %s32
      %p36 = scmp.eq.s32.totalorder %s22, 0
      %p37 = por %p35, %p36
      %p38 = scmp.ne.s32.totalorder %s30, %s32
      %p39 = scmp.eq.s32.totalorder %s27, 3
      %p40 = por %p38, %p39
      %p41 = scmp.ne.s32.totalorder %s32, %s33
      %p42 = scmp.eq.s32.totalorder %s27, 0
      %p43 = por %p41, %p42
      %p44 = scmp.ne.s32.totalorder %s32, %s33
      %p45 = scmp.eq.s32.totalorder %s28, 3
      %p46 = por %p44, %p45
      %p48 = scmp.ne.s32.totalorder %s33, %s47
      %p49 = scmp.eq.s32.totalorder %s28, 0
      %p50 = por %p48, %p49
      %s52 = sadd.s32 %s51, 1
      %p55 = scmp.eq.s32.totalorder %s22, 3
      %p56 = scmp.ne.s32.totalorder %s51, %s53
      %p57 = scmp.eq.s32.totalorder %s22, 0
      %p58 = por %p56, %p57
      %p59 = scmp.ne.s32.totalorder %s51, %s53
      %p60 = scmp.eq.s32.totalorder %s27, 3
      %p61 = por %p59, %p60
      %p62 = scmp.ne.s32.totalorder %s53, %s54
      %p63 = scmp.eq.s32.totalorder %s27, 0
      %p64 = por %p62, %p63
      %p65 = scmp.ne.s32.totalorder %s53, %s54
      %p66 = scmp.eq.s32.totalorder %s28, 3
      %p67 = por %p65, %p66
      %p69 = scmp.ne.s32.totalorder %s54, %s68
      %p70 = scmp.eq.s32.totalorder %s28, 0
      %p71 = por %p69, %p70
      %s73 = sadd.s32 %s72, 1
      %p76 = scmp.eq.s32.totalorder %s22, 3
      %p77 = scmp.ne.s32.totalorder %s72, %s74
      %p78 = scmp.eq.s32.totalorder %s22, 0
      %p79 = por %p77, %p78
      %p80 = scmp.ne.s32.totalorder %s72, %s74
      %p81 = scmp.eq.s32.totalorder %s27, 3
      %p82 = por %p80, %p81
      %p83 = scmp.ne.s32.totalorder %s74, %s75
      %p84 = scmp.eq.s32.totalorder %s27, 0
      %p85 = por %p83, %p84
      %p86 = scmp.ne.s32.totalorder %s74, %s75
      %p87 = scmp.eq.s32.totalorder %s28, 3
      %p88 = por %p86, %p87
      %p90 = scmp.ne.s32.totalorder %s75, %s89
      %p91 = scmp.eq.s32.totalorder %s28, 0
      %p92 = por %p90, %p91
      %s94 = sadd.s32 %s93, 1
      %p97 = scmp.eq.s32.totalorder %s22, 3
      %p98 = scmp.ne.s32.totalorder %s93, %s95
      %p99 = scmp.eq.s32.totalorder %s22, 0
      %p100 = por %p98, %p99
      %p101 = scmp.ne.s32.totalorder %s93, %s95
      %p102 = scmp.eq.s32.totalorder %s27, 3
      %p103 = por %p101, %p102
      %p104 = scmp.ne.s32.totalorder %s95, %s96
      %p105 = scmp.eq.s32.totalorder %s27, 0
      %p106 = por %p104, %p105
      %p107 = scmp.ne.s32.totalorder %s95, %s96
      %p108 = scmp.eq.s32.totalorder %s28, 3
      %p109 = por %p107, %p108
      %p111 = scmp.ne.s32.totalorder %s96, %s110
      %p112 = scmp.eq.s32.totalorder %s28, 0
      %p113 = por %p111, %p112
      %s115 = sadd.s32 %s114, 1
      %p118 = scmp.eq.s32.totalorder %s22, 3
      %p119 = scmp.ne.s32.totalorder %s114, %s116
      %p120 = scmp.eq.s32.totalorder %s22, 0
      %p121 = por %p119, %p120
      %p122 = scmp.ne.s32.totalorder %s114, %s116
      %p123 = scmp.eq.s32.totalorder %s27, 3
      %p124 = por %p122, %p123
      %p125 = scmp.ne.s32.totalorder %s116, %s117
      %p126 = scmp.eq.s32.totalorder %s27, 0
      %p127 = por %p125, %p126
      %p128 = scmp.ne.s32.totalorder %s116, %s117
      %p129 = scmp.eq.s32.totalorder %s28, 3
      %p130 = por %p128, %p129
      %p132 = scmp.ne.s32.totalorder %s117, %s131
      %p133 = scmp.eq.s32.totalorder %s28, 0
      %p134 = por %p132, %p133
      %s135 = ssub.s32 %s22, %s29
      %p136 = scmp.eq.s32.totalorder %s135, 0
      %s138 = sadd.s32 %s137, 1
      %s139 = scalar_select %p136, %s137, %s138
      %p142 = pneg %p136
      %p143 = scmp.eq.s32.totalorder %s22, 3
      %p144 = por %p142, %p143
      %p145 = scmp.ne.s32.totalorder %s137, %s140
      %p146 = scmp.eq.s32.totalorder %s22, 0
      %p147 = por %p145, %p146
      %p148 = scmp.ne.s32.totalorder %s137, %s140
      %p149 = scmp.eq.s32.totalorder %s27, 3
      %p150 = por %p148, %p149
      %p151 = scmp.ne.s32.totalorder %s140, %s141
      %p152 = scmp.eq.s32.totalorder %s27, 0
      %p153 = por %p151, %p152
      %p154 = scmp.ne.s32.totalorder %s140, %s141
      %p155 = scmp.eq.s32.totalorder %s28, 3
      %p156 = por %p154, %p155
      %p158 = scmp.ne.s32.totalorder %s141, %s157
      %p159 = scmp.eq.s32.totalorder %s28, 0
      %p160 = por %p158, %p159
      %s161 = ssub.s32 %s22, %s29
      %p162 = scmp.eq.s32.totalorder %s161, 0
      %s164 = sadd.s32 %s163, 1
      %s165 = scalar_select %p162, %s163, %s164
      %p168 = pneg %p162
      %p169 = scmp.eq.s32.totalorder %s22, 3
      %p170 = por %p168, %p169
      %p171 = scmp.ne.s32.totalorder %s163, %s166
      %p172 = scmp.eq.s32.totalorder %s22, 0
      %p173 = por %p171, %p172
      %p174 = scmp.ne.s32.totalorder %s163, %s166
      %p175 = scmp.eq.s32.totalorder %s27, 3
      %p176 = por %p174, %p175
      %p177 = scmp.ne.s32.totalorder %s166, %s167
      %p178 = scmp.eq.s32.totalorder %s27, 0
      %p179 = por %p177, %p178
      %p180 = scmp.ne.s32.totalorder %s166, %s167
      %p181 = scmp.eq.s32.totalorder %s28, 3
      %p182 = por %p180, %p181
      %p184 = scmp.ne.s32.totalorder %s167, %s183
      %p185 = scmp.eq.s32.totalorder %s28, 0
      %p186 = por %p184, %p185
      %s188 = sadd.s32 %s187, 1
      %p191 = scmp.eq.s32.totalorder %s22, 3
      %p192 = scmp.ne.s32.totalorder %s187, %s189
      %p193 = scmp.eq.s32.totalorder %s22, 0
      %p194 = por %p192, %p193
      %p195 = scmp.ne.s32.totalorder %s187, %s189
      %p196 = scmp.eq.s32.totalorder %s27, 3
      %p197 = por %p195, %p196
      %p198 = scmp.ne.s32.totalorder %s189, %s190
      %p199 = scmp.eq.s32.totalorder %s27, 0
      %p200 = por %p198, %p199
      %p201 = scmp.ne.s32.totalorder %s189, %s190
      %p202 = scmp.eq.s32.totalorder %s28, 3
      %p203 = por %p201, %p202
      %p205 = scmp.ne.s32.totalorder %s190, %s204
      %p206 = scmp.eq.s32.totalorder %s28, 0
      %p207 = por %p205, %p206
      %s209 = sadd.s32 %s208, 1
      %p212 = scmp.eq.s32.totalorder %s22, 3
      %p213 = scmp.ne.s32.totalorder %s208, %s210
      %p214 = scmp.eq.s32.totalorder %s22, 0
      %p215 = por %p213, %p214
      %p216 = scmp.ne.s32.totalorder %s208, %s210
      %p217 = scmp.eq.s32.totalorder %s27, 3
      %p218 = por %p216, %p217
      %p219 = scmp.ne.s32.totalorder %s210, %s211
      %p220 = scmp.eq.s32.totalorder %s27, 0
      %p221 = por %p219, %p220
      %p222 = scmp.ne.s32.totalorder %s210, %s211
      %p223 = scmp.eq.s32.totalorder %s28, 3
      %p224 = por %p222, %p223
      %p226 = scmp.ne.s32.totalorder %s211, %s225
      %p227 = scmp.eq.s32.totalorder %s28, 0
      %p228 = por %p226, %p227
      %p229 = scmp.le.s32.totalorder 1, %s22
      %p230 = scmp.lt.s32.totalorder %s22, 5
      %p231 = pnand %p229, %p230
      %p232 = pneg %p231
      // Predicated region
      $region9: #{tpu_custom_call.1} parent=5 // pred_check
        _
      $region10: #{tpu_custom_call.1} parent=5 // pred_check_branch
        %234 = sbr.rel (%p231) target = $region12
      $region11: #{tpu_custom_call.1} parent=5 // pred_region
        %s235 = ssub.s32 %s22, 1
        // Predicated region
        $region13: #{tpu_custom_call.1} parent=11 // pred_check
          %p236 = pneg %p43
        $region14: #{tpu_custom_call.1} parent=11 // pred_check_branch
          %238 = sbr.rel (%p236) target = $region16
        $region15: #{tpu_custom_call.1} parent=11 // pred_region
          %240 = vsyncadd [#allocation5], 0
          %s242 = sshll.u32 %s0, 4
          %s243 = int_to_ptr.hbm [resolvable:$true] %s242
          %s244 = sshll.u32 [#allocation4], 4
          %s245 = int_to_ptr.vmem [resolvable:$true] %s244
          %247 = dma.hbm_to_vmem [thread:$0]  %s243, 896, %s245, [#allocation5]
        $region16: #{tpu_custom_call.1} parent=11 // pred_fallthru
          _
        // Predicated region
        $region17: #{tpu_custom_call.1} parent=11 // pred_check
          %p248 = pneg %p64
        $region18: #{tpu_custom_call.1} parent=11 // pred_check_branch
          %250 = sbr.rel (%p248) target = $region20
        $region19: #{tpu_custom_call.1} parent=11 // pred_region
          %252 = vsyncadd [#allocation7], 0
          %s254 = sshll.u32 %s1, 4
          %s255 = int_to_ptr.hbm [resolvable:$true] %s254
          %s256 = sshll.u32 [#allocation6], 4
          %s257 = int_to_ptr.vmem [resolvable:$true] %s256
          %259 = dma.hbm_to_vmem [thread:$0]  %s255, 128, %s257, [#allocation7]
        $region20: #{tpu_custom_call.1} parent=11 // pred_fallthru
          _
        // Predicated region
        $region21: #{tpu_custom_call.1} parent=11 // pred_check
          %p260 = pneg %p85
        $region22: #{tpu_custom_call.1} parent=11 // pred_check_branch
          %262 = sbr.rel (%p260) target = $region24
        $region23: #{tpu_custom_call.1} parent=11 // pred_region
          %264 = vsyncadd [#allocation7], 0
          %s265 = sshll.u32 %s2, 4
          %s266 = int_to_ptr.hbm [resolvable:$true] %s265
          %s267 = sshll.u32 [#allocation8], 4
          %s268 = int_to_ptr.vmem [resolvable:$true] %s267
          %273 = dma.hbm_to_vmem [thread:$0]  %s266, 50176, %s268, [#allocation7], 512, 512, 32
        $region24: #{tpu_custom_call.1} parent=11 // pred_fallthru
          _
        // Predicated region
        $region25: #{tpu_custom_call.1} parent=11 // pred_check
          %p274 = pneg %p106
        $region26: #{tpu_custom_call.1} parent=11 // pred_check_branch
          %276 = sbr.rel (%p274) target = $region28
        $region27: #{tpu_custom_call.1} parent=11 // pred_region
          %278 = vsyncadd [#allocation10], 0
          %s279 = sshll.u32 %s3, 4
          %s280 = int_to_ptr.hbm [resolvable:$true] %s279
          %s281 = sshll.u32 [#allocation9], 4
          %s282 = int_to_ptr.vmem [resolvable:$true] %s281
          %287 = dma.hbm_to_vmem [thread:$0]  %s280, 4096, %s282, [#allocation10], 512, 512, 32
        $region28: #{tpu_custom_call.1} parent=11 // pred_fallthru
          _
        // Predicated region
        $region29: #{tpu_custom_call.1} parent=11 // pred_check
          %p288 = pneg %p127
        $region30: #{tpu_custom_call.1} parent=11 // pred_check_branch
          %290 = sbr.rel (%p288) target = $region32
        $region31: #{tpu_custom_call.1} parent=11 // pred_region
          %292 = vsyncadd [#allocation10], 0
          %s294 = sshll.u32 %s4, 4
          %s295 = int_to_ptr.hbm [resolvable:$true] %s294
          %s296 = sshll.u32 [#allocation11], 4
          %s297 = int_to_ptr.vmem [resolvable:$true] %s296
          %299 = dma.hbm_to_vmem [thread:$0]  %s295, 128, %s297, [#allocation10]
        $region32: #{tpu_custom_call.1} parent=11 // pred_fallthru
          _
        // Predicated region
        $region33: #{tpu_custom_call.1} parent=11 // pred_check
          %p300 = pneg %p200
        $region34: #{tpu_custom_call.1} parent=11 // pred_check_branch
          %302 = sbr.rel (%p300) target = $region36
        $region35: #{tpu_custom_call.1} parent=11 // pred_region
          _
        $region36: #{tpu_custom_call.1} parent=11 // pred_fallthru
          _
      $region12: #{tpu_custom_call.1} parent=5 // pred_fallthru
        _
      %p303 = scmp.lt.s32.totalorder %s22, 4
      // Predicated region
      $region37: #{tpu_custom_call.1} parent=5 // pred_check
        %p304 = pneg %p303
      $region38: #{tpu_custom_call.1} parent=5 // pred_check_branch
        %306 = sbr.rel (%p304) target = $region40
      $region39: #{tpu_custom_call.1} parent=5 // pred_region
        // Predicated region
        $region41: #{tpu_custom_call.1} parent=39 // pred_check
          %p307 = pneg %p147
        $region42: #{tpu_custom_call.1} parent=39 // pred_check_branch
          %309 = sbr.rel (%p307) target = $region44
        $region43: #{tpu_custom_call.1} parent=39 // pred_region
          %s310 = sand.u32 %s22, 1
          %s311 = scalar_lea.sflag [#allocation13], %s310
          %s312 = sand.u32 %s137, 1
          %s313 = smul.addr %s312, 1024
          %s314 = scalar_lea.vmem [#allocation12], %s313
          %s315 = smul.u32 2, %s22
          %317 = vsyncadd %s311, 0
          %s318 = smul.addr %s315, 4
          %s319 = scalar_lea.hbm %s5, %s318
          %s320 = sshll.u32 %s319, 4
          %s321 = int_to_ptr.hbm [resolvable:$true] %s320
          %s322 = sshll.u32 %s314, 4
          %s323 = int_to_ptr.vmem [resolvable:$true] %s322
          %328 = dma.hbm_to_vmem [thread:$0]  %s321, 16384, %s323, %s311, 512, 128, 8
        $region44: #{tpu_custom_call.1} parent=39 // pred_fallthru
          _
        // Predicated region
        $region45: #{tpu_custom_call.1} parent=39 // pred_check
          %p329 = pneg %p173
        $region46: #{tpu_custom_call.1} parent=39 // pred_check_branch
          %331 = sbr.rel (%p329) target = $region48
        $region47: #{tpu_custom_call.1} parent=39 // pred_region
          %s332 = sand.u32 %s22, 1
          %s333 = scalar_lea.sflag [#allocation13], %s332
          %s334 = sand.u32 %s163, 1
          %s335 = smul.addr %s334, 2
          %s336 = scalar_lea.vmem [#allocation14], %s335
          %s337 = smul.u32 2, %s22
          %339 = vsyncadd %s333, 0
          %s340 = scalar_lea.hbm %s6, %s337
          %s342 = sshll.u32 %s340, 4
          %s343 = int_to_ptr.hbm [resolvable:$true] %s342
          %s344 = sshll.u32 %s336, 4
          %s345 = int_to_ptr.vmem [resolvable:$true] %s344
          %347 = dma.hbm_to_vmem [thread:$0]  %s343, 32, %s345, %s333
        $region48: #{tpu_custom_call.1} parent=39 // pred_fallthru
          _
      $region40: #{tpu_custom_call.1} parent=5 // pred_fallthru
        _
      %p348 = scmp.le.s32.totalorder 1, %s22
      %p349 = scmp.lt.s32.totalorder %s22, 5
      %p350 = pnand %p348, %p349
      %p351 = pneg %p350
      // Predicated region
      $region49: #{tpu_custom_call.1} parent=5 // pred_check
        _
      $region50: #{tpu_custom_call.1} parent=5 // pred_check_branch
        %353 = sbr.rel (%p350) target = $region52
      $region51: #{tpu_custom_call.1} parent=5 // pred_region
        %s354 = ssub.s32 %s22, 1
        // Predicated region
        $region53: #{tpu_custom_call.1} parent=51 // pred_check
          %p355 = pneg %p43
        $region54: #{tpu_custom_call.1} parent=51 // pred_check_branch
          %357 = sbr.rel (%p355) target = $region56
        $region55: #{tpu_custom_call.1} parent=51 // pred_region
          %359 = dma.done [#allocation5], 896
        $region56: #{tpu_custom_call.1} parent=51 // pred_fallthru
          _
        // Predicated region
        $region57: #{tpu_custom_call.1} parent=51 // pred_check
          %p360 = pneg %p64
        $region58: #{tpu_custom_call.1} parent=51 // pred_check_branch
          %362 = sbr.rel (%p360) target = $region60
        $region59: #{tpu_custom_call.1} parent=51 // pred_region
          %364 = dma.done [#allocation7], 128
        $region60: #{tpu_custom_call.1} parent=51 // pred_fallthru
          _
        // Predicated region
        $region61: #{tpu_custom_call.1} parent=51 // pred_check
          %p365 = pneg %p85
        $region62: #{tpu_custom_call.1} parent=51 // pred_check_branch
          %367 = sbr.rel (%p365) target = $region64
        $region63: #{tpu_custom_call.1} parent=51 // pred_region
          %369 = dma.done [#allocation7], 50176
        $region64: #{tpu_custom_call.1} parent=51 // pred_fallthru
          _
        // Predicated region
        $region65: #{tpu_custom_call.1} parent=51 // pred_check
          %p370 = pneg %p106
        $region66: #{tpu_custom_call.1} parent=51 // pred_check_branch
          %372 = sbr.rel (%p370) target = $region68
        $region67: #{tpu_custom_call.1} parent=51 // pred_region
          %374 = dma.done [#allocation10], 4096
        $region68: #{tpu_custom_call.1} parent=51 // pred_fallthru
          _
        // Predicated region
        $region69: #{tpu_custom_call.1} parent=51 // pred_check
          %p375 = pneg %p127
        $region70: #{tpu_custom_call.1} parent=51 // pred_check_branch
          %377 = sbr.rel (%p375) target = $region72
        $region71: #{tpu_custom_call.1} parent=51 // pred_region
          %379 = dma.done [#allocation10], 128
        $region72: #{tpu_custom_call.1} parent=51 // pred_fallthru
          _
        %s380 = sand.u32 %s27, 1
        %s381 = scalar_lea.sflag [#allocation13], %s380
        %s382 = sand.u32 %s140, 1
        %s383 = smul.addr %s382, 1024
        %s384 = scalar_lea.vmem [#allocation12], %s383
        // Predicated region
        $region73: #{tpu_custom_call.1} parent=51 // pred_check
          %p385 = pneg %p153
        $region74: #{tpu_custom_call.1} parent=51 // pred_check_branch
          %387 = sbr.rel (%p385) target = $region76
        $region75: #{tpu_custom_call.1} parent=51 // pred_region
          %389 = dma.done %s381, 16384
        $region76: #{tpu_custom_call.1} parent=51 // pred_fallthru
          _
        %s390 = sand.u32 %s27, 1
        %s391 = scalar_lea.sflag [#allocation13], %s390
        %s392 = sand.u32 %s166, 1
        %s393 = smul.addr %s392, 2
        %s394 = scalar_lea.vmem [#allocation14], %s393
        // Predicated region
        $region77: #{tpu_custom_call.1} parent=51 // pred_check
          %p395 = pneg %p179
        $region78: #{tpu_custom_call.1} parent=51 // pred_check_branch
          %397 = sbr.rel (%p395) target = $region80
        $region79: #{tpu_custom_call.1} parent=51 // pred_region
          %399 = dma.done %s391, 32
        $region80: #{tpu_custom_call.1} parent=51 // pred_fallthru
          _
        %p400 = pneg %p43
        %p401 = pneg %p40
        %p402 = pneg %p64
        %p403 = pneg %p61
        %p404 = pneg %p85
        %p405 = pneg %p82
        %p406 = pneg %p106
        %p407 = pneg %p103
        %p408 = pneg %p127
        %p409 = pneg %p124
        %s410 = sand.u32 %s27, 1
        %s411 = scalar_lea.sflag [#allocation13], %s410
        %s412 = sand.u32 %s140, 1
        %s413 = smul.addr %s412, 1024
        %s414 = scalar_lea.vmem [#allocation12], %s413
        %p415 = pneg %p153
        %p416 = pneg %p150
        %s417 = sand.u32 %s27, 1
        %s418 = scalar_lea.sflag [#allocation13], %s417
        %s419 = sand.u32 %s166, 1
        %s420 = smul.addr %s419, 2
        %s421 = scalar_lea.vmem [#allocation14], %s420
        %p422 = pneg %p179
        %p423 = pneg %p176
        %p424 = pneg %p200
        %p425 = pneg %p197
        %p426 = pneg %p221
        %p427 = pneg %p218
        %s428 = smul.u32 2, %s27
        %s429 = smul.u32 2, %s27
        %p431 = scmp.eq.s32.totalorder %s27, 0
        // Predicated region
        $region81: #{tpu_custom_call.1} parent=51 // pred_check
          %p432 = pneg %p431
        $region82: #{tpu_custom_call.1} parent=51 // pred_check_branch
          %434 = sbr.rel (%p432) target = $region84
        $region83: #{tpu_custom_call.1} parent=51 // pred_region
          %v435 = vld [vmem:[#allocation4] sm:$0xff]
          %v436 = vld [vmem:[#allocation4 + $0x8] sm:$0xff]
          %v437 = vld [vmem:[#allocation4 + $0x10] sm:$0xff]
          %v438 = vld [vmem:[#allocation4 + $0x18] sm:$0xff]
          %v439 = vld [vmem:[#allocation4 + $0x20] sm:$0xff]
          %v440 = vld [vmem:[#allocation4 + $0x28] sm:$0xff]
          %v441 = vld [vmem:[#allocation4 + $0x30] sm:$0xff]
          %v442 = vpack.c.bf16 %v435, %v435
          %v443 = vpack.c.bf16 %v436, %v436
          %v444 = vpack.c.bf16 %v437, %v437
          %v445 = vpack.c.bf16 %v438, %v438
          %v446 = vpack.c.bf16 %v439, %v439
          %v447 = vpack.c.bf16 %v440, %v440
          %v448 = vpack.c.bf16 %v441, %v441
          %v449 = vld [vmem:[#allocation6] sm:$0xff]
          %v450 = vpack.c.bf16 %v449, %v449
          %v451 = vld [vmem:[#allocation8] sm:$0xff]
          %v452 = vld [vmem:[#allocation8 + $0x8] sm:$0xff]
          %v453 = vld [vmem:[#allocation8 + $0x10] sm:$0xff]
          %v454 = vld [vmem:[#allocation8 + $0x18] sm:$0xff]
          %v455 = vld [vmem:[#allocation8 + $0x20] sm:$0xff]
          %v456 = vld [vmem:[#allocation8 + $0x28] sm:$0xff]
          %v457 = vld [vmem:[#allocation8 + $0x30] sm:$0xff]
          %v458 = vld [vmem:[#allocation8 + $0x38] sm:$0xff]
          %v459 = vld [vmem:[#allocation8 + $0x40] sm:$0xff]
          %v460 = vld [vmem:[#allocation8 + $0x48] sm:$0xff]
          %v461 = vld [vmem:[#allocation8 + $0x50] sm:$0xff]
          %v462 = vld [vmem:[#allocation8 + $0x58] sm:$0xff]
          %v463 = vld [vmem:[#allocation8 + $0x60] sm:$0xff]
          %v464 = vld [vmem:[#allocation8 + $0x68] sm:$0xff]
          %v465 = vld [vmem:[#allocation8 + $0x70] sm:$0xff]
          %v466 = vld [vmem:[#allocation8 + $0x78] sm:$0xff]
          %v467 = vld [vmem:[#allocation8 + $0x80] sm:$0xff]
          %v468 = vld [vmem:[#allocation8 + $0x88] sm:$0xff]
          %v469 = vld [vmem:[#allocation8 + $0x90] sm:$0xff]
          %v470 = vld [vmem:[#allocation8 + $0x98] sm:$0xff]
          %v471 = vld [vmem:[#allocation8 + $0xa0] sm:$0xff]
          %v472 = vld [vmem:[#allocation8 + $0xa8] sm:$0xff]
          %v473 = vld [vmem:[#allocation8 + $0xb0] sm:$0xff]
          %v474 = vld [vmem:[#allocation8 + $0xb8] sm:$0xff]
          %v475 = vld [vmem:[#allocation8 + $0xc0] sm:$0xff]
          %v476 = vld [vmem:[#allocation8 + $0xc8] sm:$0xff]
          %v477 = vld [vmem:[#allocation8 + $0xd0] sm:$0xff]
          %v478 = vld [vmem:[#allocation8 + $0xd8] sm:$0xff]
          %v479 = vld [vmem:[#allocation8 + $0xe0] sm:$0xff]
          %v480 = vld [vmem:[#allocation8 + $0xe8] sm:$0xff]
          %v481 = vld [vmem:[#allocation8 + $0xf0] sm:$0xff]
          %v482 = vld [vmem:[#allocation8 + $0xf8] sm:$0xff]
          %v483 = vld [vmem:[#allocation8 + $0x100] sm:$0xff]
          %v484 = vld [vmem:[#allocation8 + $0x108] sm:$0xff]
          %v485 = vld [vmem:[#allocation8 + $0x110] sm:$0xff]
          %v486 = vld [vmem:[#allocation8 + $0x118] sm:$0xff]
          %v487 = vld [vmem:[#allocation8 + $0x120] sm:$0xff]
          %v488 = vld [vmem:[#allocation8 + $0x128] sm:$0xff]
          %v489 = vld [vmem:[#allocation8 + $0x130] sm:$0xff]
          %v490 = vld [vmem:[#allocation8 + $0x138] sm:$0xff]
          %v491 = vld [vmem:[#allocation8 + $0x140] sm:$0xff]
          %v492 = vld [vmem:[#allocation8 + $0x148] sm:$0xff]
          %v493 = vld [vmem:[#allocation8 + $0x150] sm:$0xff]
          %v494 = vld [vmem:[#allocation8 + $0x158] sm:$0xff]
          %v495 = vld [vmem:[#allocation8 + $0x160] sm:$0xff]
          %v496 = vld [vmem:[#allocation8 + $0x168] sm:$0xff]
          %v497 = vld [vmem:[#allocation8 + $0x170] sm:$0xff]
          %v498 = vld [vmem:[#allocation8 + $0x178] sm:$0xff]
          %v499 = vld [vmem:[#allocation8 + $0x180] sm:$0xff]
          %v500 = vld [vmem:[#allocation8 + $0x188] sm:$0xff]
          %v501 = vld [vmem:[#allocation8 + $0x190] sm:$0xff]
          %v502 = vld [vmem:[#allocation8 + $0x198] sm:$0xff]
          %v503 = vld [vmem:[#allocation8 + $0x1a0] sm:$0xff]
          %v504 = vld [vmem:[#allocation8 + $0x1a8] sm:$0xff]
          %v505 = vld [vmem:[#allocation8 + $0x1b0] sm:$0xff]
          %v506 = vld [vmem:[#allocation8 + $0x1b8] sm:$0xff]
          %v507 = vld [vmem:[#allocation8 + $0x1c0] sm:$0xff]
          %v508 = vld [vmem:[#allocation8 + $0x1c8] sm:$0xff]
          %v509 = vld [vmem:[#allocation8 + $0x1d0] sm:$0xff]
          %v510 = vld [vmem:[#allocation8 + $0x1d8] sm:$0xff]
          %v511 = vld [vmem:[#allocation8 + $0x1e0] sm:$0xff]
          %v512 = vld [vmem:[#allocation8 + $0x1e8] sm:$0xff]
          %v513 = vld [vmem:[#allocation8 + $0x1f0] sm:$0xff]
          %v514 = vld [vmem:[#allocation8 + $0x1f8] sm:$0xff]
          %v515 = vld [vmem:[#allocation8 + $0x200] sm:$0xff]
          %v516 = vld [vmem:[#allocation8 + $0x208] sm:$0xff]
          %v517 = vld [vmem:[#allocation8 + $0x210] sm:$0xff]
          %v518 = vld [vmem:[#allocation8 + $0x218] sm:$0xff]
          %v519 = vld [vmem:[#allocation8 + $0x220] sm:$0xff]
          %v520 = vld [vmem:[#allocation8 + $0x228] sm:$0xff]
          %v521 = vld [vmem:[#allocation8 + $0x230] sm:$0xff]
          %v522 = vld [vmem:[#allocation8 + $0x238] sm:$0xff]
          %v523 = vld [vmem:[#allocation8 + $0x240] sm:$0xff]
          %v524 = vld [vmem:[#allocation8 + $0x248] sm:$0xff]
          %v525 = vld [vmem:[#allocation8 + $0x250] sm:$0xff]
          %v526 = vld [vmem:[#allocation8 + $0x258] sm:$0xff]
          %v527 = vld [vmem:[#allocation8 + $0x260] sm:$0xff]
          %v528 = vld [vmem:[#allocation8 + $0x268] sm:$0xff]
          %v529 = vld [vmem:[#allocation8 + $0x270] sm:$0xff]
          %v530 = vld [vmem:[#allocation8 + $0x278] sm:$0xff]
          %v531 = vld [vmem:[#allocation8 + $0x280] sm:$0xff]
          %v532 = vld [vmem:[#allocation8 + $0x288] sm:$0xff]
          %v533 = vld [vmem:[#allocation8 + $0x290] sm:$0xff]
          %v534 = vld [vmem:[#allocation8 + $0x298] sm:$0xff]
          %v535 = vld [vmem:[#allocation8 + $0x2a0] sm:$0xff]
          %v536 = vld [vmem:[#allocation8 + $0x2a8] sm:$0xff]
          %v537 = vld [vmem:[#allocation8 + $0x2b0] sm:$0xff]
          %v538 = vld [vmem:[#allocation8 + $0x2b8] sm:$0xff]
          %v539 = vld [vmem:[#allocation8 + $0x2c0] sm:$0xff]
          %v540 = vld [vmem:[#allocation8 + $0x2c8] sm:$0xff]
          %v541 = vld [vmem:[#allocation8 + $0x2d0] sm:$0xff]
          %v542 = vld [vmem:[#allocation8 + $0x2d8] sm:$0xff]
          %v543 = vld [vmem:[#allocation8 + $0x2e0] sm:$0xff]
          %v544 = vld [vmem:[#allocation8 + $0x2e8] sm:$0xff]
          %v545 = vld [vmem:[#allocation8 + $0x2f0] sm:$0xff]
          %v546 = vld [vmem:[#allocation8 + $0x2f8] sm:$0xff]
          %v547 = vld [vmem:[#allocation8 + $0x300] sm:$0xff]
          %v548 = vld [vmem:[#allocation8 + $0x308] sm:$0xff]
          %v549 = vld [vmem:[#allocation8 + $0x310] sm:$0xff]
          %v550 = vld [vmem:[#allocation8 + $0x318] sm:$0xff]
          %v551 = vld [vmem:[#allocation8 + $0x320] sm:$0xff]
          %v552 = vld [vmem:[#allocation8 + $0x328] sm:$0xff]
          %v553 = vld [vmem:[#allocation8 + $0x330] sm:$0xff]
          %v554 = vld [vmem:[#allocation8 + $0x338] sm:$0xff]
          %v555 = vld [vmem:[#allocation8 + $0x340] sm:$0xff]
          %v556 = vld [vmem:[#allocation8 + $0x348] sm:$0xff]
          %v557 = vld [vmem:[#allocation8 + $0x350] sm:$0xff]
          %v558 = vld [vmem:[#allocation8 + $0x358] sm:$0xff]
          %v559 = vld [vmem:[#allocation8 + $0x360] sm:$0xff]
          %v560 = vld [vmem:[#allocation8 + $0x368] sm:$0xff]
          %v561 = vld [vmem:[#allocation8 + $0x370] sm:$0xff]
          %v562 = vld [vmem:[#allocation8 + $0x378] sm:$0xff]
          %v563 = vld [vmem:[#allocation8 + $0x380] sm:$0xff]
          %v564 = vld [vmem:[#allocation8 + $0x388] sm:$0xff]
          %v565 = vld [vmem:[#allocation8 + $0x390] sm:$0xff]
          %v566 = vld [vmem:[#allocation8 + $0x398] sm:$0xff]
          %v567 = vld [vmem:[#allocation8 + $0x3a0] sm:$0xff]
          %v568 = vld [vmem:[#allocation8 + $0x3a8] sm:$0xff]
          %v569 = vld [vmem:[#allocation8 + $0x3b0] sm:$0xff]
          %v570 = vld [vmem:[#allocation8 + $0x3b8] sm:$0xff]
          %v571 = vld [vmem:[#allocation8 + $0x3c0] sm:$0xff]
          %v572 = vld [vmem:[#allocation8 + $0x3c8] sm:$0xff]
          %v573 = vld [vmem:[#allocation8 + $0x3d0] sm:$0xff]
          %v574 = vld [vmem:[#allocation8 + $0x3d8] sm:$0xff]
          %v575 = vld [vmem:[#allocation8 + $0x3e0] sm:$0xff]
          %v576 = vld [vmem:[#allocation8 + $0x3e8] sm:$0xff]
          %v577 = vld [vmem:[#allocation8 + $0x3f0] sm:$0xff]
          %v578 = vld [vmem:[#allocation8 + $0x3f8] sm:$0xff]
          %v579 = vld [vmem:[#allocation8 + $0x400] sm:$0xff]
          %v580 = vld [vmem:[#allocation8 + $0x408] sm:$0xff]
          %v581 = vld [vmem:[#allocation8 + $0x410] sm:$0xff]
          %v582 = vld [vmem:[#allocation8 + $0x418] sm:$0xff]
          %v583 = vld [vmem:[#allocation8 + $0x420] sm:$0xff]
          %v584 = vld [vmem:[#allocation8 + $0x428] sm:$0xff]
          %v585 = vld [vmem:[#allocation8 + $0x430] sm:$0xff]
          %v586 = vld [vmem:[#allocation8 + $0x438] sm:$0xff]
          %v587 = vld [vmem:[#allocation8 + $0x440] sm:$0xff]
          %v588 = vld [vmem:[#allocation8 + $0x448] sm:$0xff]
          %v589 = vld [vmem:[#allocation8 + $0x450] sm:$0xff]
          %v590 = vld [vmem:[#allocation8 + $0x458] sm:$0xff]
          %v591 = vld [vmem:[#allocation8 + $0x460] sm:$0xff]
          %v592 = vld [vmem:[#allocation8 + $0x468] sm:$0xff]
          %v593 = vld [vmem:[#allocation8 + $0x470] sm:$0xff]
          %v594 = vld [vmem:[#allocation8 + $0x478] sm:$0xff]
          %v595 = vld [vmem:[#allocation8 + $0x480] sm:$0xff]
          %v596 = vld [vmem:[#allocation8 + $0x488] sm:$0xff]
          %v597 = vld [vmem:[#allocation8 + $0x490] sm:$0xff]
          %v598 = vld [vmem:[#allocation8 + $0x498] sm:$0xff]
          %v599 = vld [vmem:[#allocation8 + $0x4a0] sm:$0xff]
          %v600 = vld [vmem:[#allocation8 + $0x4a8] sm:$0xff]
          %v601 = vld [vmem:[#allocation8 + $0x4b0] sm:$0xff]
          %v602 = vld [vmem:[#allocation8 + $0x4b8] sm:$0xff]
          %v603 = vld [vmem:[#allocation8 + $0x4c0] sm:$0xff]
          %v604 = vld [vmem:[#allocation8 + $0x4c8] sm:$0xff]
          %v605 = vld [vmem:[#allocation8 + $0x4d0] sm:$0xff]
          %v606 = vld [vmem:[#allocation8 + $0x4d8] sm:$0xff]
          %v607 = vld [vmem:[#allocation8 + $0x4e0] sm:$0xff]
          %v608 = vld [vmem:[#allocation8 + $0x4e8] sm:$0xff]
          %v609 = vld [vmem:[#allocation8 + $0x4f0] sm:$0xff]
          %v610 = vld [vmem:[#allocation8 + $0x4f8] sm:$0xff]
          %v611 = vld [vmem:[#allocation8 + $0x500] sm:$0xff]
          %v612 = vld [vmem:[#allocation8 + $0x508] sm:$0xff]
          %v613 = vld [vmem:[#allocation8 + $0x510] sm:$0xff]
          %v614 = vld [vmem:[#allocation8 + $0x518] sm:$0xff]
          %v615 = vld [vmem:[#allocation8 + $0x520] sm:$0xff]
          %v616 = vld [vmem:[#allocation8 + $0x528] sm:$0xff]
          %v617 = vld [vmem:[#allocation8 + $0x530] sm:$0xff]
          %v618 = vld [vmem:[#allocation8 + $0x538] sm:$0xff]
          %v619 = vld [vmem:[#allocation8 + $0x540] sm:$0xff]
          %v620 = vld [vmem:[#allocation8 + $0x548] sm:$0xff]
          %v621 = vld [vmem:[#allocation8 + $0x550] sm:$0xff]
          %v622 = vld [vmem:[#allocation8 + $0x558] sm:$0xff]
          %v623 = vld [vmem:[#allocation8 + $0x560] sm:$0xff]
          %v624 = vld [vmem:[#allocation8 + $0x568] sm:$0xff]
          %v625 = vld [vmem:[#allocation8 + $0x570] sm:$0xff]
          %v626 = vld [vmem:[#allocation8 + $0x578] sm:$0xff]
          %v627 = vld [vmem:[#allocation8 + $0x580] sm:$0xff]
          %v628 = vld [vmem:[#allocation8 + $0x588] sm:$0xff]
          %v629 = vld [vmem:[#allocation8 + $0x590] sm:$0xff]
          %v630 = vld [vmem:[#allocation8 + $0x598] sm:$0xff]
          %v631 = vld [vmem:[#allocation8 + $0x5a0] sm:$0xff]
          %v632 = vld [vmem:[#allocation8 + $0x5a8] sm:$0xff]
          %v633 = vld [vmem:[#allocation8 + $0x5b0] sm:$0xff]
          %v634 = vld [vmem:[#allocation8 + $0x5b8] sm:$0xff]
          %v635 = vld [vmem:[#allocation8 + $0x5c0] sm:$0xff]
          %v636 = vld [vmem:[#allocation8 + $0x5c8] sm:$0xff]
          %v637 = vld [vmem:[#allocation8 + $0x5d0] sm:$0xff]
          %v638 = vld [vmem:[#allocation8 + $0x5d8] sm:$0xff]
          %v639 = vld [vmem:[#allocation8 + $0x5e0] sm:$0xff]
          %v640 = vld [vmem:[#allocation8 + $0x5e8] sm:$0xff]
          %v641 = vld [vmem:[#allocation8 + $0x5f0] sm:$0xff]
          %v642 = vld [vmem:[#allocation8 + $0x5f8] sm:$0xff]
          %v643 = vld [vmem:[#allocation8 + $0x600] sm:$0xff]
          %v644 = vld [vmem:[#allocation8 + $0x608] sm:$0xff]
          %v645 = vld [vmem:[#allocation8 + $0x610] sm:$0xff]
          %v646 = vld [vmem:[#allocation8 + $0x618] sm:$0xff]
          %v647 = vld [vmem:[#allocation8 + $0x620] sm:$0xff]
          %v648 = vld [vmem:[#allocation8 + $0x628] sm:$0xff]
          %v649 = vld [vmem:[#allocation8 + $0x630] sm:$0xff]
          %v650 = vld [vmem:[#allocation8 + $0x638] sm:$0xff]
          %v651 = vld [vmem:[#allocation8 + $0x640] sm:$0xff]
          %v652 = vld [vmem:[#allocation8 + $0x648] sm:$0xff]
          %v653 = vld [vmem:[#allocation8 + $0x650] sm:$0xff]
          %v654 = vld [vmem:[#allocation8 + $0x658] sm:$0xff]
          %v655 = vld [vmem:[#allocation8 + $0x660] sm:$0xff]
          %v656 = vld [vmem:[#allocation8 + $0x668] sm:$0xff]
          %v657 = vld [vmem:[#allocation8 + $0x670] sm:$0xff]
          %v658 = vld [vmem:[#allocation8 + $0x678] sm:$0xff]
          %v659 = vld [vmem:[#allocation8 + $0x680] sm:$0xff]
          %v660 = vld [vmem:[#allocation8 + $0x688] sm:$0xff]
          %v661 = vld [vmem:[#allocation8 + $0x690] sm:$0xff]
          %v662 = vld [vmem:[#allocation8 + $0x698] sm:$0xff]
          %v663 = vld [vmem:[#allocation8 + $0x6a0] sm:$0xff]
          %v664 = vld [vmem:[#allocation8 + $0x6a8] sm:$0xff]
          %v665 = vld [vmem:[#allocation8 + $0x6b0] sm:$0xff]
          %v666 = vld [vmem:[#allocation8 + $0x6b8] sm:$0xff]
          %v667 = vld [vmem:[#allocation8 + $0x6c0] sm:$0xff]
          %v668 = vld [vmem:[#allocation8 + $0x6c8] sm:$0xff]
          %v669 = vld [vmem:[#allocation8 + $0x6d0] sm:$0xff]
          %v670 = vld [vmem:[#allocation8 + $0x6d8] sm:$0xff]
          %v671 = vld [vmem:[#allocation8 + $0x6e0] sm:$0xff]
          %v672 = vld [vmem:[#allocation8 + $0x6e8] sm:$0xff]
          %v673 = vld [vmem:[#allocation8 + $0x6f0] sm:$0xff]
          %v674 = vld [vmem:[#allocation8 + $0x6f8] sm:$0xff]
          %v675 = vld [vmem:[#allocation8 + $0x700] sm:$0xff]
          %v676 = vld [vmem:[#allocation8 + $0x708] sm:$0xff]
          %v677 = vld [vmem:[#allocation8 + $0x710] sm:$0xff]
          %v678 = vld [vmem:[#allocation8 + $0x718] sm:$0xff]
          %v679 = vld [vmem:[#allocation8 + $0x720] sm:$0xff]
          %v680 = vld [vmem:[#allocation8 + $0x728] sm:$0xff]
          %v681 = vld [vmem:[#allocation8 + $0x730] sm:$0xff]
          %v682 = vld [vmem:[#allocation8 + $0x738] sm:$0xff]
          %v683 = vld [vmem:[#allocation8 + $0x740] sm:$0xff]
          %v684 = vld [vmem:[#allocation8 + $0x748] sm:$0xff]
          %v685 = vld [vmem:[#allocation8 + $0x750] sm:$0xff]
          %v686 = vld [vmem:[#allocation8 + $0x758] sm:$0xff]
          %v687 = vld [vmem:[#allocation8 + $0x760] sm:$0xff]
          %v688 = vld [vmem:[#allocation8 + $0x768] sm:$0xff]
          %v689 = vld [vmem:[#allocation8 + $0x770] sm:$0xff]
          %v690 = vld [vmem:[#allocation8 + $0x778] sm:$0xff]
          %v691 = vld [vmem:[#allocation8 + $0x780] sm:$0xff]
          %v692 = vld [vmem:[#allocation8 + $0x788] sm:$0xff]
          %v693 = vld [vmem:[#allocation8 + $0x790] sm:$0xff]
          %v694 = vld [vmem:[#allocation8 + $0x798] sm:$0xff]
          %v695 = vld [vmem:[#allocation8 + $0x7a0] sm:$0xff]
          %v696 = vld [vmem:[#allocation8 + $0x7a8] sm:$0xff]
          %v697 = vld [vmem:[#allocation8 + $0x7b0] sm:$0xff]
          %v698 = vld [vmem:[#allocation8 + $0x7b8] sm:$0xff]
          %v699 = vld [vmem:[#allocation8 + $0x7c0] sm:$0xff]
          %v700 = vld [vmem:[#allocation8 + $0x7c8] sm:$0xff]
          %v701 = vld [vmem:[#allocation8 + $0x7d0] sm:$0xff]
          %v702 = vld [vmem:[#allocation8 + $0x7d8] sm:$0xff]
          %v703 = vld [vmem:[#allocation8 + $0x7e0] sm:$0xff]
          %v704 = vld [vmem:[#allocation8 + $0x7e8] sm:$0xff]
          %v705 = vld [vmem:[#allocation8 + $0x7f0] sm:$0xff]
          %v706 = vld [vmem:[#allocation8 + $0x7f8] sm:$0xff]
          %v707 = vld [vmem:[#allocation8 + $0x800] sm:$0xff]
          %v708 = vld [vmem:[#allocation8 + $0x808] sm:$0xff]
          %v709 = vld [vmem:[#allocation8 + $0x810] sm:$0xff]
          %v710 = vld [vmem:[#allocation8 + $0x818] sm:$0xff]
          %v711 = vld [vmem:[#allocation8 + $0x820] sm:$0xff]
          %v712 = vld [vmem:[#allocation8 + $0x828] sm:$0xff]
          %v713 = vld [vmem:[#allocation8 + $0x830] sm:$0xff]
          %v714 = vld [vmem:[#allocation8 + $0x838] sm:$0xff]
          %v715 = vld [vmem:[#allocation8 + $0x840] sm:$0xff]
          %v716 = vld [vmem:[#allocation8 + $0x848] sm:$0xff]
          %v717 = vld [vmem:[#allocation8 + $0x850] sm:$0xff]
          %v718 = vld [vmem:[#allocation8 + $0x858] sm:$0xff]
          %v719 = vld [vmem:[#allocation8 + $0x860] sm:$0xff]
          %v720 = vld [vmem:[#allocation8 + $0x868] sm:$0xff]
          %v721 = vld [vmem:[#allocation8 + $0x870] sm:$0xff]
          %v722 = vld [vmem:[#allocation8 + $0x878] sm:$0xff]
          %v723 = vld [vmem:[#allocation8 + $0x880] sm:$0xff]
          %v724 = vld [vmem:[#allocation8 + $0x888] sm:$0xff]
          %v725 = vld [vmem:[#allocation8 + $0x890] sm:$0xff]
          %v726 = vld [vmem:[#allocation8 + $0x898] sm:$0xff]
          %v727 = vld [vmem:[#allocation8 + $0x8a0] sm:$0xff]
          %v728 = vld [vmem:[#allocation8 + $0x8a8] sm:$0xff]
          %v729 = vld [vmem:[#allocation8 + $0x8b0] sm:$0xff]
          %v730 = vld [vmem:[#allocation8 + $0x8b8] sm:$0xff]
          %v731 = vld [vmem:[#allocation8 + $0x8c0] sm:$0xff]
          %v732 = vld [vmem:[#allocation8 + $0x8c8] sm:$0xff]
          %v733 = vld [vmem:[#allocation8 + $0x8d0] sm:$0xff]
          %v734 = vld [vmem:[#allocation8 + $0x8d8] sm:$0xff]
          %v735 = vld [vmem:[#allocation8 + $0x8e0] sm:$0xff]
          %v736 = vld [vmem:[#allocation8 + $0x8e8] sm:$0xff]
          %v737 = vld [vmem:[#allocation8 + $0x8f0] sm:$0xff]
          %v738 = vld [vmem:[#allocation8 + $0x8f8] sm:$0xff]
          %v739 = vld [vmem:[#allocation8 + $0x900] sm:$0xff]
          %v740 = vld [vmem:[#allocation8 + $0x908] sm:$0xff]
          %v741 = vld [vmem:[#allocation8 + $0x910] sm:$0xff]
          %v742 = vld [vmem:[#allocation8 + $0x918] sm:$0xff]
          %v743 = vld [vmem:[#allocation8 + $0x920] sm:$0xff]
          %v744 = vld [vmem:[#allocation8 + $0x928] sm:$0xff]
          %v745 = vld [vmem:[#allocation8 + $0x930] sm:$0xff]
          %v746 = vld [vmem:[#allocation8 + $0x938] sm:$0xff]
          %v747 = vld [vmem:[#allocation8 + $0x940] sm:$0xff]
          %v748 = vld [vmem:[#allocation8 + $0x948] sm:$0xff]
          %v749 = vld [vmem:[#allocation8 + $0x950] sm:$0xff]
          %v750 = vld [vmem:[#allocation8 + $0x958] sm:$0xff]
          %v751 = vld [vmem:[#allocation8 + $0x960] sm:$0xff]
          %v752 = vld [vmem:[#allocation8 + $0x968] sm:$0xff]
          %v753 = vld [vmem:[#allocation8 + $0x970] sm:$0xff]
          %v754 = vld [vmem:[#allocation8 + $0x978] sm:$0xff]
          %v755 = vld [vmem:[#allocation8 + $0x980] sm:$0xff]
          %v756 = vld [vmem:[#allocation8 + $0x988] sm:$0xff]
          %v757 = vld [vmem:[#allocation8 + $0x990] sm:$0xff]
          %v758 = vld [vmem:[#allocation8 + $0x998] sm:$0xff]
          %v759 = vld [vmem:[#allocation8 + $0x9a0] sm:$0xff]
          %v760 = vld [vmem:[#allocation8 + $0x9a8] sm:$0xff]
          %v761 = vld [vmem:[#allocation8 + $0x9b0] sm:$0xff]
          %v762 = vld [vmem:[#allocation8 + $0x9b8] sm:$0xff]
          %v763 = vld [vmem:[#allocation8 + $0x9c0] sm:$0xff]
          %v764 = vld [vmem:[#allocation8 + $0x9c8] sm:$0xff]
          %v765 = vld [vmem:[#allocation8 + $0x9d0] sm:$0xff]
          %v766 = vld [vmem:[#allocation8 + $0x9d8] sm:$0xff]
          %v767 = vld [vmem:[#allocation8 + $0x9e0] sm:$0xff]
          %v768 = vld [vmem:[#allocation8 + $0x9e8] sm:$0xff]
          %v769 = vld [vmem:[#allocation8 + $0x9f0] sm:$0xff]
          %v770 = vld [vmem:[#allocation8 + $0x9f8] sm:$0xff]
          %v771 = vld [vmem:[#allocation8 + $0xa00] sm:$0xff]
          %v772 = vld [vmem:[#allocation8 + $0xa08] sm:$0xff]
          %v773 = vld [vmem:[#allocation8 + $0xa10] sm:$0xff]
          %v774 = vld [vmem:[#allocation8 + $0xa18] sm:$0xff]
          %v775 = vld [vmem:[#allocation8 + $0xa20] sm:$0xff]
          %v776 = vld [vmem:[#allocation8 + $0xa28] sm:$0xff]
          %v777 = vld [vmem:[#allocation8 + $0xa30] sm:$0xff]
          %v778 = vld [vmem:[#allocation8 + $0xa38] sm:$0xff]
          %v779 = vld [vmem:[#allocation8 + $0xa40] sm:$0xff]
          %v780 = vld [vmem:[#allocation8 + $0xa48] sm:$0xff]
          %v781 = vld [vmem:[#allocation8 + $0xa50] sm:$0xff]
          %v782 = vld [vmem:[#allocation8 + $0xa58] sm:$0xff]
          %v783 = vld [vmem:[#allocation8 + $0xa60] sm:$0xff]
          %v784 = vld [vmem:[#allocation8 + $0xa68] sm:$0xff]
          %v785 = vld [vmem:[#allocation8 + $0xa70] sm:$0xff]
          %v786 = vld [vmem:[#allocation8 + $0xa78] sm:$0xff]
          %v787 = vld [vmem:[#allocation8 + $0xa80] sm:$0xff]
          %v788 = vld [vmem:[#allocation8 + $0xa88] sm:$0xff]
          %v789 = vld [vmem:[#allocation8 + $0xa90] sm:$0xff]
          %v790 = vld [vmem:[#allocation8 + $0xa98] sm:$0xff]
          %v791 = vld [vmem:[#allocation8 + $0xaa0] sm:$0xff]
          %v792 = vld [vmem:[#allocation8 + $0xaa8] sm:$0xff]
          %v793 = vld [vmem:[#allocation8 + $0xab0] sm:$0xff]
          %v794 = vld [vmem:[#allocation8 + $0xab8] sm:$0xff]
          %v795 = vld [vmem:[#allocation8 + $0xac0] sm:$0xff]
          %v796 = vld [vmem:[#allocation8 + $0xac8] sm:$0xff]
          %v797 = vld [vmem:[#allocation8 + $0xad0] sm:$0xff]
          %v798 = vld [vmem:[#allocation8 + $0xad8] sm:$0xff]
          %v799 = vld [vmem:[#allocation8 + $0xae0] sm:$0xff]
          %v800 = vld [vmem:[#allocation8 + $0xae8] sm:$0xff]
          %v801 = vld [vmem:[#allocation8 + $0xaf0] sm:$0xff]
          %v802 = vld [vmem:[#allocation8 + $0xaf8] sm:$0xff]
          %v803 = vld [vmem:[#allocation8 + $0xb00] sm:$0xff]
          %v804 = vld [vmem:[#allocation8 + $0xb08] sm:$0xff]
          %v805 = vld [vmem:[#allocation8 + $0xb10] sm:$0xff]
          %v806 = vld [vmem:[#allocation8 + $0xb18] sm:$0xff]
          %v807 = vld [vmem:[#allocation8 + $0xb20] sm:$0xff]
          %v808 = vld [vmem:[#allocation8 + $0xb28] sm:$0xff]
          %v809 = vld [vmem:[#allocation8 + $0xb30] sm:$0xff]
          %v810 = vld [vmem:[#allocation8 + $0xb38] sm:$0xff]
          %v811 = vld [vmem:[#allocation8 + $0xb40] sm:$0xff]
          %v812 = vld [vmem:[#allocation8 + $0xb48] sm:$0xff]
          %v813 = vld [vmem:[#allocation8 + $0xb50] sm:$0xff]
          %v814 = vld [vmem:[#allocation8 + $0xb58] sm:$0xff]
          %v815 = vld [vmem:[#allocation8 + $0xb60] sm:$0xff]
          %v816 = vld [vmem:[#allocation8 + $0xb68] sm:$0xff]
          %v817 = vld [vmem:[#allocation8 + $0xb70] sm:$0xff]
          %v818 = vld [vmem:[#allocation8 + $0xb78] sm:$0xff]
          %v819 = vld [vmem:[#allocation8 + $0xb80] sm:$0xff]
          %v820 = vld [vmem:[#allocation8 + $0xb88] sm:$0xff]
          %v821 = vld [vmem:[#allocation8 + $0xb90] sm:$0xff]
          %v822 = vld [vmem:[#allocation8 + $0xb98] sm:$0xff]
          %v823 = vld [vmem:[#allocation8 + $0xba0] sm:$0xff]
          %v824 = vld [vmem:[#allocation8 + $0xba8] sm:$0xff]
          %v825 = vld [vmem:[#allocation8 + $0xbb0] sm:$0xff]
          %v826 = vld [vmem:[#allocation8 + $0xbb8] sm:$0xff]
          %v827 = vld [vmem:[#allocation8 + $0xbc0] sm:$0xff]
          %v828 = vld [vmem:[#allocation8 + $0xbc8] sm:$0xff]
          %v829 = vld [vmem:[#allocation8 + $0xbd0] sm:$0xff]
          %v830 = vld [vmem:[#allocation8 + $0xbd8] sm:$0xff]
          %v831 = vld [vmem:[#allocation8 + $0xbe0] sm:$0xff]
          %v832 = vld [vmem:[#allocation8 + $0xbe8] sm:$0xff]
          %v833 = vld [vmem:[#allocation8 + $0xbf0] sm:$0xff]
          %v834 = vld [vmem:[#allocation8 + $0xbf8] sm:$0xff]
          %v835 = vld [vmem:[#allocation8 + $0xc00] sm:$0xff]
          %v836 = vld [vmem:[#allocation8 + $0xc08] sm:$0xff]
          %v837 = vld [vmem:[#allocation8 + $0xc10] sm:$0xff]
          %v838 = vld [vmem:[#allocation8 + $0xc18] sm:$0xff]
          %v839 = vld [vmem:[#allocation8 + $0xc20] sm:$0xff]
          %v840 = vld [vmem:[#allocation8 + $0xc28] sm:$0xff]
          %v841 = vld [vmem:[#allocation8 + $0xc30] sm:$0xff]
          %v842 = vld [vmem:[#allocation8 + $0xc38] sm:$0xff]
          %v843 = vld [vmem:[#allocation9] sm:$0xff]
          %v844 = vld [vmem:[#allocation9 + $0x8] sm:$0xff]
          %v845 = vld [vmem:[#allocation9 + $0x10] sm:$0xff]
          %v846 = vld [vmem:[#allocation9 + $0x18] sm:$0xff]
          %v847 = vld [vmem:[#allocation9 + $0x20] sm:$0xff]
          %v848 = vld [vmem:[#allocation9 + $0x28] sm:$0xff]
          %v849 = vld [vmem:[#allocation9 + $0x30] sm:$0xff]
          %v850 = vld [vmem:[#allocation9 + $0x38] sm:$0xff]
          %v851 = vld [vmem:[#allocation9 + $0x40] sm:$0xff]
          %v852 = vld [vmem:[#allocation9 + $0x48] sm:$0xff]
          %v853 = vld [vmem:[#allocation9 + $0x50] sm:$0xff]
          %v854 = vld [vmem:[#allocation9 + $0x58] sm:$0xff]
          %v855 = vld [vmem:[#allocation9 + $0x60] sm:$0xff]
          %v856 = vld [vmem:[#allocation9 + $0x68] sm:$0xff]
          %v857 = vld [vmem:[#allocation9 + $0x70] sm:$0xff]
          %v858 = vld [vmem:[#allocation9 + $0x78] sm:$0xff]
          %v859 = vld [vmem:[#allocation9 + $0x80] sm:$0xff]
          %v860 = vld [vmem:[#allocation9 + $0x88] sm:$0xff]
          %v861 = vld [vmem:[#allocation9 + $0x90] sm:$0xff]
          %v862 = vld [vmem:[#allocation9 + $0x98] sm:$0xff]
          %v863 = vld [vmem:[#allocation9 + $0xa0] sm:$0xff]
          %v864 = vld [vmem:[#allocation9 + $0xa8] sm:$0xff]
          %v865 = vld [vmem:[#allocation9 + $0xb0] sm:$0xff]
          %v866 = vld [vmem:[#allocation9 + $0xb8] sm:$0xff]
          %v867 = vld [vmem:[#allocation9 + $0xc0] sm:$0xff]
          %v868 = vld [vmem:[#allocation9 + $0xc8] sm:$0xff]
          %v869 = vld [vmem:[#allocation9 + $0xd0] sm:$0xff]
          %v870 = vld [vmem:[#allocation9 + $0xd8] sm:$0xff]
          %v871 = vld [vmem:[#allocation9 + $0xe0] sm:$0xff]
          %v872 = vld [vmem:[#allocation9 + $0xe8] sm:$0xff]
          %v873 = vld [vmem:[#allocation9 + $0xf0] sm:$0xff]
          %v874 = vld [vmem:[#allocation9 + $0xf8] sm:$0xff]
          %v907 = vunpack.c.l.b16 %v843
          %v908 = vunpack.c.h.b16 %v843
          %v909 = vunpack.c.l.b16 %v844
          %v910 = vunpack.c.h.b16 %v844
          %v911 = vunpack.c.l.b16 %v845
          %v912 = vunpack.c.h.b16 %v845
          %v913 = vunpack.c.l.b16 %v846
          %v914 = vunpack.c.h.b16 %v846
          %v915 = vunpack.c.l.b16 %v847
          %v916 = vunpack.c.h.b16 %v847
          %v917 = vunpack.c.l.b16 %v848
          %v918 = vunpack.c.h.b16 %v848
          %v919 = vunpack.c.l.b16 %v849
          %v920 = vunpack.c.h.b16 %v849
          %v921 = vunpack.c.l.b16 %v850
          %v922 = vunpack.c.h.b16 %v850
          %v923 = vunpack.c.l.b16 %v851
          %v924 = vunpack.c.h.b16 %v851
          %v925 = vunpack.c.l.b16 %v852
          %v926 = vunpack.c.h.b16 %v852
          %v927 = vunpack.c.l.b16 %v853
          %v928 = vunpack.c.h.b16 %v853
          %v929 = vunpack.c.l.b16 %v854
          %v930 = vunpack.c.h.b16 %v854
          %v931 = vunpack.c.l.b16 %v855
          %v932 = vunpack.c.h.b16 %v855
          %v933 = vunpack.c.l.b16 %v856
          %v934 = vunpack.c.h.b16 %v856
          %v935 = vunpack.c.l.b16 %v857
          %v936 = vunpack.c.h.b16 %v857
          %v937 = vunpack.c.l.b16 %v858
          %v938 = vunpack.c.h.b16 %v858
          %v939 = vunpack.c.l.b16 %v859
          %v940 = vunpack.c.h.b16 %v859
          %v941 = vunpack.c.l.b16 %v860
          %v942 = vunpack.c.h.b16 %v860
          %v943 = vunpack.c.l.b16 %v861
          %v944 = vunpack.c.h.b16 %v861
          %v945 = vunpack.c.l.b16 %v862
          %v946 = vunpack.c.h.b16 %v862
          %v947 = vunpack.c.l.b16 %v863
          %v948 = vunpack.c.h.b16 %v863
          %v949 = vunpack.c.l.b16 %v864
          %v950 = vunpack.c.h.b16 %v864
          %v951 = vunpack.c.l.b16 %v865
          %v952 = vunpack.c.h.b16 %v865
          %v953 = vunpack.c.l.b16 %v866
          %v954 = vunpack.c.h.b16 %v866
          %v955 = vunpack.c.l.b16 %v867
          %v956 = vunpack.c.h.b16 %v867
          %v957 = vunpack.c.l.b16 %v868
          %v958 = vunpack.c.h.b16 %v868
          %v959 = vunpack.c.l.b16 %v869
          %v960 = vunpack.c.h.b16 %v869
          %v961 = vunpack.c.l.b16 %v870
          %v962 = vunpack.c.h.b16 %v870
          %v963 = vunpack.c.l.b16 %v871
          %v964 = vunpack.c.h.b16 %v871
          %v965 = vunpack.c.l.b16 %v872
          %v966 = vunpack.c.h.b16 %v872
          %v967 = vunpack.c.l.b16 %v873
          %v968 = vunpack.c.h.b16 %v873
          %v969 = vunpack.c.l.b16 %v874
          %v970 = vunpack.c.h.b16 %v874
          %v971 = vpack.c.b16 %v915, %v907
          %v972 = vpack.c.b16 %v916, %v908
          %v973 = vpack.c.b16 %v917, %v909
          %v974 = vpack.c.b16 %v918, %v910
          %v975 = vpack.c.b16 %v919, %v911
          %v976 = vpack.c.b16 %v920, %v912
          %v977 = vpack.c.b16 %v921, %v913
          %v978 = vpack.c.b16 %v922, %v914
          %v979 = vpack.c.b16 %v931, %v923
          %v980 = vpack.c.b16 %v932, %v924
          %v981 = vpack.c.b16 %v933, %v925
          %v982 = vpack.c.b16 %v934, %v926
          %v983 = vpack.c.b16 %v935, %v927
          %v984 = vpack.c.b16 %v936, %v928
          %v985 = vpack.c.b16 %v937, %v929
          %v986 = vpack.c.b16 %v938, %v930
          %v987 = vpack.c.b16 %v947, %v939
          %v988 = vpack.c.b16 %v948, %v940
          %v989 = vpack.c.b16 %v949, %v941
          %v990 = vpack.c.b16 %v950, %v942
          %v991 = vpack.c.b16 %v951, %v943
          %v992 = vpack.c.b16 %v952, %v944
          %v993 = vpack.c.b16 %v953, %v945
          %v994 = vpack.c.b16 %v954, %v946
          %v995 = vpack.c.b16 %v963, %v955
          %v996 = vpack.c.b16 %v964, %v956
          %v997 = vpack.c.b16 %v965, %v957
          %v998 = vpack.c.b16 %v966, %v958
          %v999 = vpack.c.b16 %v967, %v959
          %v1000 = vpack.c.b16 %v968, %v960
          %v1001 = vpack.c.b16 %v969, %v961
          %v1002 = vpack.c.b16 %v970, %v962
          %vm1035 = vcmask 523264
          %v1037 = vsel %vm1035, %v450, 0
          %1039 = vmatpush.bf16.msra.mxu0 0
          %1040 = vmatpush.bf16.msra.mxu0 0
          %1041 = vmatpush.bf16.msra.mxu0 0
          %1042 = vmatpush.bf16.msra.mxu0 0
          %1043 = vmatpush.bf16.msra.mxu0 %v995
          %1044 = vmatpush.bf16.msra.mxu0 %v987
          %1045 = vmatpush.bf16.msra.mxu0 %v979
          %1046 = vmatpush.bf16.msra.mxu0 %v971
          %1047 = vmatmul.bf16.gmra.mxu0 %v1037
          %v1048 = vpop.f32.mrf.mxu0
          %v1049 = vadd.f32 0.0, %v1048
          %v1050 = vpop.f32.mrf.mxu0
          %1051 = vdwg.mxu0
          %1052 = vmatpush.bf16.msra.mxu0 0
          %1053 = vmatpush.bf16.msra.mxu0 0
          %1054 = vmatpush.bf16.msra.mxu0 0
          %1055 = vmatpush.bf16.msra.mxu0 0
          %1056 = vmatpush.bf16.msra.mxu0 %v996
          %1057 = vmatpush.bf16.msra.mxu0 %v988
          %1058 = vmatpush.bf16.msra.mxu0 %v980
          %1059 = vmatpush.bf16.msra.mxu0 %v972
          %1060 = vmatmul.bf16.gmra.mxu0 %v1037
          %v1061 = vpop.f32.mrf.mxu0
          %v1062 = vadd.f32 0.0, %v1061
          %v1063 = vpop.f32.mrf.mxu0
          %1064 = vdwg.mxu0
          %1065 = vmatpush.bf16.msra.mxu0 0
          %1066 = vmatpush.bf16.msra.mxu0 0
          %1067 = vmatpush.bf16.msra.mxu0 0
          %1068 = vmatpush.bf16.msra.mxu0 0
          %1069 = vmatpush.bf16.msra.mxu0 %v997
          %1070 = vmatpush.bf16.msra.mxu0 %v989
          %1071 = vmatpush.bf16.msra.mxu0 %v981
          %1072 = vmatpush.bf16.msra.mxu0 %v973
          %1073 = vmatmul.bf16.gmra.mxu0 %v1037
          %v1074 = vpop.f32.mrf.mxu0
          %v1075 = vadd.f32 0.0, %v1074
          %v1076 = vpop.f32.mrf.mxu0
          %1077 = vdwg.mxu0
          %1078 = vmatpush.bf16.msra.mxu0 0
          %1079 = vmatpush.bf16.msra.mxu0 0
          %1080 = vmatpush.bf16.msra.mxu0 0
          %1081 = vmatpush.bf16.msra.mxu0 0
          %1082 = vmatpush.bf16.msra.mxu0 %v998
          %1083 = vmatpush.bf16.msra.mxu0 %v990
          %1084 = vmatpush.bf16.msra.mxu0 %v982
          %1085 = vmatpush.bf16.msra.mxu0 %v974
          %1086 = vmatmul.bf16.gmra.mxu0 %v1037
          %v1087 = vpop.f32.mrf.mxu0
          %v1088 = vadd.f32 0.0, %v1087
          %v1089 = vpop.f32.mrf.mxu0
          %1090 = vdwg.mxu0
          %1091 = vmatpush.bf16.msra.mxu0 0
          %1092 = vmatpush.bf16.msra.mxu0 0
          %1093 = vmatpush.bf16.msra.mxu0 0
          %1094 = vmatpush.bf16.msra.mxu0 0
          %1095 = vmatpush.bf16.msra.mxu0 %v999
          %1096 = vmatpush.bf16.msra.mxu0 %v991
          %1097 = vmatpush.bf16.msra.mxu0 %v983
          %1098 = vmatpush.bf16.msra.mxu0 %v975
          %1099 = vmatmul.bf16.gmra.mxu0 %v1037
          %v1100 = vpop.f32.mrf.mxu0
          %v1101 = vadd.f32 0.0, %v1100
          %v1102 = vpop.f32.mrf.mxu0
          %1103 = vdwg.mxu0
          %1104 = vmatpush.bf16.msra.mxu0 0
          %1105 = vmatpush.bf16.msra.mxu0 0
          %1106 = vmatpush.bf16.msra.mxu0 0
          %1107 = vmatpush.bf16.msra.mxu0 0
          %1108 = vmatpush.bf16.msra.mxu0 %v1000
          %1109 = vmatpush.bf16.msra.mxu0 %v992
          %1110 = vmatpush.bf16.msra.mxu0 %v984
          %1111 = vmatpush.bf16.msra.mxu0 %v976
          %1112 = vmatmul.bf16.gmra.mxu0 %v1037
          %v1113 = vpop.f32.mrf.mxu0
          %v1114 = vadd.f32 0.0, %v1113
          %v1115 = vpop.f32.mrf.mxu0
          %1116 = vdwg.mxu0
          %1117 = vmatpush.bf16.msra.mxu0 0
          %1118 = vmatpush.bf16.msra.mxu0 0
          %1119 = vmatpush.bf16.msra.mxu0 0
          %1120 = vmatpush.bf16.msra.mxu0 0
          %1121 = vmatpush.bf16.msra.mxu0 %v1001
          %1122 = vmatpush.bf16.msra.mxu0 %v993
          %1123 = vmatpush.bf16.msra.mxu0 %v985
          %1124 = vmatpush.bf16.msra.mxu0 %v977
          %1125 = vmatmul.bf16.gmra.mxu0 %v1037
          %v1126 = vpop.f32.mrf.mxu0
          %v1127 = vadd.f32 0.0, %v1126
          %v1128 = vpop.f32.mrf.mxu0
          %1129 = vdwg.mxu0
          %1130 = vmatpush.bf16.msra.mxu0 0
          %1131 = vmatpush.bf16.msra.mxu0 0
          %1132 = vmatpush.bf16.msra.mxu0 0
          %1133 = vmatpush.bf16.msra.mxu0 0
          %1134 = vmatpush.bf16.msra.mxu0 %v1002
          %1135 = vmatpush.bf16.msra.mxu0 %v994
          %1136 = vmatpush.bf16.msra.mxu0 %v986
          %1137 = vmatpush.bf16.msra.mxu0 %v978
          %1138 = vmatmul.bf16.gmra.mxu0 %v1037
          %v1139 = vpop.f32.mrf.mxu0
          %v1140 = vadd.f32 0.0, %v1139
          %v1141 = vpop.f32.mrf.mxu0
          %1142 = vdwg.mxu0
          %v1535 = vunpack.c.l.b16 %v451
          %v1536 = vunpack.c.h.b16 %v451
          %v1537 = vunpack.c.l.b16 %v452
          %v1538 = vunpack.c.h.b16 %v452
          %v1539 = vunpack.c.l.b16 %v453
          %v1540 = vunpack.c.h.b16 %v453
          %v1541 = vunpack.c.l.b16 %v454
          %v1542 = vunpack.c.h.b16 %v454
          %v1543 = vunpack.c.l.b16 %v455
          %v1544 = vunpack.c.h.b16 %v455
          %v1545 = vunpack.c.l.b16 %v456
          %v1546 = vunpack.c.h.b16 %v456
          %v1547 = vunpack.c.l.b16 %v457
          %v1548 = vunpack.c.h.b16 %v457
          %v1549 = vunpack.c.l.b16 %v458
          %v1550 = vunpack.c.h.b16 %v458
          %v1551 = vunpack.c.l.b16 %v459
          %v1552 = vunpack.c.h.b16 %v459
          %v1553 = vunpack.c.l.b16 %v460
          %v1554 = vunpack.c.h.b16 %v460
          %v1555 = vunpack.c.l.b16 %v461
          %v1556 = vunpack.c.h.b16 %v461
          %v1557 = vunpack.c.l.b16 %v462
          %v1558 = vunpack.c.h.b16 %v462
          %v1559 = vunpack.c.l.b16 %v463
          %v1560 = vunpack.c.h.b16 %v463
          %v1561 = vunpack.c.l.b16 %v464
          %v1562 = vunpack.c.h.b16 %v464
          %v1563 = vunpack.c.l.b16 %v465
          %v1564 = vunpack.c.h.b16 %v465
          %v1565 = vunpack.c.l.b16 %v466
          %v1566 = vunpack.c.h.b16 %v466
          %v1567 = vunpack.c.l.b16 %v467
          %v1568 = vunpack.c.h.b16 %v467
          %v1569 = vunpack.c.l.b16 %v468
          %v1570 = vunpack.c.h.b16 %v468
          %v1571 = vunpack.c.l.b16 %v469
          %v1572 = vunpack.c.h.b16 %v469
          %v1573 = vunpack.c.l.b16 %v470
          %v1574 = vunpack.c.h.b16 %v470
          %v1575 = vunpack.c.l.b16 %v471
          %v1576 = vunpack.c.h.b16 %v471
          %v1577 = vunpack.c.l.b16 %v472
          %v1578 = vunpack.c.h.b16 %v472
          %v1579 = vunpack.c.l.b16 %v473
          %v1580 = vunpack.c.h.b16 %v473
          %v1581 = vunpack.c.l.b16 %v474
          %v1582 = vunpack.c.h.b16 %v474
          %v1583 = vunpack.c.l.b16 %v475
          %v1584 = vunpack.c.h.b16 %v475
          %v1585 = vunpack.c.l.b16 %v476
          %v1586 = vunpack.c.h.b16 %v476
          %v1587 = vunpack.c.l.b16 %v477
          %v1588 = vunpack.c.h.b16 %v477
          %v1589 = vunpack.c.l.b16 %v478
          %v1590 = vunpack.c.h.b16 %v478
          %v1591 = vunpack.c.l.b16 %v479
          %v1592 = vunpack.c.h.b16 %v479
          %v1593 = vunpack.c.l.b16 %v480
          %v1594 = vunpack.c.h.b16 %v480
          %v1595 = vunpack.c.l.b16 %v481
          %v1596 = vunpack.c.h.b16 %v481
          %v1597 = vunpack.c.l.b16 %v482
          %v1598 = vunpack.c.h.b16 %v482
          %v1599 = vunpack.c.l.b16 %v483
          %v1600 = vunpack.c.h.b16 %v483
          %v1601 = vunpack.c.l.b16 %v484
          %v1602 = vunpack.c.h.b16 %v484
          %v1603 = vunpack.c.l.b16 %v485
          %v1604 = vunpack.c.h.b16 %v485
          %v1605 = vunpack.c.l.b16 %v486
          %v1606 = vunpack.c.h.b16 %v486
          %v1607 = vunpack.c.l.b16 %v487
          %v1608 = vunpack.c.h.b16 %v487
          %v1609 = vunpack.c.l.b16 %v488
          %v1610 = vunpack.c.h.b16 %v488
          %v1611 = vunpack.c.l.b16 %v489
          %v1612 = vunpack.c.h.b16 %v489
          %v1613 = vunpack.c.l.b16 %v490
          %v1614 = vunpack.c.h.b16 %v490
          %v1615 = vunpack.c.l.b16 %v491
          %v1616 = vunpack.c.h.b16 %v491
          %v1617 = vunpack.c.l.b16 %v492
          %v1618 = vunpack.c.h.b16 %v492
          %v1619 = vunpack.c.l.b16 %v493
          %v1620 = vunpack.c.h.b16 %v493
          %v1621 = vunpack.c.l.b16 %v494
          %v1622 = vunpack.c.h.b16 %v494
          %v1623 = vunpack.c.l.b16 %v495
          %v1624 = vunpack.c.h.b16 %v495
          %v1625 = vunpack.c.l.b16 %v496
          %v1626 = vunpack.c.h.b16 %v496
          %v1627 = vunpack.c.l.b16 %v497
          %v1628 = vunpack.c.h.b16 %v497
          %v1629 = vunpack.c.l.b16 %v498
          %v1630 = vunpack.c.h.b16 %v498
          %v1631 = vunpack.c.l.b16 %v499
          %v1632 = vunpack.c.h.b16 %v499
          %v1633 = vunpack.c.l.b16 %v500
          %v1634 = vunpack.c.h.b16 %v500
          %v1635 = vunpack.c.l.b16 %v501
          %v1636 = vunpack.c.h.b16 %v501
          %v1637 = vunpack.c.l.b16 %v502
          %v1638 = vunpack.c.h.b16 %v502
          %v1639 = vunpack.c.l.b16 %v503
          %v1640 = vunpack.c.h.b16 %v503
          %v1641 = vunpack.c.l.b16 %v504
          %v1642 = vunpack.c.h.b16 %v504
          %v1643 = vunpack.c.l.b16 %v505
          %v1644 = vunpack.c.h.b16 %v505
          %v1645 = vunpack.c.l.b16 %v506
          %v1646 = vunpack.c.h.b16 %v506
          %v1647 = vunpack.c.l.b16 %v507
          %v1648 = vunpack.c.h.b16 %v507
          %v1649 = vunpack.c.l.b16 %v508
          %v1650 = vunpack.c.h.b16 %v508
          %v1651 = vunpack.c.l.b16 %v509
          %v1652 = vunpack.c.h.b16 %v509
          %v1653 = vunpack.c.l.b16 %v510
          %v1654 = vunpack.c.h.b16 %v510
          %v1655 = vunpack.c.l.b16 %v511
          %v1656 = vunpack.c.h.b16 %v511
          %v1657 = vunpack.c.l.b16 %v512
          %v1658 = vunpack.c.h.b16 %v512
          %v1659 = vunpack.c.l.b16 %v513
          %v1660 = vunpack.c.h.b16 %v513
          %v1661 = vunpack.c.l.b16 %v514
          %v1662 = vunpack.c.h.b16 %v514
          %v1663 = vunpack.c.l.b16 %v515
          %v1664 = vunpack.c.h.b16 %v515
          %v1665 = vunpack.c.l.b16 %v516
          %v1666 = vunpack.c.h.b16 %v516
          %v1667 = vunpack.c.l.b16 %v517
          %v1668 = vunpack.c.h.b16 %v517
          %v1669 = vunpack.c.l.b16 %v518
          %v1670 = vunpack.c.h.b16 %v518
          %v1671 = vunpack.c.l.b16 %v519
          %v1672 = vunpack.c.h.b16 %v519
          %v1673 = vunpack.c.l.b16 %v520
          %v1674 = vunpack.c.h.b16 %v520
          %v1675 = vunpack.c.l.b16 %v521
          %v1676 = vunpack.c.h.b16 %v521
          %v1677 = vunpack.c.l.b16 %v522
          %v1678 = vunpack.c.h.b16 %v522
          %v1679 = vunpack.c.l.b16 %v523
          %v1680 = vunpack.c.h.b16 %v523
          %v1681 = vunpack.c.l.b16 %v524
          %v1682 = vunpack.c.h.b16 %v524
          %v1683 = vunpack.c.l.b16 %v525
          %v1684 = vunpack.c.h.b16 %v525
          %v1685 = vunpack.c.l.b16 %v526
          %v1686 = vunpack.c.h.b16 %v526
          %v1687 = vunpack.c.l.b16 %v527
          %v1688 = vunpack.c.h.b16 %v527
          %v1689 = vunpack.c.l.b16 %v528
          %v1690 = vunpack.c.h.b16 %v528
          %v1691 = vunpack.c.l.b16 %v529
          %v1692 = vunpack.c.h.b16 %v529
          %v1693 = vunpack.c.l.b16 %v530
          %v1694 = vunpack.c.h.b16 %v530
          %v1695 = vunpack.c.l.b16 %v531
          %v1696 = vunpack.c.h.b16 %v531
          %v1697 = vunpack.c.l.b16 %v532
          %v1698 = vunpack.c.h.b16 %v532
          %v1699 = vunpack.c.l.b16 %v533
          %v1700 = vunpack.c.h.b16 %v533
          %v1701 = vunpack.c.l.b16 %v534
          %v1702 = vunpack.c.h.b16 %v534
          %v1703 = vunpack.c.l.b16 %v535
          %v1704 = vunpack.c.h.b16 %v535
          %v1705 = vunpack.c.l.b16 %v536
          %v1706 = vunpack.c.h.b16 %v536
          %v1707 = vunpack.c.l.b16 %v537
          %v1708 = vunpack.c.h.b16 %v537
          %v1709 = vunpack.c.l.b16 %v538
          %v1710 = vunpack.c.h.b16 %v538
          %v1711 = vunpack.c.l.b16 %v539
          %v1712 = vunpack.c.h.b16 %v539
          %v1713 = vunpack.c.l.b16 %v540
          %v1714 = vunpack.c.h.b16 %v540
          %v1715 = vunpack.c.l.b16 %v541
          %v1716 = vunpack.c.h.b16 %v541
          %v1717 = vunpack.c.l.b16 %v542
          %v1718 = vunpack.c.h.b16 %v542
          %v1719 = vunpack.c.l.b16 %v543
          %v1720 = vunpack.c.h.b16 %v543
          %v1721 = vunpack.c.l.b16 %v544
          %v1722 = vunpack.c.h.b16 %v544
          %v1723 = vunpack.c.l.b16 %v545
          %v1724 = vunpack.c.h.b16 %v545
          %v1725 = vunpack.c.l.b16 %v546
          %v1726 = vunpack.c.h.b16 %v546
          %v1727 = vunpack.c.l.b16 %v547
          %v1728 = vunpack.c.h.b16 %v547
          %v1729 = vunpack.c.l.b16 %v548
          %v1730 = vunpack.c.h.b16 %v548
          %v1731 = vunpack.c.l.b16 %v549
          %v1732 = vunpack.c.h.b16 %v549
          %v1733 = vunpack.c.l.b16 %v550
          %v1734 = vunpack.c.h.b16 %v550
          %v1735 = vunpack.c.l.b16 %v551
          %v1736 = vunpack.c.h.b16 %v551
          %v1737 = vunpack.c.l.b16 %v552
          %v1738 = vunpack.c.h.b16 %v552
          %v1739 = vunpack.c.l.b16 %v553
          %v1740 = vunpack.c.h.b16 %v553
          %v1741 = vunpack.c.l.b16 %v554
          %v1742 = vunpack.c.h.b16 %v554
          %v1743 = vunpack.c.l.b16 %v555
          %v1744 = vunpack.c.h.b16 %v555
          %v1745 = vunpack.c.l.b16 %v556
          %v1746 = vunpack.c.h.b16 %v556
          %v1747 = vunpack.c.l.b16 %v557
          %v1748 = vunpack.c.h.b16 %v557
          %v1749 = vunpack.c.l.b16 %v558
          %v1750 = vunpack.c.h.b16 %v558
          %v1751 = vunpack.c.l.b16 %v559
          %v1752 = vunpack.c.h.b16 %v559
          %v1753 = vunpack.c.l.b16 %v560
          %v1754 = vunpack.c.h.b16 %v560
          %v1755 = vunpack.c.l.b16 %v561
          %v1756 = vunpack.c.h.b16 %v561
          %v1757 = vunpack.c.l.b16 %v562
          %v1758 = vunpack.c.h.b16 %v562
          %v1759 = vunpack.c.l.b16 %v563
          %v1760 = vunpack.c.h.b16 %v563
          %v1761 = vunpack.c.l.b16 %v564
          %v1762 = vunpack.c.h.b16 %v564
          %v1763 = vunpack.c.l.b16 %v565
          %v1764 = vunpack.c.h.b16 %v565
          %v1765 = vunpack.c.l.b16 %v566
          %v1766 = vunpack.c.h.b16 %v566
          %v1767 = vunpack.c.l.b16 %v567
          %v1768 = vunpack.c.h.b16 %v567
          %v1769 = vunpack.c.l.b16 %v568
          %v1770 = vunpack.c.h.b16 %v568
          %v1771 = vunpack.c.l.b16 %v569
          %v1772 = vunpack.c.h.b16 %v569
          %v1773 = vunpack.c.l.b16 %v570
          %v1774 = vunpack.c.h.b16 %v570
          %v1775 = vunpack.c.l.b16 %v571
          %v1776 = vunpack.c.h.b16 %v571
          %v1777 = vunpack.c.l.b16 %v572
          %v1778 = vunpack.c.h.b16 %v572
          %v1779 = vunpack.c.l.b16 %v573
          %v1780 = vunpack.c.h.b16 %v573
          %v1781 = vunpack.c.l.b16 %v574
          %v1782 = vunpack.c.h.b16 %v574
          %v1783 = vunpack.c.l.b16 %v575
          %v1784 = vunpack.c.h.b16 %v575
          %v1785 = vunpack.c.l.b16 %v576
          %v1786 = vunpack.c.h.b16 %v576
          %v1787 = vunpack.c.l.b16 %v577
          %v1788 = vunpack.c.h.b16 %v577
          %v1789 = vunpack.c.l.b16 %v578
          %v1790 = vunpack.c.h.b16 %v578
          %v1791 = vunpack.c.l.b16 %v579
          %v1792 = vunpack.c.h.b16 %v579
          %v1793 = vunpack.c.l.b16 %v580
          %v1794 = vunpack.c.h.b16 %v580
          %v1795 = vunpack.c.l.b16 %v581
          %v1796 = vunpack.c.h.b16 %v581
          %v1797 = vunpack.c.l.b16 %v582
          %v1798 = vunpack.c.h.b16 %v582
          %v1799 = vunpack.c.l.b16 %v583
          %v1800 = vunpack.c.h.b16 %v583
          %v1801 = vunpack.c.l.b16 %v584
          %v1802 = vunpack.c.h.b16 %v584
          %v1803 = vunpack.c.l.b16 %v585
          %v1804 = vunpack.c.h.b16 %v585
          %v1805 = vunpack.c.l.b16 %v586
          %v1806 = vunpack.c.h.b16 %v586
          %v1807 = vunpack.c.l.b16 %v587
          %v1808 = vunpack.c.h.b16 %v587
          %v1809 = vunpack.c.l.b16 %v588
          %v1810 = vunpack.c.h.b16 %v588
          %v1811 = vunpack.c.l.b16 %v589
          %v1812 = vunpack.c.h.b16 %v589
          %v1813 = vunpack.c.l.b16 %v590
          %v1814 = vunpack.c.h.b16 %v590
          %v1815 = vunpack.c.l.b16 %v591
          %v1816 = vunpack.c.h.b16 %v591
          %v1817 = vunpack.c.l.b16 %v592
          %v1818 = vunpack.c.h.b16 %v592
          %v1819 = vunpack.c.l.b16 %v593
          %v1820 = vunpack.c.h.b16 %v593
          %v1821 = vunpack.c.l.b16 %v594
          %v1822 = vunpack.c.h.b16 %v594
          %v1823 = vunpack.c.l.b16 %v595
          %v1824 = vunpack.c.h.b16 %v595
          %v1825 = vunpack.c.l.b16 %v596
          %v1826 = vunpack.c.h.b16 %v596
          %v1827 = vunpack.c.l.b16 %v597
          %v1828 = vunpack.c.h.b16 %v597
          %v1829 = vunpack.c.l.b16 %v598
          %v1830 = vunpack.c.h.b16 %v598
          %v1831 = vunpack.c.l.b16 %v599
          %v1832 = vunpack.c.h.b16 %v599
          %v1833 = vunpack.c.l.b16 %v600
          %v1834 = vunpack.c.h.b16 %v600
          %v1835 = vunpack.c.l.b16 %v601
          %v1836 = vunpack.c.h.b16 %v601
          %v1837 = vunpack.c.l.b16 %v602
          %v1838 = vunpack.c.h.b16 %v602
          %v1839 = vunpack.c.l.b16 %v603
          %v1840 = vunpack.c.h.b16 %v603
          %v1841 = vunpack.c.l.b16 %v604
          %v1842 = vunpack.c.h.b16 %v604
          %v1843 = vunpack.c.l.b16 %v605
          %v1844 = vunpack.c.h.b16 %v605
          %v1845 = vunpack.c.l.b16 %v606
          %v1846 = vunpack.c.h.b16 %v606
          %v1847 = vunpack.c.l.b16 %v607
          %v1848 = vunpack.c.h.b16 %v607
          %v1849 = vunpack.c.l.b16 %v608
          %v1850 = vunpack.c.h.b16 %v608
          %v1851 = vunpack.c.l.b16 %v609
          %v1852 = vunpack.c.h.b16 %v609
          %v1853 = vunpack.c.l.b16 %v610
          %v1854 = vunpack.c.h.b16 %v610
          %v1855 = vunpack.c.l.b16 %v611
          %v1856 = vunpack.c.h.b16 %v611
          %v1857 = vunpack.c.l.b16 %v612
          %v1858 = vunpack.c.h.b16 %v612
          %v1859 = vunpack.c.l.b16 %v613
          %v1860 = vunpack.c.h.b16 %v613
          %v1861 = vunpack.c.l.b16 %v614
          %v1862 = vunpack.c.h.b16 %v614
          %v1863 = vunpack.c.l.b16 %v615
          %v1864 = vunpack.c.h.b16 %v615
          %v1865 = vunpack.c.l.b16 %v616
          %v1866 = vunpack.c.h.b16 %v616
          %v1867 = vunpack.c.l.b16 %v617
          %v1868 = vunpack.c.h.b16 %v617
          %v1869 = vunpack.c.l.b16 %v618
          %v1870 = vunpack.c.h.b16 %v618
          %v1871 = vunpack.c.l.b16 %v619
          %v1872 = vunpack.c.h.b16 %v619
          %v1873 = vunpack.c.l.b16 %v620
          %v1874 = vunpack.c.h.b16 %v620
          %v1875 = vunpack.c.l.b16 %v621
          %v1876 = vunpack.c.h.b16 %v621
          %v1877 = vunpack.c.l.b16 %v622
          %v1878 = vunpack.c.h.b16 %v622
          %v1879 = vunpack.c.l.b16 %v623
          %v1880 = vunpack.c.h.b16 %v623
          %v1881 = vunpack.c.l.b16 %v624
          %v1882 = vunpack.c.h.b16 %v624
          %v1883 = vunpack.c.l.b16 %v625
          %v1884 = vunpack.c.h.b16 %v625
          %v1885 = vunpack.c.l.b16 %v626
          %v1886 = vunpack.c.h.b16 %v626
          %v1887 = vunpack.c.l.b16 %v627
          %v1888 = vunpack.c.h.b16 %v627
          %v1889 = vunpack.c.l.b16 %v628
          %v1890 = vunpack.c.h.b16 %v628
          %v1891 = vunpack.c.l.b16 %v629
          %v1892 = vunpack.c.h.b16 %v629
          %v1893 = vunpack.c.l.b16 %v630
          %v1894 = vunpack.c.h.b16 %v630
          %v1895 = vunpack.c.l.b16 %v631
          %v1896 = vunpack.c.h.b16 %v631
          %v1897 = vunpack.c.l.b16 %v632
          %v1898 = vunpack.c.h.b16 %v632
          %v1899 = vunpack.c.l.b16 %v633
          %v1900 = vunpack.c.h.b16 %v633
          %v1901 = vunpack.c.l.b16 %v634
          %v1902 = vunpack.c.h.b16 %v634
          %v1903 = vunpack.c.l.b16 %v635
          %v1904 = vunpack.c.h.b16 %v635
          %v1905 = vunpack.c.l.b16 %v636
          %v1906 = vunpack.c.h.b16 %v636
          %v1907 = vunpack.c.l.b16 %v637
          %v1908 = vunpack.c.h.b16 %v637
          %v1909 = vunpack.c.l.b16 %v638
          %v1910 = vunpack.c.h.b16 %v638
          %v1911 = vunpack.c.l.b16 %v639
          %v1912 = vunpack.c.h.b16 %v639
          %v1913 = vunpack.c.l.b16 %v640
          %v1914 = vunpack.c.h.b16 %v640
          %v1915 = vunpack.c.l.b16 %v641
          %v1916 = vunpack.c.h.b16 %v641
          %v1917 = vunpack.c.l.b16 %v642
          %v1918 = vunpack.c.h.b16 %v642
          %v1919 = vunpack.c.l.b16 %v643
          %v1920 = vunpack.c.h.b16 %v643
          %v1921 = vunpack.c.l.b16 %v644
          %v1922 = vunpack.c.h.b16 %v644
          %v1923 = vunpack.c.l.b16 %v645
          %v1924 = vunpack.c.h.b16 %v645
          %v1925 = vunpack.c.l.b16 %v646
          %v1926 = vunpack.c.h.b16 %v646
          %v1927 = vunpack.c.l.b16 %v647
          %v1928 = vunpack.c.h.b16 %v647
          %v1929 = vunpack.c.l.b16 %v648
          %v1930 = vunpack.c.h.b16 %v648
          %v1931 = vunpack.c.l.b16 %v649
          %v1932 = vunpack.c.h.b16 %v649
          %v1933 = vunpack.c.l.b16 %v650
          %v1934 = vunpack.c.h.b16 %v650
          %v1935 = vunpack.c.l.b16 %v651
          %v1936 = vunpack.c.h.b16 %v651
          %v1937 = vunpack.c.l.b16 %v652
          %v1938 = vunpack.c.h.b16 %v652
          %v1939 = vunpack.c.l.b16 %v653
          %v1940 = vunpack.c.h.b16 %v653
          %v1941 = vunpack.c.l.b16 %v654
          %v1942 = vunpack.c.h.b16 %v654
          %v1943 = vunpack.c.l.b16 %v655
          %v1944 = vunpack.c.h.b16 %v655
          %v1945 = vunpack.c.l.b16 %v656
          %v1946 = vunpack.c.h.b16 %v656
          %v1947 = vunpack.c.l.b16 %v657
          %v1948 = vunpack.c.h.b16 %v657
          %v1949 = vunpack.c.l.b16 %v658
          %v1950 = vunpack.c.h.b16 %v658
          %v1951 = vunpack.c.l.b16 %v659
          %v1952 = vunpack.c.h.b16 %v659
          %v1953 = vunpack.c.l.b16 %v660
          %v1954 = vunpack.c.h.b16 %v660
          %v1955 = vunpack.c.l.b16 %v661
          %v1956 = vunpack.c.h.b16 %v661
          %v1957 = vunpack.c.l.b16 %v662
          %v1958 = vunpack.c.h.b16 %v662
          %v1959 = vunpack.c.l.b16 %v663
          %v1960 = vunpack.c.h.b16 %v663
          %v1961 = vunpack.c.l.b16 %v664
          %v1962 = vunpack.c.h.b16 %v664
          %v1963 = vunpack.c.l.b16 %v665
          %v1964 = vunpack.c.h.b16 %v665
          %v1965 = vunpack.c.l.b16 %v666
          %v1966 = vunpack.c.h.b16 %v666
          %v1967 = vunpack.c.l.b16 %v667
          %v1968 = vunpack.c.h.b16 %v667
          %v1969 = vunpack.c.l.b16 %v668
          %v1970 = vunpack.c.h.b16 %v668
          %v1971 = vunpack.c.l.b16 %v669
          %v1972 = vunpack.c.h.b16 %v669
          %v1973 = vunpack.c.l.b16 %v670
          %v1974 = vunpack.c.h.b16 %v670
          %v1975 = vunpack.c.l.b16 %v671
          %v1976 = vunpack.c.h.b16 %v671
          %v1977 = vunpack.c.l.b16 %v672
          %v1978 = vunpack.c.h.b16 %v672
          %v1979 = vunpack.c.l.b16 %v673
          %v1980 = vunpack.c.h.b16 %v673
          %v1981 = vunpack.c.l.b16 %v674
          %v1982 = vunpack.c.h.b16 %v674
          %v1983 = vunpack.c.l.b16 %v675
          %v1984 = vunpack.c.h.b16 %v675
          %v1985 = vunpack.c.l.b16 %v676
          %v1986 = vunpack.c.h.b16 %v676
          %v1987 = vunpack.c.l.b16 %v677
          %v1988 = vunpack.c.h.b16 %v677
          %v1989 = vunpack.c.l.b16 %v678
          %v1990 = vunpack.c.h.b16 %v678
          %v1991 = vunpack.c.l.b16 %v679
          %v1992 = vunpack.c.h.b16 %v679
          %v1993 = vunpack.c.l.b16 %v680
          %v1994 = vunpack.c.h.b16 %v680
          %v1995 = vunpack.c.l.b16 %v681
          %v1996 = vunpack.c.h.b16 %v681
          %v1997 = vunpack.c.l.b16 %v682
          %v1998 = vunpack.c.h.b16 %v682
          %v1999 = vunpack.c.l.b16 %v683
          %v2000 = vunpack.c.h.b16 %v683
          %v2001 = vunpack.c.l.b16 %v684
          %v2002 = vunpack.c.h.b16 %v684
          %v2003 = vunpack.c.l.b16 %v685
          %v2004 = vunpack.c.h.b16 %v685
          %v2005 = vunpack.c.l.b16 %v686
          %v2006 = vunpack.c.h.b16 %v686
          %v2007 = vunpack.c.l.b16 %v687
          %v2008 = vunpack.c.h.b16 %v687
          %v2009 = vunpack.c.l.b16 %v688
          %v2010 = vunpack.c.h.b16 %v688
          %v2011 = vunpack.c.l.b16 %v689
          %v2012 = vunpack.c.h.b16 %v689
          %v2013 = vunpack.c.l.b16 %v690
          %v2014 = vunpack.c.h.b16 %v690
          %v2015 = vunpack.c.l.b16 %v691
          %v2016 = vunpack.c.h.b16 %v691
          %v2017 = vunpack.c.l.b16 %v692
          %v2018 = vunpack.c.h.b16 %v692
          %v2019 = vunpack.c.l.b16 %v693
          %v2020 = vunpack.c.h.b16 %v693
          %v2021 = vunpack.c.l.b16 %v694
          %v2022 = vunpack.c.h.b16 %v694
          %v2023 = vunpack.c.l.b16 %v695
          %v2024 = vunpack.c.h.b16 %v695
          %v2025 = vunpack.c.l.b16 %v696
          %v2026 = vunpack.c.h.b16 %v696
          %v2027 = vunpack.c.l.b16 %v697
          %v2028 = vunpack.c.h.b16 %v697
          %v2029 = vunpack.c.l.b16 %v698
          %v2030 = vunpack.c.h.b16 %v698
          %v2031 = vunpack.c.l.b16 %v699
          %v2032 = vunpack.c.h.b16 %v699
          %v2033 = vunpack.c.l.b16 %v700
          %v2034 = vunpack.c.h.b16 %v700
          %v2035 = vunpack.c.l.b16 %v701
          %v2036 = vunpack.c.h.b16 %v701
          %v2037 = vunpack.c.l.b16 %v702
          %v2038 = vunpack.c.h.b16 %v702
          %v2039 = vunpack.c.l.b16 %v703
          %v2040 = vunpack.c.h.b16 %v703
          %v2041 = vunpack.c.l.b16 %v704
          %v2042 = vunpack.c.h.b16 %v704
          %v2043 = vunpack.c.l.b16 %v705
          %v2044 = vunpack.c.h.b16 %v705
          %v2045 = vunpack.c.l.b16 %v706
          %v2046 = vunpack.c.h.b16 %v706
          %v2047 = vunpack.c.l.b16 %v707
          %v2048 = vunpack.c.h.b16 %v707
          %v2049 = vunpack.c.l.b16 %v708
          %v2050 = vunpack.c.h.b16 %v708
          %v2051 = vunpack.c.l.b16 %v709
          %v2052 = vunpack.c.h.b16 %v709
          %v2053 = vunpack.c.l.b16 %v710
          %v2054 = vunpack.c.h.b16 %v710
          %v2055 = vunpack.c.l.b16 %v711
          %v2056 = vunpack.c.h.b16 %v711
          %v2057 = vunpack.c.l.b16 %v712
          %v2058 = vunpack.c.h.b16 %v712
          %v2059 = vunpack.c.l.b16 %v713
          %v2060 = vunpack.c.h.b16 %v713
          %v2061 = vunpack.c.l.b16 %v714
          %v2062 = vunpack.c.h.b16 %v714
          %v2063 = vunpack.c.l.b16 %v715
          %v2064 = vunpack.c.h.b16 %v715
          %v2065 = vunpack.c.l.b16 %v716
          %v2066 = vunpack.c.h.b16 %v716
          %v2067 = vunpack.c.l.b16 %v717
          %v2068 = vunpack.c.h.b16 %v717
          %v2069 = vunpack.c.l.b16 %v718
          %v2070 = vunpack.c.h.b16 %v718
          %v2071 = vunpack.c.l.b16 %v719
          %v2072 = vunpack.c.h.b16 %v719
          %v2073 = vunpack.c.l.b16 %v720
          %v2074 = vunpack.c.h.b16 %v720
          %v2075 = vunpack.c.l.b16 %v721
          %v2076 = vunpack.c.h.b16 %v721
          %v2077 = vunpack.c.l.b16 %v722
          %v2078 = vunpack.c.h.b16 %v722
          %v2079 = vunpack.c.l.b16 %v723
          %v2080 = vunpack.c.h.b16 %v723
          %v2081 = vunpack.c.l.b16 %v724
          %v2082 = vunpack.c.h.b16 %v724
          %v2083 = vunpack.c.l.b16 %v725
          %v2084 = vunpack.c.h.b16 %v725
          %v2085 = vunpack.c.l.b16 %v726
          %v2086 = vunpack.c.h.b16 %v726
          %v2087 = vunpack.c.l.b16 %v727
          %v2088 = vunpack.c.h.b16 %v727
          %v2089 = vunpack.c.l.b16 %v728
          %v2090 = vunpack.c.h.b16 %v728
          %v2091 = vunpack.c.l.b16 %v729
          %v2092 = vunpack.c.h.b16 %v729
          %v2093 = vunpack.c.l.b16 %v730
          %v2094 = vunpack.c.h.b16 %v730
          %v2095 = vunpack.c.l.b16 %v731
          %v2096 = vunpack.c.h.b16 %v731
          %v2097 = vunpack.c.l.b16 %v732
          %v2098 = vunpack.c.h.b16 %v732
          %v2099 = vunpack.c.l.b16 %v733
          %v2100 = vunpack.c.h.b16 %v733
          %v2101 = vunpack.c.l.b16 %v734
          %v2102 = vunpack.c.h.b16 %v734
          %v2103 = vunpack.c.l.b16 %v735
          %v2104 = vunpack.c.h.b16 %v735
          %v2105 = vunpack.c.l.b16 %v736
          %v2106 = vunpack.c.h.b16 %v736
          %v2107 = vunpack.c.l.b16 %v737
          %v2108 = vunpack.c.h.b16 %v737
          %v2109 = vunpack.c.l.b16 %v738
          %v2110 = vunpack.c.h.b16 %v738
          %v2111 = vunpack.c.l.b16 %v739
          %v2112 = vunpack.c.h.b16 %v739
          %v2113 = vunpack.c.l.b16 %v740
          %v2114 = vunpack.c.h.b16 %v740
          %v2115 = vunpack.c.l.b16 %v741
          %v2116 = vunpack.c.h.b16 %v741
          %v2117 = vunpack.c.l.b16 %v742
          %v2118 = vunpack.c.h.b16 %v742
          %v2119 = vunpack.c.l.b16 %v743
          %v2120 = vunpack.c.h.b16 %v743
          %v2121 = vunpack.c.l.b16 %v744
          %v2122 = vunpack.c.h.b16 %v744
          %v2123 = vunpack.c.l.b16 %v745
          %v2124 = vunpack.c.h.b16 %v745
          %v2125 = vunpack.c.l.b16 %v746
          %v2126 = vunpack.c.h.b16 %v746
          %v2127 = vunpack.c.l.b16 %v747
          %v2128 = vunpack.c.h.b16 %v747
          %v2129 = vunpack.c.l.b16 %v748
          %v2130 = vunpack.c.h.b16 %v748
          %v2131 = vunpack.c.l.b16 %v749
          %v2132 = vunpack.c.h.b16 %v749
          %v2133 = vunpack.c.l.b16 %v750
          %v2134 = vunpack.c.h.b16 %v750
          %v2135 = vunpack.c.l.b16 %v751
          %v2136 = vunpack.c.h.b16 %v751
          %v2137 = vunpack.c.l.b16 %v752
          %v2138 = vunpack.c.h.b16 %v752
          %v2139 = vunpack.c.l.b16 %v753
          %v2140 = vunpack.c.h.b16 %v753
          %v2141 = vunpack.c.l.b16 %v754
          %v2142 = vunpack.c.h.b16 %v754
          %v2143 = vunpack.c.l.b16 %v755
          %v2144 = vunpack.c.h.b16 %v755
          %v2145 = vunpack.c.l.b16 %v756
          %v2146 = vunpack.c.h.b16 %v756
          %v2147 = vunpack.c.l.b16 %v757
          %v2148 = vunpack.c.h.b16 %v757
          %v2149 = vunpack.c.l.b16 %v758
          %v2150 = vunpack.c.h.b16 %v758
          %v2151 = vunpack.c.l.b16 %v759
          %v2152 = vunpack.c.h.b16 %v759
          %v2153 = vunpack.c.l.b16 %v760
          %v2154 = vunpack.c.h.b16 %v760
          %v2155 = vunpack.c.l.b16 %v761
          %v2156 = vunpack.c.h.b16 %v761
          %v2157 = vunpack.c.l.b16 %v762
          %v2158 = vunpack.c.h.b16 %v762
          %v2159 = vunpack.c.l.b16 %v763
          %v2160 = vunpack.c.h.b16 %v763
          %v2161 = vunpack.c.l.b16 %v764
          %v2162 = vunpack.c.h.b16 %v764
          %v2163 = vunpack.c.l.b16 %v765
          %v2164 = vunpack.c.h.b16 %v765
          %v2165 = vunpack.c.l.b16 %v766
          %v2166 = vunpack.c.h.b16 %v766
          %v2167 = vunpack.c.l.b16 %v767
          %v2168 = vunpack.c.h.b16 %v767
          %v2169 = vunpack.c.l.b16 %v768
          %v2170 = vunpack.c.h.b16 %v768
          %v2171 = vunpack.c.l.b16 %v769
          %v2172 = vunpack.c.h.b16 %v769
          %v2173 = vunpack.c.l.b16 %v770
          %v2174 = vunpack.c.h.b16 %v770
          %v2175 = vunpack.c.l.b16 %v771
          %v2176 = vunpack.c.h.b16 %v771
          %v2177 = vunpack.c.l.b16 %v772
          %v2178 = vunpack.c.h.b16 %v772
          %v2179 = vunpack.c.l.b16 %v773
          %v2180 = vunpack.c.h.b16 %v773
          %v2181 = vunpack.c.l.b16 %v774
          %v2182 = vunpack.c.h.b16 %v774
          %v2183 = vunpack.c.l.b16 %v775
          %v2184 = vunpack.c.h.b16 %v775
          %v2185 = vunpack.c.l.b16 %v776
          %v2186 = vunpack.c.h.b16 %v776
          %v2187 = vunpack.c.l.b16 %v777
          %v2188 = vunpack.c.h.b16 %v777
          %v2189 = vunpack.c.l.b16 %v778
          %v2190 = vunpack.c.h.b16 %v778
          %v2191 = vunpack.c.l.b16 %v779
          %v2192 = vunpack.c.h.b16 %v779
          %v2193 = vunpack.c.l.b16 %v780
          %v2194 = vunpack.c.h.b16 %v780
          %v2195 = vunpack.c.l.b16 %v781
          %v2196 = vunpack.c.h.b16 %v781
          %v2197 = vunpack.c.l.b16 %v782
          %v2198 = vunpack.c.h.b16 %v782
          %v2199 = vunpack.c.l.b16 %v783
          %v2200 = vunpack.c.h.b16 %v783
          %v2201 = vunpack.c.l.b16 %v784
          %v2202 = vunpack.c.h.b16 %v784
          %v2203 = vunpack.c.l.b16 %v785
          %v2204 = vunpack.c.h.b16 %v785
          %v2205 = vunpack.c.l.b16 %v786
          %v2206 = vunpack.c.h.b16 %v786
          %v2207 = vunpack.c.l.b16 %v787
          %v2208 = vunpack.c.h.b16 %v787
          %v2209 = vunpack.c.l.b16 %v788
          %v2210 = vunpack.c.h.b16 %v788
          %v2211 = vunpack.c.l.b16 %v789
          %v2212 = vunpack.c.h.b16 %v789
          %v2213 = vunpack.c.l.b16 %v790
          %v2214 = vunpack.c.h.b16 %v790
          %v2215 = vunpack.c.l.b16 %v791
          %v2216 = vunpack.c.h.b16 %v791
          %v2217 = vunpack.c.l.b16 %v792
          %v2218 = vunpack.c.h.b16 %v792
          %v2219 = vunpack.c.l.b16 %v793
          %v2220 = vunpack.c.h.b16 %v793
          %v2221 = vunpack.c.l.b16 %v794
          %v2222 = vunpack.c.h.b16 %v794
          %v2223 = vunpack.c.l.b16 %v795
          %v2224 = vunpack.c.h.b16 %v795
          %v2225 = vunpack.c.l.b16 %v796
          %v2226 = vunpack.c.h.b16 %v796
          %v2227 = vunpack.c.l.b16 %v797
          %v2228 = vunpack.c.h.b16 %v797
          %v2229 = vunpack.c.l.b16 %v798
          %v2230 = vunpack.c.h.b16 %v798
          %v2231 = vunpack.c.l.b16 %v799
          %v2232 = vunpack.c.h.b16 %v799
          %v2233 = vunpack.c.l.b16 %v800
          %v2234 = vunpack.c.h.b16 %v800
          %v2235 = vunpack.c.l.b16 %v801
          %v2236 = vunpack.c.h.b16 %v801
          %v2237 = vunpack.c.l.b16 %v802
          %v2238 = vunpack.c.h.b16 %v802
          %v2239 = vunpack.c.l.b16 %v803
          %v2240 = vunpack.c.h.b16 %v803
          %v2241 = vunpack.c.l.b16 %v804
          %v2242 = vunpack.c.h.b16 %v804
          %v2243 = vunpack.c.l.b16 %v805
          %v2244 = vunpack.c.h.b16 %v805
          %v2245 = vunpack.c.l.b16 %v806
          %v2246 = vunpack.c.h.b16 %v806
          %v2247 = vunpack.c.l.b16 %v807
          %v2248 = vunpack.c.h.b16 %v807
          %v2249 = vunpack.c.l.b16 %v808
          %v2250 = vunpack.c.h.b16 %v808
          %v2251 = vunpack.c.l.b16 %v809
          %v2252 = vunpack.c.h.b16 %v809
          %v2253 = vunpack.c.l.b16 %v810
          %v2254 = vunpack.c.h.b16 %v810
          %v2255 = vunpack.c.l.b16 %v811
          %v2256 = vunpack.c.h.b16 %v811
          %v2257 = vunpack.c.l.b16 %v812
          %v2258 = vunpack.c.h.b16 %v812
          %v2259 = vunpack.c.l.b16 %v813
          %v2260 = vunpack.c.h.b16 %v813
          %v2261 = vunpack.c.l.b16 %v814
          %v2262 = vunpack.c.h.b16 %v814
          %v2263 = vunpack.c.l.b16 %v815
          %v2264 = vunpack.c.h.b16 %v815
          %v2265 = vunpack.c.l.b16 %v816
          %v2266 = vunpack.c.h.b16 %v816
          %v2267 = vunpack.c.l.b16 %v817
          %v2268 = vunpack.c.h.b16 %v817
          %v2269 = vunpack.c.l.b16 %v818
          %v2270 = vunpack.c.h.b16 %v818
          %v2271 = vunpack.c.l.b16 %v819
          %v2272 = vunpack.c.h.b16 %v819
          %v2273 = vunpack.c.l.b16 %v820
          %v2274 = vunpack.c.h.b16 %v820
          %v2275 = vunpack.c.l.b16 %v821
          %v2276 = vunpack.c.h.b16 %v821
          %v2277 = vunpack.c.l.b16 %v822
          %v2278 = vunpack.c.h.b16 %v822
          %v2279 = vunpack.c.l.b16 %v823
          %v2280 = vunpack.c.h.b16 %v823
          %v2281 = vunpack.c.l.b16 %v824
          %v2282 = vunpack.c.h.b16 %v824
          %v2283 = vunpack.c.l.b16 %v825
          %v2284 = vunpack.c.h.b16 %v825
          %v2285 = vunpack.c.l.b16 %v826
          %v2286 = vunpack.c.h.b16 %v826
          %v2287 = vunpack.c.l.b16 %v827
          %v2288 = vunpack.c.h.b16 %v827
          %v2289 = vunpack.c.l.b16 %v828
          %v2290 = vunpack.c.h.b16 %v828
          %v2291 = vunpack.c.l.b16 %v829
          %v2292 = vunpack.c.h.b16 %v829
          %v2293 = vunpack.c.l.b16 %v830
          %v2294 = vunpack.c.h.b16 %v830
          %v2295 = vunpack.c.l.b16 %v831
          %v2296 = vunpack.c.h.b16 %v831
          %v2297 = vunpack.c.l.b16 %v832
          %v2298 = vunpack.c.h.b16 %v832
          %v2299 = vunpack.c.l.b16 %v833
          %v2300 = vunpack.c.h.b16 %v833
          %v2301 = vunpack.c.l.b16 %v834
          %v2302 = vunpack.c.h.b16 %v834
          %v2303 = vunpack.c.l.b16 %v835
          %v2304 = vunpack.c.h.b16 %v835
          %v2305 = vunpack.c.l.b16 %v836
          %v2306 = vunpack.c.h.b16 %v836
          %v2307 = vunpack.c.l.b16 %v837
          %v2308 = vunpack.c.h.b16 %v837
          %v2309 = vunpack.c.l.b16 %v838
          %v2310 = vunpack.c.h.b16 %v838
          %v2311 = vunpack.c.l.b16 %v839
          %v2312 = vunpack.c.h.b16 %v839
          %v2313 = vunpack.c.l.b16 %v840
          %v2314 = vunpack.c.h.b16 %v840
          %v2315 = vunpack.c.l.b16 %v841
          %v2316 = vunpack.c.h.b16 %v841
          %v2317 = vunpack.c.l.b16 %v842
          %v2318 = vunpack.c.h.b16 %v842
          %v2319 = vpack.c.b16 %v1543, %v1535
          %v2320 = vpack.c.b16 %v1544, %v1536
          %v2321 = vpack.c.b16 %v1545, %v1537
          %v2322 = vpack.c.b16 %v1546, %v1538
          %v2323 = vpack.c.b16 %v1547, %v1539
          %v2324 = vpack.c.b16 %v1548, %v1540
          %v2325 = vpack.c.b16 %v1549, %v1541
          %v2326 = vpack.c.b16 %v1550, %v1542
          %v2327 = vpack.c.b16 %v1559, %v1551
          %v2328 = vpack.c.b16 %v1560, %v1552
          %v2329 = vpack.c.b16 %v1561, %v1553
          %v2330 = vpack.c.b16 %v1562, %v1554
          %v2331 = vpack.c.b16 %v1563, %v1555
          %v2332 = vpack.c.b16 %v1564, %v1556
          %v2333 = vpack.c.b16 %v1565, %v1557
          %v2334 = vpack.c.b16 %v1566, %v1558
          %v2335 = vpack.c.b16 %v1575, %v1567
          %v2336 = vpack.c.b16 %v1576, %v1568
          %v2337 = vpack.c.b16 %v1577, %v1569
          %v2338 = vpack.c.b16 %v1578, %v1570
          %v2339 = vpack.c.b16 %v1579, %v1571
          %v2340 = vpack.c.b16 %v1580, %v1572
          %v2341 = vpack.c.b16 %v1581, %v1573
          %v2342 = vpack.c.b16 %v1582, %v1574
          %v2343 = vpack.c.b16 %v1591, %v1583
          %v2344 = vpack.c.b16 %v1592, %v1584
          %v2345 = vpack.c.b16 %v1593, %v1585
          %v2346 = vpack.c.b16 %v1594, %v1586
          %v2347 = vpack.c.b16 %v1595, %v1587
          %v2348 = vpack.c.b16 %v1596, %v1588
          %v2349 = vpack.c.b16 %v1597, %v1589
          %v2350 = vpack.c.b16 %v1598, %v1590
          %v2351 = vpack.c.b16 %v1607, %v1599
          %v2352 = vpack.c.b16 %v1608, %v1600
          %v2353 = vpack.c.b16 %v1609, %v1601
          %v2354 = vpack.c.b16 %v1610, %v1602
          %v2355 = vpack.c.b16 %v1611, %v1603
          %v2356 = vpack.c.b16 %v1612, %v1604
          %v2357 = vpack.c.b16 %v1613, %v1605
          %v2358 = vpack.c.b16 %v1614, %v1606
          %v2359 = vpack.c.b16 %v1623, %v1615
          %v2360 = vpack.c.b16 %v1624, %v1616
          %v2361 = vpack.c.b16 %v1625, %v1617
          %v2362 = vpack.c.b16 %v1626, %v1618
          %v2363 = vpack.c.b16 %v1627, %v1619
          %v2364 = vpack.c.b16 %v1628, %v1620
          %v2365 = vpack.c.b16 %v1629, %v1621
          %v2366 = vpack.c.b16 %v1630, %v1622
          %v2367 = vpack.c.b16 %v1639, %v1631
          %v2368 = vpack.c.b16 %v1640, %v1632
          %v2369 = vpack.c.b16 %v1641, %v1633
          %v2370 = vpack.c.b16 %v1642, %v1634
          %v2371 = vpack.c.b16 %v1643, %v1635
          %v2372 = vpack.c.b16 %v1644, %v1636
          %v2373 = vpack.c.b16 %v1645, %v1637
          %v2374 = vpack.c.b16 %v1646, %v1638
          %v2375 = vpack.c.b16 %v1655, %v1647
          %v2376 = vpack.c.b16 %v1656, %v1648
          %v2377 = vpack.c.b16 %v1657, %v1649
          %v2378 = vpack.c.b16 %v1658, %v1650
          %v2379 = vpack.c.b16 %v1659, %v1651
          %v2380 = vpack.c.b16 %v1660, %v1652
          %v2381 = vpack.c.b16 %v1661, %v1653
          %v2382 = vpack.c.b16 %v1662, %v1654
          %v2383 = vpack.c.b16 %v1671, %v1663
          %v2384 = vpack.c.b16 %v1672, %v1664
          %v2385 = vpack.c.b16 %v1673, %v1665
          %v2386 = vpack.c.b16 %v1674, %v1666
          %v2387 = vpack.c.b16 %v1675, %v1667
          %v2388 = vpack.c.b16 %v1676, %v1668
          %v2389 = vpack.c.b16 %v1677, %v1669
          %v2390 = vpack.c.b16 %v1678, %v1670
          %v2391 = vpack.c.b16 %v1687, %v1679
          %v2392 = vpack.c.b16 %v1688, %v1680
          %v2393 = vpack.c.b16 %v1689, %v1681
          %v2394 = vpack.c.b16 %v1690, %v1682
          %v2395 = vpack.c.b16 %v1691, %v1683
          %v2396 = vpack.c.b16 %v1692, %v1684
          %v2397 = vpack.c.b16 %v1693, %v1685
          %v2398 = vpack.c.b16 %v1694, %v1686
          %v2399 = vpack.c.b16 %v1703, %v1695
          %v2400 = vpack.c.b16 %v1704, %v1696
          %v2401 = vpack.c.b16 %v1705, %v1697
          %v2402 = vpack.c.b16 %v1706, %v1698
          %v2403 = vpack.c.b16 %v1707, %v1699
          %v2404 = vpack.c.b16 %v1708, %v1700
          %v2405 = vpack.c.b16 %v1709, %v1701
          %v2406 = vpack.c.b16 %v1710, %v1702
          %v2407 = vpack.c.b16 %v1719, %v1711
          %v2408 = vpack.c.b16 %v1720, %v1712
          %v2409 = vpack.c.b16 %v1721, %v1713
          %v2410 = vpack.c.b16 %v1722, %v1714
          %v2411 = vpack.c.b16 %v1723, %v1715
          %v2412 = vpack.c.b16 %v1724, %v1716
          %v2413 = vpack.c.b16 %v1725, %v1717
          %v2414 = vpack.c.b16 %v1726, %v1718
          %v2415 = vpack.c.b16 %v1735, %v1727
          %v2416 = vpack.c.b16 %v1736, %v1728
          %v2417 = vpack.c.b16 %v1737, %v1729
          %v2418 = vpack.c.b16 %v1738, %v1730
          %v2419 = vpack.c.b16 %v1739, %v1731
          %v2420 = vpack.c.b16 %v1740, %v1732
          %v2421 = vpack.c.b16 %v1741, %v1733
          %v2422 = vpack.c.b16 %v1742, %v1734
          %v2423 = vpack.c.b16 %v1751, %v1743
          %v2424 = vpack.c.b16 %v1752, %v1744
          %v2425 = vpack.c.b16 %v1753, %v1745
          %v2426 = vpack.c.b16 %v1754, %v1746
          %v2427 = vpack.c.b16 %v1755, %v1747
          %v2428 = vpack.c.b16 %v1756, %v1748
          %v2429 = vpack.c.b16 %v1757, %v1749
          %v2430 = vpack.c.b16 %v1758, %v1750
          %v2431 = vpack.c.b16 %v1767, %v1759
          %v2432 = vpack.c.b16 %v1768, %v1760
          %v2433 = vpack.c.b16 %v1769, %v1761
          %v2434 = vpack.c.b16 %v1770, %v1762
          %v2435 = vpack.c.b16 %v1771, %v1763
          %v2436 = vpack.c.b16 %v1772, %v1764
          %v2437 = vpack.c.b16 %v1773, %v1765
          %v2438 = vpack.c.b16 %v1774, %v1766
          %v2439 = vpack.c.b16 %v1783, %v1775
          %v2440 = vpack.c.b16 %v1784, %v1776
          %v2441 = vpack.c.b16 %v1785, %v1777
          %v2442 = vpack.c.b16 %v1786, %v1778
          %v2443 = vpack.c.b16 %v1787, %v1779
          %v2444 = vpack.c.b16 %v1788, %v1780
          %v2445 = vpack.c.b16 %v1789, %v1781
          %v2446 = vpack.c.b16 %v1790, %v1782
          %v2447 = vpack.c.b16 %v1799, %v1791
          %v2448 = vpack.c.b16 %v1800, %v1792
          %v2449 = vpack.c.b16 %v1801, %v1793
          %v2450 = vpack.c.b16 %v1802, %v1794
          %v2451 = vpack.c.b16 %v1803, %v1795
          %v2452 = vpack.c.b16 %v1804, %v1796
          %v2453 = vpack.c.b16 %v1805, %v1797
          %v2454 = vpack.c.b16 %v1806, %v1798
          %v2455 = vpack.c.b16 %v1815, %v1807
          %v2456 = vpack.c.b16 %v1816, %v1808
          %v2457 = vpack.c.b16 %v1817, %v1809
          %v2458 = vpack.c.b16 %v1818, %v1810
          %v2459 = vpack.c.b16 %v1819, %v1811
          %v2460 = vpack.c.b16 %v1820, %v1812
          %v2461 = vpack.c.b16 %v1821, %v1813
          %v2462 = vpack.c.b16 %v1822, %v1814
          %v2463 = vpack.c.b16 %v1831, %v1823
          %v2464 = vpack.c.b16 %v1832, %v1824
          %v2465 = vpack.c.b16 %v1833, %v1825
          %v2466 = vpack.c.b16 %v1834, %v1826
          %v2467 = vpack.c.b16 %v1835, %v1827
          %v2468 = vpack.c.b16 %v1836, %v1828
          %v2469 = vpack.c.b16 %v1837, %v1829
          %v2470 = vpack.c.b16 %v1838, %v1830
          %v2471 = vpack.c.b16 %v1847, %v1839
          %v2472 = vpack.c.b16 %v1848, %v1840
          %v2473 = vpack.c.b16 %v1849, %v1841
          %v2474 = vpack.c.b16 %v1850, %v1842
          %v2475 = vpack.c.b16 %v1851, %v1843
          %v2476 = vpack.c.b16 %v1852, %v1844
          %v2477 = vpack.c.b16 %v1853, %v1845
          %v2478 = vpack.c.b16 %v1854, %v1846
          %v2479 = vpack.c.b16 %v1863, %v1855
          %v2480 = vpack.c.b16 %v1864, %v1856
          %v2481 = vpack.c.b16 %v1865, %v1857
          %v2482 = vpack.c.b16 %v1866, %v1858
          %v2483 = vpack.c.b16 %v1867, %v1859
          %v2484 = vpack.c.b16 %v1868, %v1860
          %v2485 = vpack.c.b16 %v1869, %v1861
          %v2486 = vpack.c.b16 %v1870, %v1862
          %v2487 = vpack.c.b16 %v1879, %v1871
          %v2488 = vpack.c.b16 %v1880, %v1872
          %v2489 = vpack.c.b16 %v1881, %v1873
          %v2490 = vpack.c.b16 %v1882, %v1874
          %v2491 = vpack.c.b16 %v1883, %v1875
          %v2492 = vpack.c.b16 %v1884, %v1876
          %v2493 = vpack.c.b16 %v1885, %v1877
          %v2494 = vpack.c.b16 %v1886, %v1878
          %v2495 = vpack.c.b16 %v1895, %v1887
          %v2496 = vpack.c.b16 %v1896, %v1888
          %v2497 = vpack.c.b16 %v1897, %v1889
          %v2498 = vpack.c.b16 %v1898, %v1890
          %v2499 = vpack.c.b16 %v1899, %v1891
          %v2500 = vpack.c.b16 %v1900, %v1892
          %v2501 = vpack.c.b16 %v1901, %v1893
          %v2502 = vpack.c.b16 %v1902, %v1894
          %v2503 = vpack.c.b16 %v1911, %v1903
          %v2504 = vpack.c.b16 %v1912, %v1904
          %v2505 = vpack.c.b16 %v1913, %v1905
          %v2506 = vpack.c.b16 %v1914, %v1906
          %v2507 = vpack.c.b16 %v1915, %v1907
          %v2508 = vpack.c.b16 %v1916, %v1908
          %v2509 = vpack.c.b16 %v1917, %v1909
          %v2510 = vpack.c.b16 %v1918, %v1910
          %v2511 = vpack.c.b16 %v1927, %v1919
          %v2512 = vpack.c.b16 %v1928, %v1920
          %v2513 = vpack.c.b16 %v1929, %v1921
          %v2514 = vpack.c.b16 %v1930, %v1922
          %v2515 = vpack.c.b16 %v1931, %v1923
          %v2516 = vpack.c.b16 %v1932, %v1924
          %v2517 = vpack.c.b16 %v1933, %v1925
          %v2518 = vpack.c.b16 %v1934, %v1926
          %v2519 = vpack.c.b16 %v1943, %v1935
          %v2520 = vpack.c.b16 %v1944, %v1936
          %v2521 = vpack.c.b16 %v1945, %v1937
          %v2522 = vpack.c.b16 %v1946, %v1938
          %v2523 = vpack.c.b16 %v1947, %v1939
          %v2524 = vpack.c.b16 %v1948, %v1940
          %v2525 = vpack.c.b16 %v1949, %v1941
          %v2526 = vpack.c.b16 %v1950, %v1942
          %v2527 = vpack.c.b16 %v1959, %v1951
          %v2528 = vpack.c.b16 %v1960, %v1952
          %v2529 = vpack.c.b16 %v1961, %v1953
          %v2530 = vpack.c.b16 %v1962, %v1954
          %v2531 = vpack.c.b16 %v1963, %v1955
          %v2532 = vpack.c.b16 %v1964, %v1956
          %v2533 = vpack.c.b16 %v1965, %v1957
          %v2534 = vpack.c.b16 %v1966, %v1958
          %v2535 = vpack.c.b16 %v1975, %v1967
          %v2536 = vpack.c.b16 %v1976, %v1968
          %v2537 = vpack.c.b16 %v1977, %v1969
          %v2538 = vpack.c.b16 %v1978, %v1970
          %v2539 = vpack.c.b16 %v1979, %v1971
          %v2540 = vpack.c.b16 %v1980, %v1972
          %v2541 = vpack.c.b16 %v1981, %v1973
          %v2542 = vpack.c.b16 %v1982, %v1974
          %v2543 = vpack.c.b16 %v1991, %v1983
          %v2544 = vpack.c.b16 %v1992, %v1984
          %v2545 = vpack.c.b16 %v1993, %v1985
          %v2546 = vpack.c.b16 %v1994, %v1986
          %v2547 = vpack.c.b16 %v1995, %v1987
          %v2548 = vpack.c.b16 %v1996, %v1988
          %v2549 = vpack.c.b16 %v1997, %v1989
          %v2550 = vpack.c.b16 %v1998, %v1990
          %v2551 = vpack.c.b16 %v2007, %v1999
          %v2552 = vpack.c.b16 %v2008, %v2000
          %v2553 = vpack.c.b16 %v2009, %v2001
          %v2554 = vpack.c.b16 %v2010, %v2002
          %v2555 = vpack.c.b16 %v2011, %v2003
          %v2556 = vpack.c.b16 %v2012, %v2004
          %v2557 = vpack.c.b16 %v2013, %v2005
          %v2558 = vpack.c.b16 %v2014, %v2006
          %v2559 = vpack.c.b16 %v2023, %v2015
          %v2560 = vpack.c.b16 %v2024, %v2016
          %v2561 = vpack.c.b16 %v2025, %v2017
          %v2562 = vpack.c.b16 %v2026, %v2018
          %v2563 = vpack.c.b16 %v2027, %v2019
          %v2564 = vpack.c.b16 %v2028, %v2020
          %v2565 = vpack.c.b16 %v2029, %v2021
          %v2566 = vpack.c.b16 %v2030, %v2022
          %v2567 = vpack.c.b16 %v2039, %v2031
          %v2568 = vpack.c.b16 %v2040, %v2032
          %v2569 = vpack.c.b16 %v2041, %v2033
          %v2570 = vpack.c.b16 %v2042, %v2034
          %v2571 = vpack.c.b16 %v2043, %v2035
          %v2572 = vpack.c.b16 %v2044, %v2036
          %v2573 = vpack.c.b16 %v2045, %v2037
          %v2574 = vpack.c.b16 %v2046, %v2038
          %v2575 = vpack.c.b16 %v2055, %v2047
          %v2576 = vpack.c.b16 %v2056, %v2048
          %v2577 = vpack.c.b16 %v2057, %v2049
          %v2578 = vpack.c.b16 %v2058, %v2050
          %v2579 = vpack.c.b16 %v2059, %v2051
          %v2580 = vpack.c.b16 %v2060, %v2052
          %v2581 = vpack.c.b16 %v2061, %v2053
          %v2582 = vpack.c.b16 %v2062, %v2054
          %v2583 = vpack.c.b16 %v2071, %v2063
          %v2584 = vpack.c.b16 %v2072, %v2064
          %v2585 = vpack.c.b16 %v2073, %v2065
          %v2586 = vpack.c.b16 %v2074, %v2066
          %v2587 = vpack.c.b16 %v2075, %v2067
          %v2588 = vpack.c.b16 %v2076, %v2068
          %v2589 = vpack.c.b16 %v2077, %v2069
          %v2590 = vpack.c.b16 %v2078, %v2070
          %v2591 = vpack.c.b16 %v2087, %v2079
          %v2592 = vpack.c.b16 %v2088, %v2080
          %v2593 = vpack.c.b16 %v2089, %v2081
          %v2594 = vpack.c.b16 %v2090, %v2082
          %v2595 = vpack.c.b16 %v2091, %v2083
          %v2596 = vpack.c.b16 %v2092, %v2084
          %v2597 = vpack.c.b16 %v2093, %v2085
          %v2598 = vpack.c.b16 %v2094, %v2086
          %v2599 = vpack.c.b16 %v2103, %v2095
          %v2600 = vpack.c.b16 %v2104, %v2096
          %v2601 = vpack.c.b16 %v2105, %v2097
          %v2602 = vpack.c.b16 %v2106, %v2098
          %v2603 = vpack.c.b16 %v2107, %v2099
          %v2604 = vpack.c.b16 %v2108, %v2100
          %v2605 = vpack.c.b16 %v2109, %v2101
          %v2606 = vpack.c.b16 %v2110, %v2102
          %v2607 = vpack.c.b16 %v2119, %v2111
          %v2608 = vpack.c.b16 %v2120, %v2112
          %v2609 = vpack.c.b16 %v2121, %v2113
          %v2610 = vpack.c.b16 %v2122, %v2114
          %v2611 = vpack.c.b16 %v2123, %v2115
          %v2612 = vpack.c.b16 %v2124, %v2116
          %v2613 = vpack.c.b16 %v2125, %v2117
          %v2614 = vpack.c.b16 %v2126, %v2118
          %v2615 = vpack.c.b16 %v2135, %v2127
          %v2616 = vpack.c.b16 %v2136, %v2128
          %v2617 = vpack.c.b16 %v2137, %v2129
          %v2618 = vpack.c.b16 %v2138, %v2130
          %v2619 = vpack.c.b16 %v2139, %v2131
          %v2620 = vpack.c.b16 %v2140, %v2132
          %v2621 = vpack.c.b16 %v2141, %v2133
          %v2622 = vpack.c.b16 %v2142, %v2134
          %v2623 = vpack.c.b16 %v2151, %v2143
          %v2624 = vpack.c.b16 %v2152, %v2144
          %v2625 = vpack.c.b16 %v2153, %v2145
          %v2626 = vpack.c.b16 %v2154, %v2146
          %v2627 = vpack.c.b16 %v2155, %v2147
          %v2628 = vpack.c.b16 %v2156, %v2148
          %v2629 = vpack.c.b16 %v2157, %v2149
          %v2630 = vpack.c.b16 %v2158, %v2150
          %v2631 = vpack.c.b16 %v2167, %v2159
          %v2632 = vpack.c.b16 %v2168, %v2160
          %v2633 = vpack.c.b16 %v2169, %v2161
          %v2634 = vpack.c.b16 %v2170, %v2162
          %v2635 = vpack.c.b16 %v2171, %v2163
          %v2636 = vpack.c.b16 %v2172, %v2164
          %v2637 = vpack.c.b16 %v2173, %v2165
          %v2638 = vpack.c.b16 %v2174, %v2166
          %v2639 = vpack.c.b16 %v2183, %v2175
          %v2640 = vpack.c.b16 %v2184, %v2176
          %v2641 = vpack.c.b16 %v2185, %v2177
          %v2642 = vpack.c.b16 %v2186, %v2178
          %v2643 = vpack.c.b16 %v2187, %v2179
          %v2644 = vpack.c.b16 %v2188, %v2180
          %v2645 = vpack.c.b16 %v2189, %v2181
          %v2646 = vpack.c.b16 %v2190, %v2182
          %v2647 = vpack.c.b16 %v2199, %v2191
          %v2648 = vpack.c.b16 %v2200, %v2192
          %v2649 = vpack.c.b16 %v2201, %v2193
          %v2650 = vpack.c.b16 %v2202, %v2194
          %v2651 = vpack.c.b16 %v2203, %v2195
          %v2652 = vpack.c.b16 %v2204, %v2196
          %v2653 = vpack.c.b16 %v2205, %v2197
          %v2654 = vpack.c.b16 %v2206, %v2198
          %v2655 = vpack.c.b16 %v2215, %v2207
          %v2656 = vpack.c.b16 %v2216, %v2208
          %v2657 = vpack.c.b16 %v2217, %v2209
          %v2658 = vpack.c.b16 %v2218, %v2210
          %v2659 = vpack.c.b16 %v2219, %v2211
          %v2660 = vpack.c.b16 %v2220, %v2212
          %v2661 = vpack.c.b16 %v2221, %v2213
          %v2662 = vpack.c.b16 %v2222, %v2214
          %v2663 = vpack.c.b16 %v2231, %v2223
          %v2664 = vpack.c.b16 %v2232, %v2224
          %v2665 = vpack.c.b16 %v2233, %v2225
          %v2666 = vpack.c.b16 %v2234, %v2226
          %v2667 = vpack.c.b16 %v2235, %v2227
          %v2668 = vpack.c.b16 %v2236, %v2228
          %v2669 = vpack.c.b16 %v2237, %v2229
          %v2670 = vpack.c.b16 %v2238, %v2230
          %v2671 = vpack.c.b16 %v2247, %v2239
          %v2672 = vpack.c.b16 %v2248, %v2240
          %v2673 = vpack.c.b16 %v2249, %v2241
          %v2674 = vpack.c.b16 %v2250, %v2242
          %v2675 = vpack.c.b16 %v2251, %v2243
          %v2676 = vpack.c.b16 %v2252, %v2244
          %v2677 = vpack.c.b16 %v2253, %v2245
          %v2678 = vpack.c.b16 %v2254, %v2246
          %v2679 = vpack.c.b16 %v2263, %v2255
          %v2680 = vpack.c.b16 %v2264, %v2256
          %v2681 = vpack.c.b16 %v2265, %v2257
          %v2682 = vpack.c.b16 %v2266, %v2258
          %v2683 = vpack.c.b16 %v2267, %v2259
          %v2684 = vpack.c.b16 %v2268, %v2260
          %v2685 = vpack.c.b16 %v2269, %v2261
          %v2686 = vpack.c.b16 %v2270, %v2262
          %v2687 = vpack.c.b16 %v2279, %v2271
          %v2688 = vpack.c.b16 %v2280, %v2272
          %v2689 = vpack.c.b16 %v2281, %v2273
          %v2690 = vpack.c.b16 %v2282, %v2274
          %v2691 = vpack.c.b16 %v2283, %v2275
          %v2692 = vpack.c.b16 %v2284, %v2276
          %v2693 = vpack.c.b16 %v2285, %v2277
          %v2694 = vpack.c.b16 %v2286, %v2278
          %v2695 = vpack.c.b16 %v2295, %v2287
          %v2696 = vpack.c.b16 %v2296, %v2288
          %v2697 = vpack.c.b16 %v2297, %v2289
          %v2698 = vpack.c.b16 %v2298, %v2290
          %v2699 = vpack.c.b16 %v2299, %v2291
          %v2700 = vpack.c.b16 %v2300, %v2292
          %v2701 = vpack.c.b16 %v2301, %v2293
          %v2702 = vpack.c.b16 %v2302, %v2294
          %v2703 = vpack.c.b16 %v2311, %v2303
          %v2704 = vpack.c.b16 %v2312, %v2304
          %v2705 = vpack.c.b16 %v2313, %v2305
          %v2706 = vpack.c.b16 %v2314, %v2306
          %v2707 = vpack.c.b16 %v2315, %v2307
          %v2708 = vpack.c.b16 %v2316, %v2308
          %v2709 = vpack.c.b16 %v2317, %v2309
          %v2710 = vpack.c.b16 %v2318, %v2310
          %vm3103 = vcmask 130048
          %v3105 = vsel %vm3103, %v448, 0
          %3107 = vmatpush.bf16.msra.mxu0 %v2375
          %3108 = vmatpush.bf16.msra.mxu0 %v2367
          %3109 = vmatpush.bf16.msra.mxu0 %v2359
          %3110 = vmatpush.bf16.msra.mxu0 %v2351
          %3111 = vmatpush.bf16.msra.mxu0 %v2343
          %3112 = vmatpush.bf16.msra.mxu0 %v2335
          %3113 = vmatpush.bf16.msra.mxu0 %v2327
          %3114 = vmatpush.bf16.msra.mxu0 %v2319
          %3115 = vmatmul.bf16.gmra.mxu0 %v442
          %v3116 = vpop.f32.mrf.mxu0
          %v3117 = vadd.f32 %v1049, %v3116
          %v3118 = vpop.f32.mrf.mxu0
          %3119 = vdwg.mxu0
          %3120 = vmatpush.bf16.msra.mxu0 %v2439
          %3121 = vmatpush.bf16.msra.mxu0 %v2431
          %3122 = vmatpush.bf16.msra.mxu0 %v2423
          %3123 = vmatpush.bf16.msra.mxu0 %v2415
          %3124 = vmatpush.bf16.msra.mxu0 %v2407
          %3125 = vmatpush.bf16.msra.mxu0 %v2399
          %3126 = vmatpush.bf16.msra.mxu0 %v2391
          %3127 = vmatpush.bf16.msra.mxu0 %v2383
          %3128 = vmatmul.bf16.gmra.mxu0 %v443
          %v3129 = vpop.f32.mrf.mxu0
          %v3130 = vadd.f32 %v3117, %v3129
          %v3131 = vpop.f32.mrf.mxu0
          %3132 = vdwg.mxu0
          %3133 = vmatpush.bf16.msra.mxu0 %v2503
          %3134 = vmatpush.bf16.msra.mxu0 %v2495
          %3135 = vmatpush.bf16.msra.mxu0 %v2487
          %3136 = vmatpush.bf16.msra.mxu0 %v2479
          %3137 = vmatpush.bf16.msra.mxu0 %v2471
          %3138 = vmatpush.bf16.msra.mxu0 %v2463
          %3139 = vmatpush.bf16.msra.mxu0 %v2455
          %3140 = vmatpush.bf16.msra.mxu0 %v2447
          %3141 = vmatmul.bf16.gmra.mxu0 %v444
          %v3142 = vpop.f32.mrf.mxu0
          %v3143 = vadd.f32 %v3130, %v3142
          %v3144 = vpop.f32.mrf.mxu0
          %3145 = vdwg.mxu0
          %3146 = vmatpush.bf16.msra.mxu0 %v2567
          %3147 = vmatpush.bf16.msra.mxu0 %v2559
          %3148 = vmatpush.bf16.msra.mxu0 %v2551
          %3149 = vmatpush.bf16.msra.mxu0 %v2543
          %3150 = vmatpush.bf16.msra.mxu0 %v2535
          %3151 = vmatpush.bf16.msra.mxu0 %v2527
          %3152 = vmatpush.bf16.msra.mxu0 %v2519
          %3153 = vmatpush.bf16.msra.mxu0 %v2511
          %3154 = vmatmul.bf16.gmra.mxu0 %v445
          %v3155 = vpop.f32.mrf.mxu0
          %v3156 = vadd.f32 %v3143, %v3155
          %v3157 = vpop.f32.mrf.mxu0
          %3158 = vdwg.mxu0
          %3159 = vmatpush.bf16.msra.mxu0 %v2631
          %3160 = vmatpush.bf16.msra.mxu0 %v2623
          %3161 = vmatpush.bf16.msra.mxu0 %v2615
          %3162 = vmatpush.bf16.msra.mxu0 %v2607
          %3163 = vmatpush.bf16.msra.mxu0 %v2599
          %3164 = vmatpush.bf16.msra.mxu0 %v2591
          %3165 = vmatpush.bf16.msra.mxu0 %v2583
          %3166 = vmatpush.bf16.msra.mxu0 %v2575
          %3167 = vmatmul.bf16.gmra.mxu0 %v446
          %v3168 = vpop.f32.mrf.mxu0
          %v3169 = vadd.f32 %v3156, %v3168
          %v3170 = vpop.f32.mrf.mxu0
          %3171 = vdwg.mxu0
          %3172 = vmatpush.bf16.msra.mxu0 %v2695
          %3173 = vmatpush.bf16.msra.mxu0 %v2687
          %3174 = vmatpush.bf16.msra.mxu0 %v2679
          %3175 = vmatpush.bf16.msra.mxu0 %v2671
          %3176 = vmatpush.bf16.msra.mxu0 %v2663
          %3177 = vmatpush.bf16.msra.mxu0 %v2655
          %3178 = vmatpush.bf16.msra.mxu0 %v2647
          %3179 = vmatpush.bf16.msra.mxu0 %v2639
          %3180 = vmatmul.bf16.gmra.mxu0 %v447
          %v3181 = vpop.f32.mrf.mxu0
          %v3182 = vadd.f32 %v3169, %v3181
          %v3183 = vpop.f32.mrf.mxu0
          %3184 = vdwg.mxu0
          %3185 = vmatpush.bf16.msra.mxu0 0
          %3186 = vmatpush.bf16.msra.mxu0 0
          %3187 = vmatpush.bf16.msra.mxu0 0
          %3188 = vmatpush.bf16.msra.mxu0 0
          %3189 = vmatpush.bf16.msra.mxu0 0
          %3190 = vmatpush.bf16.msra.mxu0 0
          %3191 = vmatpush.bf16.msra.mxu0 0
          %3192 = vmatpush.bf16.msra.mxu0 %v2703
          %3193 = vmatmul.bf16.gmra.mxu0 %v3105
          %v3194 = vpop.f32.mrf.mxu0
          %v3195 = vadd.f32 %v3182, %v3194
          %v3196 = vpop.f32.mrf.mxu0
          %3197 = vdwg.mxu0
          %3198 = vmatpush.bf16.msra.mxu0 %v2376
          %3199 = vmatpush.bf16.msra.mxu0 %v2368
          %3200 = vmatpush.bf16.msra.mxu0 %v2360
          %3201 = vmatpush.bf16.msra.mxu0 %v2352
          %3202 = vmatpush.bf16.msra.mxu0 %v2344
          %3203 = vmatpush.bf16.msra.mxu0 %v2336
          %3204 = vmatpush.bf16.msra.mxu0 %v2328
          %3205 = vmatpush.bf16.msra.mxu0 %v2320
          %3206 = vmatmul.bf16.gmra.mxu0 %v442
          %v3207 = vpop.f32.mrf.mxu0
          %v3208 = vadd.f32 %v1062, %v3207
          %v3209 = vpop.f32.mrf.mxu0
          %3210 = vdwg.mxu0
          %3211 = vmatpush.bf16.msra.mxu0 %v2440
          %3212 = vmatpush.bf16.msra.mxu0 %v2432
          %3213 = vmatpush.bf16.msra.mxu0 %v2424
          %3214 = vmatpush.bf16.msra.mxu0 %v2416
          %3215 = vmatpush.bf16.msra.mxu0 %v2408
          %3216 = vmatpush.bf16.msra.mxu0 %v2400
          %3217 = vmatpush.bf16.msra.mxu0 %v2392
          %3218 = vmatpush.bf16.msra.mxu0 %v2384
          %3219 = vmatmul.bf16.gmra.mxu0 %v443
          %v3220 = vpop.f32.mrf.mxu0
          %v3221 = vadd.f32 %v3208, %v3220
          %v3222 = vpop.f32.mrf.mxu0
          %3223 = vdwg.mxu0
          %3224 = vmatpush.bf16.msra.mxu0 %v2504
          %3225 = vmatpush.bf16.msra.mxu0 %v2496
          %3226 = vmatpush.bf16.msra.mxu0 %v2488
          %3227 = vmatpush.bf16.msra.mxu0 %v2480
          %3228 = vmatpush.bf16.msra.mxu0 %v2472
          %3229 = vmatpush.bf16.msra.mxu0 %v2464
          %3230 = vmatpush.bf16.msra.mxu0 %v2456
          %3231 = vmatpush.bf16.msra.mxu0 %v2448
          %3232 = vmatmul.bf16.gmra.mxu0 %v444
          %v3233 = vpop.f32.mrf.mxu0
          %v3234 = vadd.f32 %v3221, %v3233
          %v3235 = vpop.f32.mrf.mxu0
          %3236 = vdwg.mxu0
          %3237 = vmatpush.bf16.msra.mxu0 %v2568
          %3238 = vmatpush.bf16.msra.mxu0 %v2560
          %3239 = vmatpush.bf16.msra.mxu0 %v2552
          %3240 = vmatpush.bf16.msra.mxu0 %v2544
          %3241 = vmatpush.bf16.msra.mxu0 %v2536
          %3242 = vmatpush.bf16.msra.mxu0 %v2528
          %3243 = vmatpush.bf16.msra.mxu0 %v2520
          %3244 = vmatpush.bf16.msra.mxu0 %v2512
          %3245 = vmatmul.bf16.gmra.mxu0 %v445
          %v3246 = vpop.f32.mrf.mxu0
          %v3247 = vadd.f32 %v3234, %v3246
          %v3248 = vpop.f32.mrf.mxu0
          %3249 = vdwg.mxu0
          %3250 = vmatpush.bf16.msra.mxu0 %v2632
          %3251 = vmatpush.bf16.msra.mxu0 %v2624
          %3252 = vmatpush.bf16.msra.mxu0 %v2616
          %3253 = vmatpush.bf16.msra.mxu0 %v2608
          %3254 = vmatpush.bf16.msra.mxu0 %v2600
          %3255 = vmatpush.bf16.msra.mxu0 %v2592
          %3256 = vmatpush.bf16.msra.mxu0 %v2584
          %3257 = vmatpush.bf16.msra.mxu0 %v2576
          %3258 = vmatmul.bf16.gmra.mxu0 %v446
          %v3259 = vpop.f32.mrf.mxu0
          %v3260 = vadd.f32 %v3247, %v3259
          %v3261 = vpop.f32.mrf.mxu0
          %3262 = vdwg.mxu0
          %3263 = vmatpush.bf16.msra.mxu0 %v2696
          %3264 = vmatpush.bf16.msra.mxu0 %v2688
          %3265 = vmatpush.bf16.msra.mxu0 %v2680
          %3266 = vmatpush.bf16.msra.mxu0 %v2672
          %3267 = vmatpush.bf16.msra.mxu0 %v2664
          %3268 = vmatpush.bf16.msra.mxu0 %v2656
          %3269 = vmatpush.bf16.msra.mxu0 %v2648
          %3270 = vmatpush.bf16.msra.mxu0 %v2640
          %3271 = vmatmul.bf16.gmra.mxu0 %v447
          %v3272 = vpop.f32.mrf.mxu0
          %v3273 = vadd.f32 %v3260, %v3272
          %v3274 = vpop.f32.mrf.mxu0
          %3275 = vdwg.mxu0
          %3276 = vmatpush.bf16.msra.mxu0 0
          %3277 = vmatpush.bf16.msra.mxu0 0
          %3278 = vmatpush.bf16.msra.mxu0 0
          %3279 = vmatpush.bf16.msra.mxu0 0
          %3280 = vmatpush.bf16.msra.mxu0 0
          %3281 = vmatpush.bf16.msra.mxu0 0
          %3282 = vmatpush.bf16.msra.mxu0 0
          %3283 = vmatpush.bf16.msra.mxu0 %v2704
          %3284 = vmatmul.bf16.gmra.mxu0 %v3105
          %v3285 = vpop.f32.mrf.mxu0
          %v3286 = vadd.f32 %v3273, %v3285
          %v3287 = vpop.f32.mrf.mxu0
          %3288 = vdwg.mxu0
          %3289 = vmatpush.bf16.msra.mxu0 %v2377
          %3290 = vmatpush.bf16.msra.mxu0 %v2369
          %3291 = vmatpush.bf16.msra.mxu0 %v2361
          %3292 = vmatpush.bf16.msra.mxu0 %v2353
          %3293 = vmatpush.bf16.msra.mxu0 %v2345
          %3294 = vmatpush.bf16.msra.mxu0 %v2337
          %3295 = vmatpush.bf16.msra.mxu0 %v2329
          %3296 = vmatpush.bf16.msra.mxu0 %v2321
          %3297 = vmatmul.bf16.gmra.mxu0 %v442
          %v3298 = vpop.f32.mrf.mxu0
          %v3299 = vadd.f32 %v1075, %v3298
          %v3300 = vpop.f32.mrf.mxu0
          %3301 = vdwg.mxu0
          %3302 = vmatpush.bf16.msra.mxu0 %v2441
          %3303 = vmatpush.bf16.msra.mxu0 %v2433
          %3304 = vmatpush.bf16.msra.mxu0 %v2425
          %3305 = vmatpush.bf16.msra.mxu0 %v2417
          %3306 = vmatpush.bf16.msra.mxu0 %v2409
          %3307 = vmatpush.bf16.msra.mxu0 %v2401
          %3308 = vmatpush.bf16.msra.mxu0 %v2393
          %3309 = vmatpush.bf16.msra.mxu0 %v2385
          %3310 = vmatmul.bf16.gmra.mxu0 %v443
          %v3311 = vpop.f32.mrf.mxu0
          %v3312 = vadd.f32 %v3299, %v3311
          %v3313 = vpop.f32.mrf.mxu0
          %3314 = vdwg.mxu0
          %3315 = vmatpush.bf16.msra.mxu0 %v2505
          %3316 = vmatpush.bf16.msra.mxu0 %v2497
          %3317 = vmatpush.bf16.msra.mxu0 %v2489
          %3318 = vmatpush.bf16.msra.mxu0 %v2481
          %3319 = vmatpush.bf16.msra.mxu0 %v2473
          %3320 = vmatpush.bf16.msra.mxu0 %v2465
          %3321 = vmatpush.bf16.msra.mxu0 %v2457
          %3322 = vmatpush.bf16.msra.mxu0 %v2449
          %3323 = vmatmul.bf16.gmra.mxu0 %v444
          %v3324 = vpop.f32.mrf.mxu0
          %v3325 = vadd.f32 %v3312, %v3324
          %v3326 = vpop.f32.mrf.mxu0
          %3327 = vdwg.mxu0
          %3328 = vmatpush.bf16.msra.mxu0 %v2569
          %3329 = vmatpush.bf16.msra.mxu0 %v2561
          %3330 = vmatpush.bf16.msra.mxu0 %v2553
          %3331 = vmatpush.bf16.msra.mxu0 %v2545
          %3332 = vmatpush.bf16.msra.mxu0 %v2537
          %3333 = vmatpush.bf16.msra.mxu0 %v2529
          %3334 = vmatpush.bf16.msra.mxu0 %v2521
          %3335 = vmatpush.bf16.msra.mxu0 %v2513
          %3336 = vmatmul.bf16.gmra.mxu0 %v445
          %v3337 = vpop.f32.mrf.mxu0
          %v3338 = vadd.f32 %v3325, %v3337
          %v3339 = vpop.f32.mrf.mxu0
          %3340 = vdwg.mxu0
          %3341 = vmatpush.bf16.msra.mxu0 %v2633
          %3342 = vmatpush.bf16.msra.mxu0 %v2625
          %3343 = vmatpush.bf16.msra.mxu0 %v2617
          %3344 = vmatpush.bf16.msra.mxu0 %v2609
          %3345 = vmatpush.bf16.msra.mxu0 %v2601
          %3346 = vmatpush.bf16.msra.mxu0 %v2593
          %3347 = vmatpush.bf16.msra.mxu0 %v2585
          %3348 = vmatpush.bf16.msra.mxu0 %v2577
          %3349 = vmatmul.bf16.gmra.mxu0 %v446
          %v3350 = vpop.f32.mrf.mxu0
          %v3351 = vadd.f32 %v3338, %v3350
          %v3352 = vpop.f32.mrf.mxu0
          %3353 = vdwg.mxu0
          %3354 = vmatpush.bf16.msra.mxu0 %v2697
          %3355 = vmatpush.bf16.msra.mxu0 %v2689
          %3356 = vmatpush.bf16.msra.mxu0 %v2681
          %3357 = vmatpush.bf16.msra.mxu0 %v2673
          %3358 = vmatpush.bf16.msra.mxu0 %v2665
          %3359 = vmatpush.bf16.msra.mxu0 %v2657
          %3360 = vmatpush.bf16.msra.mxu0 %v2649
          %3361 = vmatpush.bf16.msra.mxu0 %v2641
          %3362 = vmatmul.bf16.gmra.mxu0 %v447
          %v3363 = vpop.f32.mrf.mxu0
          %v3364 = vadd.f32 %v3351, %v3363
          %v3365 = vpop.f32.mrf.mxu0
          %3366 = vdwg.mxu0
          %3367 = vmatpush.bf16.msra.mxu0 0
          %3368 = vmatpush.bf16.msra.mxu0 0
          %3369 = vmatpush.bf16.msra.mxu0 0
          %3370 = vmatpush.bf16.msra.mxu0 0
          %3371 = vmatpush.bf16.msra.mxu0 0
          %3372 = vmatpush.bf16.msra.mxu0 0
          %3373 = vmatpush.bf16.msra.mxu0 0
          %3374 = vmatpush.bf16.msra.mxu0 %v2705
          %3375 = vmatmul.bf16.gmra.mxu0 %v3105
          %v3376 = vpop.f32.mrf.mxu0
          %v3377 = vadd.f32 %v3364, %v3376
          %v3378 = vpop.f32.mrf.mxu0
          %3379 = vdwg.mxu0
          %3380 = vmatpush.bf16.msra.mxu0 %v2378
          %3381 = vmatpush.bf16.msra.mxu0 %v2370
          %3382 = vmatpush.bf16.msra.mxu0 %v2362
          %3383 = vmatpush.bf16.msra.mxu0 %v2354
          %3384 = vmatpush.bf16.msra.mxu0 %v2346
          %3385 = vmatpush.bf16.msra.mxu0 %v2338
          %3386 = vmatpush.bf16.msra.mxu0 %v2330
          %3387 = vmatpush.bf16.msra.mxu0 %v2322
          %3388 = vmatmul.bf16.gmra.mxu0 %v442
          %v3389 = vpop.f32.mrf.mxu0
          %v3390 = vadd.f32 %v1088, %v3389
          %v3391 = vpop.f32.mrf.mxu0
          %3392 = vdwg.mxu0
          %3393 = vmatpush.bf16.msra.mxu0 %v2442
          %3394 = vmatpush.bf16.msra.mxu0 %v2434
          %3395 = vmatpush.bf16.msra.mxu0 %v2426
          %3396 = vmatpush.bf16.msra.mxu0 %v2418
          %3397 = vmatpush.bf16.msra.mxu0 %v2410
          %3398 = vmatpush.bf16.msra.mxu0 %v2402
          %3399 = vmatpush.bf16.msra.mxu0 %v2394
          %3400 = vmatpush.bf16.msra.mxu0 %v2386
          %3401 = vmatmul.bf16.gmra.mxu0 %v443
          %v3402 = vpop.f32.mrf.mxu0
          %v3403 = vadd.f32 %v3390, %v3402
          %v3404 = vpop.f32.mrf.mxu0
          %3405 = vdwg.mxu0
          %3406 = vmatpush.bf16.msra.mxu0 %v2506
          %3407 = vmatpush.bf16.msra.mxu0 %v2498
          %3408 = vmatpush.bf16.msra.mxu0 %v2490
          %3409 = vmatpush.bf16.msra.mxu0 %v2482
          %3410 = vmatpush.bf16.msra.mxu0 %v2474
          %3411 = vmatpush.bf16.msra.mxu0 %v2466
          %3412 = vmatpush.bf16.msra.mxu0 %v2458
          %3413 = vmatpush.bf16.msra.mxu0 %v2450
          %3414 = vmatmul.bf16.gmra.mxu0 %v444
          %v3415 = vpop.f32.mrf.mxu0
          %v3416 = vadd.f32 %v3403, %v3415
          %v3417 = vpop.f32.mrf.mxu0
          %3418 = vdwg.mxu0
          %3419 = vmatpush.bf16.msra.mxu0 %v2570
          %3420 = vmatpush.bf16.msra.mxu0 %v2562
          %3421 = vmatpush.bf16.msra.mxu0 %v2554
          %3422 = vmatpush.bf16.msra.mxu0 %v2546
          %3423 = vmatpush.bf16.msra.mxu0 %v2538
          %3424 = vmatpush.bf16.msra.mxu0 %v2530
          %3425 = vmatpush.bf16.msra.mxu0 %v2522
          %3426 = vmatpush.bf16.msra.mxu0 %v2514
          %3427 = vmatmul.bf16.gmra.mxu0 %v445
          %v3428 = vpop.f32.mrf.mxu0
          %v3429 = vadd.f32 %v3416, %v3428
          %v3430 = vpop.f32.mrf.mxu0
          %3431 = vdwg.mxu0
          %3432 = vmatpush.bf16.msra.mxu0 %v2634
          %3433 = vmatpush.bf16.msra.mxu0 %v2626
          %3434 = vmatpush.bf16.msra.mxu0 %v2618
          %3435 = vmatpush.bf16.msra.mxu0 %v2610
          %3436 = vmatpush.bf16.msra.mxu0 %v2602
          %3437 = vmatpush.bf16.msra.mxu0 %v2594
          %3438 = vmatpush.bf16.msra.mxu0 %v2586
          %3439 = vmatpush.bf16.msra.mxu0 %v2578
          %3440 = vmatmul.bf16.gmra.mxu0 %v446
          %v3441 = vpop.f32.mrf.mxu0
          %v3442 = vadd.f32 %v3429, %v3441
          %v3443 = vpop.f32.mrf.mxu0
          %3444 = vdwg.mxu0
          %3445 = vmatpush.bf16.msra.mxu0 %v2698
          %3446 = vmatpush.bf16.msra.mxu0 %v2690
          %3447 = vmatpush.bf16.msra.mxu0 %v2682
          %3448 = vmatpush.bf16.msra.mxu0 %v2674
          %3449 = vmatpush.bf16.msra.mxu0 %v2666
          %3450 = vmatpush.bf16.msra.mxu0 %v2658
          %3451 = vmatpush.bf16.msra.mxu0 %v2650
          %3452 = vmatpush.bf16.msra.mxu0 %v2642
          %3453 = vmatmul.bf16.gmra.mxu0 %v447
          %v3454 = vpop.f32.mrf.mxu0
          %v3455 = vadd.f32 %v3442, %v3454
          %v3456 = vpop.f32.mrf.mxu0
          %3457 = vdwg.mxu0
          %3458 = vmatpush.bf16.msra.mxu0 0
          %3459 = vmatpush.bf16.msra.mxu0 0
          %3460 = vmatpush.bf16.msra.mxu0 0
          %3461 = vmatpush.bf16.msra.mxu0 0
          %3462 = vmatpush.bf16.msra.mxu0 0
          %3463 = vmatpush.bf16.msra.mxu0 0
          %3464 = vmatpush.bf16.msra.mxu0 0
          %3465 = vmatpush.bf16.msra.mxu0 %v2706
          %3466 = vmatmul.bf16.gmra.mxu0 %v3105
          %v3467 = vpop.f32.mrf.mxu0
          %v3468 = vadd.f32 %v3455, %v3467
          %v3469 = vpop.f32.mrf.mxu0
          %3470 = vdwg.mxu0
          %3471 = vmatpush.bf16.msra.mxu0 %v2379
          %3472 = vmatpush.bf16.msra.mxu0 %v2371
          %3473 = vmatpush.bf16.msra.mxu0 %v2363
          %3474 = vmatpush.bf16.msra.mxu0 %v2355
          %3475 = vmatpush.bf16.msra.mxu0 %v2347
          %3476 = vmatpush.bf16.msra.mxu0 %v2339
          %3477 = vmatpush.bf16.msra.mxu0 %v2331
          %3478 = vmatpush.bf16.msra.mxu0 %v2323
          %3479 = vmatmul.bf16.gmra.mxu0 %v442
          %v3480 = vpop.f32.mrf.mxu0
          %v3481 = vadd.f32 %v1101, %v3480
          %v3482 = vpop.f32.mrf.mxu0
          %3483 = vdwg.mxu0
          %3484 = vmatpush.bf16.msra.mxu0 %v2443
          %3485 = vmatpush.bf16.msra.mxu0 %v2435
          %3486 = vmatpush.bf16.msra.mxu0 %v2427
          %3487 = vmatpush.bf16.msra.mxu0 %v2419
          %3488 = vmatpush.bf16.msra.mxu0 %v2411
          %3489 = vmatpush.bf16.msra.mxu0 %v2403
          %3490 = vmatpush.bf16.msra.mxu0 %v2395
          %3491 = vmatpush.bf16.msra.mxu0 %v2387
          %3492 = vmatmul.bf16.gmra.mxu0 %v443
          %v3493 = vpop.f32.mrf.mxu0
          %v3494 = vadd.f32 %v3481, %v3493
          %v3495 = vpop.f32.mrf.mxu0
          %3496 = vdwg.mxu0
          %3497 = vmatpush.bf16.msra.mxu0 %v2507
          %3498 = vmatpush.bf16.msra.mxu0 %v2499
          %3499 = vmatpush.bf16.msra.mxu0 %v2491
          %3500 = vmatpush.bf16.msra.mxu0 %v2483
          %3501 = vmatpush.bf16.msra.mxu0 %v2475
          %3502 = vmatpush.bf16.msra.mxu0 %v2467
          %3503 = vmatpush.bf16.msra.mxu0 %v2459
          %3504 = vmatpush.bf16.msra.mxu0 %v2451
          %3505 = vmatmul.bf16.gmra.mxu0 %v444
          %v3506 = vpop.f32.mrf.mxu0
          %v3507 = vadd.f32 %v3494, %v3506
          %v3508 = vpop.f32.mrf.mxu0
          %3509 = vdwg.mxu0
          %3510 = vmatpush.bf16.msra.mxu0 %v2571
          %3511 = vmatpush.bf16.msra.mxu0 %v2563
          %3512 = vmatpush.bf16.msra.mxu0 %v2555
          %3513 = vmatpush.bf16.msra.mxu0 %v2547
          %3514 = vmatpush.bf16.msra.mxu0 %v2539
          %3515 = vmatpush.bf16.msra.mxu0 %v2531
          %3516 = vmatpush.bf16.msra.mxu0 %v2523
          %3517 = vmatpush.bf16.msra.mxu0 %v2515
          %3518 = vmatmul.bf16.gmra.mxu0 %v445
          %v3519 = vpop.f32.mrf.mxu0
          %v3520 = vadd.f32 %v3507, %v3519
          %v3521 = vpop.f32.mrf.mxu0
          %3522 = vdwg.mxu0
          %3523 = vmatpush.bf16.msra.mxu0 %v2635
          %3524 = vmatpush.bf16.msra.mxu0 %v2627
          %3525 = vmatpush.bf16.msra.mxu0 %v2619
          %3526 = vmatpush.bf16.msra.mxu0 %v2611
          %3527 = vmatpush.bf16.msra.mxu0 %v2603
          %3528 = vmatpush.bf16.msra.mxu0 %v2595
          %3529 = vmatpush.bf16.msra.mxu0 %v2587
          %3530 = vmatpush.bf16.msra.mxu0 %v2579
          %3531 = vmatmul.bf16.gmra.mxu0 %v446
          %v3532 = vpop.f32.mrf.mxu0
          %v3533 = vadd.f32 %v3520, %v3532
          %v3534 = vpop.f32.mrf.mxu0
          %3535 = vdwg.mxu0
          %3536 = vmatpush.bf16.msra.mxu0 %v2699
          %3537 = vmatpush.bf16.msra.mxu0 %v2691
          %3538 = vmatpush.bf16.msra.mxu0 %v2683
          %3539 = vmatpush.bf16.msra.mxu0 %v2675
          %3540 = vmatpush.bf16.msra.mxu0 %v2667
          %3541 = vmatpush.bf16.msra.mxu0 %v2659
          %3542 = vmatpush.bf16.msra.mxu0 %v2651
          %3543 = vmatpush.bf16.msra.mxu0 %v2643
          %3544 = vmatmul.bf16.gmra.mxu0 %v447
          %v3545 = vpop.f32.mrf.mxu0
          %v3546 = vadd.f32 %v3533, %v3545
          %v3547 = vpop.f32.mrf.mxu0
          %3548 = vdwg.mxu0
          %3549 = vmatpush.bf16.msra.mxu0 0
          %3550 = vmatpush.bf16.msra.mxu0 0
          %3551 = vmatpush.bf16.msra.mxu0 0
          %3552 = vmatpush.bf16.msra.mxu0 0
          %3553 = vmatpush.bf16.msra.mxu0 0
          %3554 = vmatpush.bf16.msra.mxu0 0
          %3555 = vmatpush.bf16.msra.mxu0 0
          %3556 = vmatpush.bf16.msra.mxu0 %v2707
          %3557 = vmatmul.bf16.gmra.mxu0 %v3105
          %v3558 = vpop.f32.mrf.mxu0
          %v3559 = vadd.f32 %v3546, %v3558
          %v3560 = vpop.f32.mrf.mxu0
          %3561 = vdwg.mxu0
          %3562 = vmatpush.bf16.msra.mxu0 %v2380
          %3563 = vmatpush.bf16.msra.mxu0 %v2372
          %3564 = vmatpush.bf16.msra.mxu0 %v2364
          %3565 = vmatpush.bf16.msra.mxu0 %v2356
          %3566 = vmatpush.bf16.msra.mxu0 %v2348
          %3567 = vmatpush.bf16.msra.mxu0 %v2340
          %3568 = vmatpush.bf16.msra.mxu0 %v2332
          %3569 = vmatpush.bf16.msra.mxu0 %v2324
          %3570 = vmatmul.bf16.gmra.mxu0 %v442
          %v3571 = vpop.f32.mrf.mxu0
          %v3572 = vadd.f32 %v1114, %v3571
          %v3573 = vpop.f32.mrf.mxu0
          %3574 = vdwg.mxu0
          %3575 = vmatpush.bf16.msra.mxu0 %v2444
          %3576 = vmatpush.bf16.msra.mxu0 %v2436
          %3577 = vmatpush.bf16.msra.mxu0 %v2428
          %3578 = vmatpush.bf16.msra.mxu0 %v2420
          %3579 = vmatpush.bf16.msra.mxu0 %v2412
          %3580 = vmatpush.bf16.msra.mxu0 %v2404
          %3581 = vmatpush.bf16.msra.mxu0 %v2396
          %3582 = vmatpush.bf16.msra.mxu0 %v2388
          %3583 = vmatmul.bf16.gmra.mxu0 %v443
          %v3584 = vpop.f32.mrf.mxu0
          %v3585 = vadd.f32 %v3572, %v3584
          %v3586 = vpop.f32.mrf.mxu0
          %3587 = vdwg.mxu0
          %3588 = vmatpush.bf16.msra.mxu0 %v2508
          %3589 = vmatpush.bf16.msra.mxu0 %v2500
          %3590 = vmatpush.bf16.msra.mxu0 %v2492
          %3591 = vmatpush.bf16.msra.mxu0 %v2484
          %3592 = vmatpush.bf16.msra.mxu0 %v2476
          %3593 = vmatpush.bf16.msra.mxu0 %v2468
          %3594 = vmatpush.bf16.msra.mxu0 %v2460
          %3595 = vmatpush.bf16.msra.mxu0 %v2452
          %3596 = vmatmul.bf16.gmra.mxu0 %v444
          %v3597 = vpop.f32.mrf.mxu0
          %v3598 = vadd.f32 %v3585, %v3597
          %v3599 = vpop.f32.mrf.mxu0
          %3600 = vdwg.mxu0
          %3601 = vmatpush.bf16.msra.mxu0 %v2572
          %3602 = vmatpush.bf16.msra.mxu0 %v2564
          %3603 = vmatpush.bf16.msra.mxu0 %v2556
          %3604 = vmatpush.bf16.msra.mxu0 %v2548
          %3605 = vmatpush.bf16.msra.mxu0 %v2540
          %3606 = vmatpush.bf16.msra.mxu0 %v2532
          %3607 = vmatpush.bf16.msra.mxu0 %v2524
          %3608 = vmatpush.bf16.msra.mxu0 %v2516
          %3609 = vmatmul.bf16.gmra.mxu0 %v445
          %v3610 = vpop.f32.mrf.mxu0
          %v3611 = vadd.f32 %v3598, %v3610
          %v3612 = vpop.f32.mrf.mxu0
          %3613 = vdwg.mxu0
          %3614 = vmatpush.bf16.msra.mxu0 %v2636
          %3615 = vmatpush.bf16.msra.mxu0 %v2628
          %3616 = vmatpush.bf16.msra.mxu0 %v2620
          %3617 = vmatpush.bf16.msra.mxu0 %v2612
          %3618 = vmatpush.bf16.msra.mxu0 %v2604
          %3619 = vmatpush.bf16.msra.mxu0 %v2596
          %3620 = vmatpush.bf16.msra.mxu0 %v2588
          %3621 = vmatpush.bf16.msra.mxu0 %v2580
          %3622 = vmatmul.bf16.gmra.mxu0 %v446
          %v3623 = vpop.f32.mrf.mxu0
          %v3624 = vadd.f32 %v3611, %v3623
          %v3625 = vpop.f32.mrf.mxu0
          %3626 = vdwg.mxu0
          %3627 = vmatpush.bf16.msra.mxu0 %v2700
          %3628 = vmatpush.bf16.msra.mxu0 %v2692
          %3629 = vmatpush.bf16.msra.mxu0 %v2684
          %3630 = vmatpush.bf16.msra.mxu0 %v2676
          %3631 = vmatpush.bf16.msra.mxu0 %v2668
          %3632 = vmatpush.bf16.msra.mxu0 %v2660
          %3633 = vmatpush.bf16.msra.mxu0 %v2652
          %3634 = vmatpush.bf16.msra.mxu0 %v2644
          %3635 = vmatmul.bf16.gmra.mxu0 %v447
          %v3636 = vpop.f32.mrf.mxu0
          %v3637 = vadd.f32 %v3624, %v3636
          %v3638 = vpop.f32.mrf.mxu0
          %3639 = vdwg.mxu0
          %3640 = vmatpush.bf16.msra.mxu0 0
          %3641 = vmatpush.bf16.msra.mxu0 0
          %3642 = vmatpush.bf16.msra.mxu0 0
          %3643 = vmatpush.bf16.msra.mxu0 0
          %3644 = vmatpush.bf16.msra.mxu0 0
          %3645 = vmatpush.bf16.msra.mxu0 0
          %3646 = vmatpush.bf16.msra.mxu0 0
          %3647 = vmatpush.bf16.msra.mxu0 %v2708
          %3648 = vmatmul.bf16.gmra.mxu0 %v3105
          %v3649 = vpop.f32.mrf.mxu0
          %v3650 = vadd.f32 %v3637, %v3649
          %v3651 = vpop.f32.mrf.mxu0
          %3652 = vdwg.mxu0
          %3653 = vmatpush.bf16.msra.mxu0 %v2381
          %3654 = vmatpush.bf16.msra.mxu0 %v2373
          %3655 = vmatpush.bf16.msra.mxu0 %v2365
          %3656 = vmatpush.bf16.msra.mxu0 %v2357
          %3657 = vmatpush.bf16.msra.mxu0 %v2349
          %3658 = vmatpush.bf16.msra.mxu0 %v2341
          %3659 = vmatpush.bf16.msra.mxu0 %v2333
          %3660 = vmatpush.bf16.msra.mxu0 %v2325
          %3661 = vmatmul.bf16.gmra.mxu0 %v442
          %v3662 = vpop.f32.mrf.mxu0
          %v3663 = vadd.f32 %v1127, %v3662
          %v3664 = vpop.f32.mrf.mxu0
          %3665 = vdwg.mxu0
          %3666 = vmatpush.bf16.msra.mxu0 %v2445
          %3667 = vmatpush.bf16.msra.mxu0 %v2437
          %3668 = vmatpush.bf16.msra.mxu0 %v2429
          %3669 = vmatpush.bf16.msra.mxu0 %v2421
          %3670 = vmatpush.bf16.msra.mxu0 %v2413
          %3671 = vmatpush.bf16.msra.mxu0 %v2405
          %3672 = vmatpush.bf16.msra.mxu0 %v2397
          %3673 = vmatpush.bf16.msra.mxu0 %v2389
          %3674 = vmatmul.bf16.gmra.mxu0 %v443
          %v3675 = vpop.f32.mrf.mxu0
          %v3676 = vadd.f32 %v3663, %v3675
          %v3677 = vpop.f32.mrf.mxu0
          %3678 = vdwg.mxu0
          %3679 = vmatpush.bf16.msra.mxu0 %v2509
          %3680 = vmatpush.bf16.msra.mxu0 %v2501
          %3681 = vmatpush.bf16.msra.mxu0 %v2493
          %3682 = vmatpush.bf16.msra.mxu0 %v2485
          %3683 = vmatpush.bf16.msra.mxu0 %v2477
          %3684 = vmatpush.bf16.msra.mxu0 %v2469
          %3685 = vmatpush.bf16.msra.mxu0 %v2461
          %3686 = vmatpush.bf16.msra.mxu0 %v2453
          %3687 = vmatmul.bf16.gmra.mxu0 %v444
          %v3688 = vpop.f32.mrf.mxu0
          %v3689 = vadd.f32 %v3676, %v3688
          %v3690 = vpop.f32.mrf.mxu0
          %3691 = vdwg.mxu0
          %3692 = vmatpush.bf16.msra.mxu0 %v2573
          %3693 = vmatpush.bf16.msra.mxu0 %v2565
          %3694 = vmatpush.bf16.msra.mxu0 %v2557
          %3695 = vmatpush.bf16.msra.mxu0 %v2549
          %3696 = vmatpush.bf16.msra.mxu0 %v2541
          %3697 = vmatpush.bf16.msra.mxu0 %v2533
          %3698 = vmatpush.bf16.msra.mxu0 %v2525
          %3699 = vmatpush.bf16.msra.mxu0 %v2517
          %3700 = vmatmul.bf16.gmra.mxu0 %v445
          %v3701 = vpop.f32.mrf.mxu0
          %v3702 = vadd.f32 %v3689, %v3701
          %v3703 = vpop.f32.mrf.mxu0
          %3704 = vdwg.mxu0
          %3705 = vmatpush.bf16.msra.mxu0 %v2637
          %3706 = vmatpush.bf16.msra.mxu0 %v2629
          %3707 = vmatpush.bf16.msra.mxu0 %v2621
          %3708 = vmatpush.bf16.msra.mxu0 %v2613
          %3709 = vmatpush.bf16.msra.mxu0 %v2605
          %3710 = vmatpush.bf16.msra.mxu0 %v2597
          %3711 = vmatpush.bf16.msra.mxu0 %v2589
          %3712 = vmatpush.bf16.msra.mxu0 %v2581
          %3713 = vmatmul.bf16.gmra.mxu0 %v446
          %v3714 = vpop.f32.mrf.mxu0
          %v3715 = vadd.f32 %v3702, %v3714
          %v3716 = vpop.f32.mrf.mxu0
          %3717 = vdwg.mxu0
          %3718 = vmatpush.bf16.msra.mxu0 %v2701
          %3719 = vmatpush.bf16.msra.mxu0 %v2693
          %3720 = vmatpush.bf16.msra.mxu0 %v2685
          %3721 = vmatpush.bf16.msra.mxu0 %v2677
          %3722 = vmatpush.bf16.msra.mxu0 %v2669
          %3723 = vmatpush.bf16.msra.mxu0 %v2661
          %3724 = vmatpush.bf16.msra.mxu0 %v2653
          %3725 = vmatpush.bf16.msra.mxu0 %v2645
          %3726 = vmatmul.bf16.gmra.mxu0 %v447
          %v3727 = vpop.f32.mrf.mxu0
          %v3728 = vadd.f32 %v3715, %v3727
          %v3729 = vpop.f32.mrf.mxu0
          %3730 = vdwg.mxu0
          %3731 = vmatpush.bf16.msra.mxu0 0
          %3732 = vmatpush.bf16.msra.mxu0 0
          %3733 = vmatpush.bf16.msra.mxu0 0
          %3734 = vmatpush.bf16.msra.mxu0 0
          %3735 = vmatpush.bf16.msra.mxu0 0
          %3736 = vmatpush.bf16.msra.mxu0 0
          %3737 = vmatpush.bf16.msra.mxu0 0
          %3738 = vmatpush.bf16.msra.mxu0 %v2709
          %3739 = vmatmul.bf16.gmra.mxu0 %v3105
          %v3740 = vpop.f32.mrf.mxu0
          %v3741 = vadd.f32 %v3728, %v3740
          %v3742 = vpop.f32.mrf.mxu0
          %3743 = vdwg.mxu0
          %3744 = vmatpush.bf16.msra.mxu0 %v2382
          %3745 = vmatpush.bf16.msra.mxu0 %v2374
          %3746 = vmatpush.bf16.msra.mxu0 %v2366
          %3747 = vmatpush.bf16.msra.mxu0 %v2358
          %3748 = vmatpush.bf16.msra.mxu0 %v2350
          %3749 = vmatpush.bf16.msra.mxu0 %v2342
          %3750 = vmatpush.bf16.msra.mxu0 %v2334
          %3751 = vmatpush.bf16.msra.mxu0 %v2326
          %3752 = vmatmul.bf16.gmra.mxu0 %v442
          %v3753 = vpop.f32.mrf.mxu0
          %v3754 = vadd.f32 %v1140, %v3753
          %v3755 = vpop.f32.mrf.mxu0
          %3756 = vdwg.mxu0
          %3757 = vmatpush.bf16.msra.mxu0 %v2446
          %3758 = vmatpush.bf16.msra.mxu0 %v2438
          %3759 = vmatpush.bf16.msra.mxu0 %v2430
          %3760 = vmatpush.bf16.msra.mxu0 %v2422
          %3761 = vmatpush.bf16.msra.mxu0 %v2414
          %3762 = vmatpush.bf16.msra.mxu0 %v2406
          %3763 = vmatpush.bf16.msra.mxu0 %v2398
          %3764 = vmatpush.bf16.msra.mxu0 %v2390
          %3765 = vmatmul.bf16.gmra.mxu0 %v443
          %v3766 = vpop.f32.mrf.mxu0
          %v3767 = vadd.f32 %v3754, %v3766
          %v3768 = vpop.f32.mrf.mxu0
          %3769 = vdwg.mxu0
          %3770 = vmatpush.bf16.msra.mxu0 %v2510
          %3771 = vmatpush.bf16.msra.mxu0 %v2502
          %3772 = vmatpush.bf16.msra.mxu0 %v2494
          %3773 = vmatpush.bf16.msra.mxu0 %v2486
          %3774 = vmatpush.bf16.msra.mxu0 %v2478
          %3775 = vmatpush.bf16.msra.mxu0 %v2470
          %3776 = vmatpush.bf16.msra.mxu0 %v2462
          %3777 = vmatpush.bf16.msra.mxu0 %v2454
          %3778 = vmatmul.bf16.gmra.mxu0 %v444
          %v3779 = vpop.f32.mrf.mxu0
          %v3780 = vadd.f32 %v3767, %v3779
          %v3781 = vpop.f32.mrf.mxu0
          %3782 = vdwg.mxu0
          %3783 = vmatpush.bf16.msra.mxu0 %v2574
          %3784 = vmatpush.bf16.msra.mxu0 %v2566
          %3785 = vmatpush.bf16.msra.mxu0 %v2558
          %3786 = vmatpush.bf16.msra.mxu0 %v2550
          %3787 = vmatpush.bf16.msra.mxu0 %v2542
          %3788 = vmatpush.bf16.msra.mxu0 %v2534
          %3789 = vmatpush.bf16.msra.mxu0 %v2526
          %3790 = vmatpush.bf16.msra.mxu0 %v2518
          %3791 = vmatmul.bf16.gmra.mxu0 %v445
          %v3792 = vpop.f32.mrf.mxu0
          %v3793 = vadd.f32 %v3780, %v3792
          %v3794 = vpop.f32.mrf.mxu0
          %3795 = vdwg.mxu0
          %3796 = vmatpush.bf16.msra.mxu0 %v2638
          %3797 = vmatpush.bf16.msra.mxu0 %v2630
          %3798 = vmatpush.bf16.msra.mxu0 %v2622
          %3799 = vmatpush.bf16.msra.mxu0 %v2614
          %3800 = vmatpush.bf16.msra.mxu0 %v2606
          %3801 = vmatpush.bf16.msra.mxu0 %v2598
          %3802 = vmatpush.bf16.msra.mxu0 %v2590
          %3803 = vmatpush.bf16.msra.mxu0 %v2582
          %3804 = vmatmul.bf16.gmra.mxu0 %v446
          %v3805 = vpop.f32.mrf.mxu0
          %v3806 = vadd.f32 %v3793, %v3805
          %v3807 = vpop.f32.mrf.mxu0
          %3808 = vdwg.mxu0
          %3809 = vmatpush.bf16.msra.mxu0 %v2702
          %3810 = vmatpush.bf16.msra.mxu0 %v2694
          %3811 = vmatpush.bf16.msra.mxu0 %v2686
          %3812 = vmatpush.bf16.msra.mxu0 %v2678
          %3813 = vmatpush.bf16.msra.mxu0 %v2670
          %3814 = vmatpush.bf16.msra.mxu0 %v2662
          %3815 = vmatpush.bf16.msra.mxu0 %v2654
          %3816 = vmatpush.bf16.msra.mxu0 %v2646
          %3817 = vmatmul.bf16.gmra.mxu0 %v447
          %v3818 = vpop.f32.mrf.mxu0
          %v3819 = vadd.f32 %v3806, %v3818
          %v3820 = vpop.f32.mrf.mxu0
          %3821 = vdwg.mxu0
          %3822 = vmatpush.bf16.msra.mxu0 0
          %3823 = vmatpush.bf16.msra.mxu0 0
          %3824 = vmatpush.bf16.msra.mxu0 0
          %3825 = vmatpush.bf16.msra.mxu0 0
          %3826 = vmatpush.bf16.msra.mxu0 0
          %3827 = vmatpush.bf16.msra.mxu0 0
          %3828 = vmatpush.bf16.msra.mxu0 0
          %3829 = vmatpush.bf16.msra.mxu0 %v2710
          %3830 = vmatmul.bf16.gmra.mxu0 %v3105
          %v3831 = vpop.f32.mrf.mxu0
          %v3832 = vadd.f32 %v3819, %v3831
          %v3833 = vpop.f32.mrf.mxu0
          %3834 = vdwg.mxu0
          %v3835 = vld [vmem:[#allocation11] sm:$0xff]
          %v3837 = vperm.slane %v3835, 0
          %v3838 = vperm.slane %v3835, 1
          %v3839 = vperm.slane %v3835, 2
          %v3840 = vperm.slane %v3835, 3
          %v3841 = vperm.slane %v3835, 4
          %v3842 = vperm.slane %v3835, 5
          %v3843 = vperm.slane %v3835, 6
          %v3844 = vperm.slane %v3835, 7
          %v3853 = vadd.f32 %v3195, %v3837
          %v3854 = vadd.f32 %v3286, %v3838
          %v3855 = vadd.f32 %v3377, %v3839
          %v3856 = vadd.f32 %v3468, %v3840
          %v3857 = vadd.f32 %v3559, %v3841
          %v3858 = vadd.f32 %v3650, %v3842
          %v3859 = vadd.f32 %v3741, %v3843
          %v3860 = vadd.f32 %v3832, %v3844
          %vm3861 = vcmp.gt.f32.partialorder %v3853, 0.0
          %vm3862 = vcmp.gt.f32.partialorder %v3854, 0.0
          %vm3863 = vcmp.gt.f32.partialorder %v3855, 0.0
          %vm3864 = vcmp.gt.f32.partialorder %v3856, 0.0
          %vm3865 = vcmp.gt.f32.partialorder %v3857, 0.0
          %vm3866 = vcmp.gt.f32.partialorder %v3858, 0.0
          %vm3867 = vcmp.gt.f32.partialorder %v3859, 0.0
          %vm3868 = vcmp.gt.f32.partialorder %v3860, 0.0
          %v3869 = vmul.f32 %v3853, 0.2
          %v3870 = vmul.f32 %v3854, 0.2
          %v3871 = vmul.f32 %v3855, 0.2
          %v3872 = vmul.f32 %v3856, 0.2
          %v3873 = vmul.f32 %v3857, 0.2
          %v3874 = vmul.f32 %v3858, 0.2
          %v3875 = vmul.f32 %v3859, 0.2
          %v3876 = vmul.f32 %v3860, 0.2
          %v3877 = vsel %vm3861, %v3853, %v3869
          %v3878 = vsel %vm3862, %v3854, %v3870
          %v3879 = vsel %vm3863, %v3855, %v3871
          %v3880 = vsel %vm3864, %v3856, %v3872
          %v3881 = vsel %vm3865, %v3857, %v3873
          %v3882 = vsel %vm3866, %v3858, %v3874
          %v3883 = vsel %vm3867, %v3859, %v3875
          %v3884 = vsel %vm3868, %v3860, %v3876
          %v3885 = vpack.c.bf16 %v3878, %v3877
          %v3886 = vpack.c.bf16 %v3880, %v3879
          %v3887 = vpack.c.bf16 %v3882, %v3881
          %v3888 = vpack.c.bf16 %v3884, %v3883
          %3889 = vst [vmem:[#allocation2] sm:$0xff] %v3885
          %3890 = vst [vmem:[#allocation2 + $0x8] sm:$0xff] %v3886
          %3891 = vst [vmem:[#allocation2 + $0x10] sm:$0xff] %v3887
          %3892 = vst [vmem:[#allocation2 + $0x18] sm:$0xff] %v3888
          %vm3893 = vcmask 7168
          %3894 = vst.msk [vmem:[%s8] sm:$0xff] %vm3893, 0.0
        $region84: #{tpu_custom_call.1} parent=51 // pred_fallthru
          _
        %v3895 = vld [vmem:[#allocation2] sm:$0xff]
        %v3896 = vld [vmem:[#allocation2 + $0x8] sm:$0xff]
        %v3897 = vld [vmem:[#allocation2 + $0x10] sm:$0xff]
        %v3898 = vld [vmem:[#allocation2 + $0x18] sm:$0xff]
        %v3899 = vld [vmem:[%s384] sm:$0xff]
        %v3900 = vld [vmem:[%s384 + $0x8] sm:$0xff]
        %v3901 = vld [vmem:[%s384 + $0x10] sm:$0xff]
        %v3902 = vld [vmem:[%s384 + $0x18] sm:$0xff]
        %v3903 = vld [vmem:[%s384 + $0x20] sm:$0xff]
        %v3904 = vld [vmem:[%s384 + $0x28] sm:$0xff]
        %v3905 = vld [vmem:[%s384 + $0x30] sm:$0xff]
        %v3906 = vld [vmem:[%s384 + $0x38] sm:$0xff]
        %v3907 = vld [vmem:[%s384 + $0x40] sm:$0xff]
        %v3908 = vld [vmem:[%s384 + $0x48] sm:$0xff]
        %v3909 = vld [vmem:[%s384 + $0x50] sm:$0xff]
        %v3910 = vld [vmem:[%s384 + $0x58] sm:$0xff]
        %v3911 = vld [vmem:[%s384 + $0x60] sm:$0xff]
        %v3912 = vld [vmem:[%s384 + $0x68] sm:$0xff]
        %v3913 = vld [vmem:[%s384 + $0x70] sm:$0xff]
        %v3914 = vld [vmem:[%s384 + $0x78] sm:$0xff]
        %v3915 = vld [vmem:[%s384 + $0x80] sm:$0xff]
        %v3916 = vld [vmem:[%s384 + $0x88] sm:$0xff]
        %v3917 = vld [vmem:[%s384 + $0x90] sm:$0xff]
        %v3918 = vld [vmem:[%s384 + $0x98] sm:$0xff]
        %v3919 = vld [vmem:[%s384 + $0xa0] sm:$0xff]
        %v3920 = vld [vmem:[%s384 + $0xa8] sm:$0xff]
        %v3921 = vld [vmem:[%s384 + $0xb0] sm:$0xff]
        %v3922 = vld [vmem:[%s384 + $0xb8] sm:$0xff]
        %v3923 = vld [vmem:[%s384 + $0xc0] sm:$0xff]
        %v3924 = vld [vmem:[%s384 + $0xc8] sm:$0xff]
        %v3925 = vld [vmem:[%s384 + $0xd0] sm:$0xff]
        %v3926 = vld [vmem:[%s384 + $0xd8] sm:$0xff]
        %v3927 = vld [vmem:[%s384 + $0xe0] sm:$0xff]
        %v3928 = vld [vmem:[%s384 + $0xe8] sm:$0xff]
        %v3929 = vld [vmem:[%s384 + $0xf0] sm:$0xff]
        %v3930 = vld [vmem:[%s384 + $0xf8] sm:$0xff]
        %v3931 = vld [vmem:[%s384 + $0x100] sm:$0xff]
        %v3932 = vld [vmem:[%s384 + $0x108] sm:$0xff]
        %v3933 = vld [vmem:[%s384 + $0x110] sm:$0xff]
        %v3934 = vld [vmem:[%s384 + $0x118] sm:$0xff]
        %v3935 = vld [vmem:[%s384 + $0x120] sm:$0xff]
        %v3936 = vld [vmem:[%s384 + $0x128] sm:$0xff]
        %v3937 = vld [vmem:[%s384 + $0x130] sm:$0xff]
        %v3938 = vld [vmem:[%s384 + $0x138] sm:$0xff]
        %v3939 = vld [vmem:[%s384 + $0x140] sm:$0xff]
        %v3940 = vld [vmem:[%s384 + $0x148] sm:$0xff]
        %v3941 = vld [vmem:[%s384 + $0x150] sm:$0xff]
        %v3942 = vld [vmem:[%s384 + $0x158] sm:$0xff]
        %v3943 = vld [vmem:[%s384 + $0x160] sm:$0xff]
        %v3944 = vld [vmem:[%s384 + $0x168] sm:$0xff]
        %v3945 = vld [vmem:[%s384 + $0x170] sm:$0xff]
        %v3946 = vld [vmem:[%s384 + $0x178] sm:$0xff]
        %v3947 = vld [vmem:[%s384 + $0x180] sm:$0xff]
        %v3948 = vld [vmem:[%s384 + $0x188] sm:$0xff]
        %v3949 = vld [vmem:[%s384 + $0x190] sm:$0xff]
        %v3950 = vld [vmem:[%s384 + $0x198] sm:$0xff]
        %v3951 = vld [vmem:[%s384 + $0x1a0] sm:$0xff]
        %v3952 = vld [vmem:[%s384 + $0x1a8] sm:$0xff]
        %v3953 = vld [vmem:[%s384 + $0x1b0] sm:$0xff]
        %v3954 = vld [vmem:[%s384 + $0x1b8] sm:$0xff]
        %v3955 = vld [vmem:[%s384 + $0x1c0] sm:$0xff]
        %v3956 = vld [vmem:[%s384 + $0x1c8] sm:$0xff]
        %v3957 = vld [vmem:[%s384 + $0x1d0] sm:$0xff]
        %v3958 = vld [vmem:[%s384 + $0x1d8] sm:$0xff]
        %v3959 = vld [vmem:[%s384 + $0x1e0] sm:$0xff]
        %v3960 = vld [vmem:[%s384 + $0x1e8] sm:$0xff]
        %v3961 = vld [vmem:[%s384 + $0x1f0] sm:$0xff]
        %v3962 = vld [vmem:[%s384 + $0x1f8] sm:$0xff]
        %v3963 = vld [vmem:[%s384 + $0x200] sm:$0xff]
        %v3964 = vld [vmem:[%s384 + $0x208] sm:$0xff]
        %v3965 = vld [vmem:[%s384 + $0x210] sm:$0xff]
        %v3966 = vld [vmem:[%s384 + $0x218] sm:$0xff]
        %v3967 = vld [vmem:[%s384 + $0x220] sm:$0xff]
        %v3968 = vld [vmem:[%s384 + $0x228] sm:$0xff]
        %v3969 = vld [vmem:[%s384 + $0x230] sm:$0xff]
        %v3970 = vld [vmem:[%s384 + $0x238] sm:$0xff]
        %v3971 = vld [vmem:[%s384 + $0x240] sm:$0xff]
        %v3972 = vld [vmem:[%s384 + $0x248] sm:$0xff]
        %v3973 = vld [vmem:[%s384 + $0x250] sm:$0xff]
        %v3974 = vld [vmem:[%s384 + $0x258] sm:$0xff]
        %v3975 = vld [vmem:[%s384 + $0x260] sm:$0xff]
        %v3976 = vld [vmem:[%s384 + $0x268] sm:$0xff]
        %v3977 = vld [vmem:[%s384 + $0x270] sm:$0xff]
        %v3978 = vld [vmem:[%s384 + $0x278] sm:$0xff]
        %v3979 = vld [vmem:[%s384 + $0x280] sm:$0xff]
        %v3980 = vld [vmem:[%s384 + $0x288] sm:$0xff]
        %v3981 = vld [vmem:[%s384 + $0x290] sm:$0xff]
        %v3982 = vld [vmem:[%s384 + $0x298] sm:$0xff]
        %v3983 = vld [vmem:[%s384 + $0x2a0] sm:$0xff]
        %v3984 = vld [vmem:[%s384 + $0x2a8] sm:$0xff]
        %v3985 = vld [vmem:[%s384 + $0x2b0] sm:$0xff]
        %v3986 = vld [vmem:[%s384 + $0x2b8] sm:$0xff]
        %v3987 = vld [vmem:[%s384 + $0x2c0] sm:$0xff]
        %v3988 = vld [vmem:[%s384 + $0x2c8] sm:$0xff]
        %v3989 = vld [vmem:[%s384 + $0x2d0] sm:$0xff]
        %v3990 = vld [vmem:[%s384 + $0x2d8] sm:$0xff]
        %v3991 = vld [vmem:[%s384 + $0x2e0] sm:$0xff]
        %v3992 = vld [vmem:[%s384 + $0x2e8] sm:$0xff]
        %v3993 = vld [vmem:[%s384 + $0x2f0] sm:$0xff]
        %v3994 = vld [vmem:[%s384 + $0x2f8] sm:$0xff]
        %v3995 = vld [vmem:[%s384 + $0x300] sm:$0xff]
        %v3996 = vld [vmem:[%s384 + $0x308] sm:$0xff]
        %v3997 = vld [vmem:[%s384 + $0x310] sm:$0xff]
        %v3998 = vld [vmem:[%s384 + $0x318] sm:$0xff]
        %v3999 = vld [vmem:[%s384 + $0x320] sm:$0xff]
        %v4000 = vld [vmem:[%s384 + $0x328] sm:$0xff]
        %v4001 = vld [vmem:[%s384 + $0x330] sm:$0xff]
        %v4002 = vld [vmem:[%s384 + $0x338] sm:$0xff]
        %v4003 = vld [vmem:[%s384 + $0x340] sm:$0xff]
        %v4004 = vld [vmem:[%s384 + $0x348] sm:$0xff]
        %v4005 = vld [vmem:[%s384 + $0x350] sm:$0xff]
        %v4006 = vld [vmem:[%s384 + $0x358] sm:$0xff]
        %v4007 = vld [vmem:[%s384 + $0x360] sm:$0xff]
        %v4008 = vld [vmem:[%s384 + $0x368] sm:$0xff]
        %v4009 = vld [vmem:[%s384 + $0x370] sm:$0xff]
        %v4010 = vld [vmem:[%s384 + $0x378] sm:$0xff]
        %v4011 = vld [vmem:[%s384 + $0x380] sm:$0xff]
        %v4012 = vld [vmem:[%s384 + $0x388] sm:$0xff]
        %v4013 = vld [vmem:[%s384 + $0x390] sm:$0xff]
        %v4014 = vld [vmem:[%s384 + $0x398] sm:$0xff]
        %v4015 = vld [vmem:[%s384 + $0x3a0] sm:$0xff]
        %v4016 = vld [vmem:[%s384 + $0x3a8] sm:$0xff]
        %v4017 = vld [vmem:[%s384 + $0x3b0] sm:$0xff]
        %v4018 = vld [vmem:[%s384 + $0x3b8] sm:$0xff]
        %v4019 = vld [vmem:[%s384 + $0x3c0] sm:$0xff]
        %v4020 = vld [vmem:[%s384 + $0x3c8] sm:$0xff]
        %v4021 = vld [vmem:[%s384 + $0x3d0] sm:$0xff]
        %v4022 = vld [vmem:[%s384 + $0x3d8] sm:$0xff]
        %v4023 = vld [vmem:[%s384 + $0x3e0] sm:$0xff]
        %v4024 = vld [vmem:[%s384 + $0x3e8] sm:$0xff]
        %v4025 = vld [vmem:[%s384 + $0x3f0] sm:$0xff]
        %v4026 = vld [vmem:[%s384 + $0x3f8] sm:$0xff]
        %v4031 = vunpack.c.l.b16 %v3895
        %v4032 = vunpack.c.h.b16 %v3895
        %v4033 = vunpack.c.l.b16 %v3896
        %v4034 = vunpack.c.h.b16 %v3896
        %v4035 = vunpack.c.l.b16 %v3897
        %v4036 = vunpack.c.h.b16 %v3897
        %v4037 = vunpack.c.l.b16 %v3898
        %v4038 = vunpack.c.h.b16 %v3898
        %v4039 = vpack.c.b16 %v4031, %v4031
        %v4040 = vpack.c.b16 %v4032, %v4032
        %v4041 = vpack.c.b16 %v4033, %v4033
        %v4042 = vpack.c.b16 %v4034, %v4034
        %v4043 = vpack.c.b16 %v4035, %v4035
        %v4044 = vpack.c.b16 %v4036, %v4036
        %v4045 = vpack.c.b16 %v4037, %v4037
        %v4046 = vpack.c.b16 %v4038, %v4038
        %v4183 = vunpack.c.l.b16 %v3899
        %v4184 = vunpack.c.h.b16 %v3899
        %v4185 = vunpack.c.l.b16 %v3900
        %v4186 = vunpack.c.h.b16 %v3900
        %v4187 = vunpack.c.l.b16 %v3901
        %v4188 = vunpack.c.h.b16 %v3901
        %v4189 = vunpack.c.l.b16 %v3902
        %v4190 = vunpack.c.h.b16 %v3902
        %v4191 = vunpack.c.l.b16 %v3903
        %v4192 = vunpack.c.h.b16 %v3903
        %v4193 = vunpack.c.l.b16 %v3904
        %v4194 = vunpack.c.h.b16 %v3904
        %v4195 = vunpack.c.l.b16 %v3905
        %v4196 = vunpack.c.h.b16 %v3905
        %v4197 = vunpack.c.l.b16 %v3906
        %v4198 = vunpack.c.h.b16 %v3906
        %v4199 = vunpack.c.l.b16 %v3907
        %v4200 = vunpack.c.h.b16 %v3907
        %v4201 = vunpack.c.l.b16 %v3908
        %v4202 = vunpack.c.h.b16 %v3908
        %v4203 = vunpack.c.l.b16 %v3909
        %v4204 = vunpack.c.h.b16 %v3909
        %v4205 = vunpack.c.l.b16 %v3910
        %v4206 = vunpack.c.h.b16 %v3910
        %v4207 = vunpack.c.l.b16 %v3911
        %v4208 = vunpack.c.h.b16 %v3911
        %v4209 = vunpack.c.l.b16 %v3912
        %v4210 = vunpack.c.h.b16 %v3912
        %v4211 = vunpack.c.l.b16 %v3913
        %v4212 = vunpack.c.h.b16 %v3913
        %v4213 = vunpack.c.l.b16 %v3914
        %v4214 = vunpack.c.h.b16 %v3914
        %v4215 = vunpack.c.l.b16 %v3915
        %v4216 = vunpack.c.h.b16 %v3915
        %v4217 = vunpack.c.l.b16 %v3916
        %v4218 = vunpack.c.h.b16 %v3916
        %v4219 = vunpack.c.l.b16 %v3917
        %v4220 = vunpack.c.h.b16 %v3917
        %v4221 = vunpack.c.l.b16 %v3918
        %v4222 = vunpack.c.h.b16 %v3918
        %v4223 = vunpack.c.l.b16 %v3919
        %v4224 = vunpack.c.h.b16 %v3919
        %v4225 = vunpack.c.l.b16 %v3920
        %v4226 = vunpack.c.h.b16 %v3920
        %v4227 = vunpack.c.l.b16 %v3921
        %v4228 = vunpack.c.h.b16 %v3921
        %v4229 = vunpack.c.l.b16 %v3922
        %v4230 = vunpack.c.h.b16 %v3922
        %v4231 = vunpack.c.l.b16 %v3923
        %v4232 = vunpack.c.h.b16 %v3923
        %v4233 = vunpack.c.l.b16 %v3924
        %v4234 = vunpack.c.h.b16 %v3924
        %v4235 = vunpack.c.l.b16 %v3925
        %v4236 = vunpack.c.h.b16 %v3925
        %v4237 = vunpack.c.l.b16 %v3926
        %v4238 = vunpack.c.h.b16 %v3926
        %v4239 = vunpack.c.l.b16 %v3927
        %v4240 = vunpack.c.h.b16 %v3927
        %v4241 = vunpack.c.l.b16 %v3928
        %v4242 = vunpack.c.h.b16 %v3928
        %v4243 = vunpack.c.l.b16 %v3929
        %v4244 = vunpack.c.h.b16 %v3929
        %v4245 = vunpack.c.l.b16 %v3930
        %v4246 = vunpack.c.h.b16 %v3930
        %v4247 = vunpack.c.l.b16 %v3931
        %v4248 = vunpack.c.h.b16 %v3931
        %v4249 = vunpack.c.l.b16 %v3932
        %v4250 = vunpack.c.h.b16 %v3932
        %v4251 = vunpack.c.l.b16 %v3933
        %v4252 = vunpack.c.h.b16 %v3933
        %v4253 = vunpack.c.l.b16 %v3934
        %v4254 = vunpack.c.h.b16 %v3934
        %v4255 = vunpack.c.l.b16 %v3935
        %v4256 = vunpack.c.h.b16 %v3935
        %v4257 = vunpack.c.l.b16 %v3936
        %v4258 = vunpack.c.h.b16 %v3936
        %v4259 = vunpack.c.l.b16 %v3937
        %v4260 = vunpack.c.h.b16 %v3937
        %v4261 = vunpack.c.l.b16 %v3938
        %v4262 = vunpack.c.h.b16 %v3938
        %v4263 = vunpack.c.l.b16 %v3939
        %v4264 = vunpack.c.h.b16 %v3939
        %v4265 = vunpack.c.l.b16 %v3940
        %v4266 = vunpack.c.h.b16 %v3940
        %v4267 = vunpack.c.l.b16 %v3941
        %v4268 = vunpack.c.h.b16 %v3941
        %v4269 = vunpack.c.l.b16 %v3942
        %v4270 = vunpack.c.h.b16 %v3942
        %v4271 = vunpack.c.l.b16 %v3943
        %v4272 = vunpack.c.h.b16 %v3943
        %v4273 = vunpack.c.l.b16 %v3944
        %v4274 = vunpack.c.h.b16 %v3944
        %v4275 = vunpack.c.l.b16 %v3945
        %v4276 = vunpack.c.h.b16 %v3945
        %v4277 = vunpack.c.l.b16 %v3946
        %v4278 = vunpack.c.h.b16 %v3946
        %v4279 = vunpack.c.l.b16 %v3947
        %v4280 = vunpack.c.h.b16 %v3947
        %v4281 = vunpack.c.l.b16 %v3948
        %v4282 = vunpack.c.h.b16 %v3948
        %v4283 = vunpack.c.l.b16 %v3949
        %v4284 = vunpack.c.h.b16 %v3949
        %v4285 = vunpack.c.l.b16 %v3950
        %v4286 = vunpack.c.h.b16 %v3950
        %v4287 = vunpack.c.l.b16 %v3951
        %v4288 = vunpack.c.h.b16 %v3951
        %v4289 = vunpack.c.l.b16 %v3952
        %v4290 = vunpack.c.h.b16 %v3952
        %v4291 = vunpack.c.l.b16 %v3953
        %v4292 = vunpack.c.h.b16 %v3953
        %v4293 = vunpack.c.l.b16 %v3954
        %v4294 = vunpack.c.h.b16 %v3954
        %v4295 = vunpack.c.l.b16 %v3955
        %v4296 = vunpack.c.h.b16 %v3955
        %v4297 = vunpack.c.l.b16 %v3956
        %v4298 = vunpack.c.h.b16 %v3956
        %v4299 = vunpack.c.l.b16 %v3957
        %v4300 = vunpack.c.h.b16 %v3957
        %v4301 = vunpack.c.l.b16 %v3958
        %v4302 = vunpack.c.h.b16 %v3958
        %v4303 = vunpack.c.l.b16 %v3959
        %v4304 = vunpack.c.h.b16 %v3959
        %v4305 = vunpack.c.l.b16 %v3960
        %v4306 = vunpack.c.h.b16 %v3960
        %v4307 = vunpack.c.l.b16 %v3961
        %v4308 = vunpack.c.h.b16 %v3961
        %v4309 = vunpack.c.l.b16 %v3962
        %v4310 = vunpack.c.h.b16 %v3962
        %v4311 = vunpack.c.l.b16 %v3963
        %v4312 = vunpack.c.h.b16 %v3963
        %v4313 = vunpack.c.l.b16 %v3964
        %v4314 = vunpack.c.h.b16 %v3964
        %v4315 = vunpack.c.l.b16 %v3965
        %v4316 = vunpack.c.h.b16 %v3965
        %v4317 = vunpack.c.l.b16 %v3966
        %v4318 = vunpack.c.h.b16 %v3966
        %v4319 = vunpack.c.l.b16 %v3967
        %v4320 = vunpack.c.h.b16 %v3967
        %v4321 = vunpack.c.l.b16 %v3968
        %v4322 = vunpack.c.h.b16 %v3968
        %v4323 = vunpack.c.l.b16 %v3969
        %v4324 = vunpack.c.h.b16 %v3969
        %v4325 = vunpack.c.l.b16 %v3970
        %v4326 = vunpack.c.h.b16 %v3970
        %v4327 = vunpack.c.l.b16 %v3971
        %v4328 = vunpack.c.h.b16 %v3971
        %v4329 = vunpack.c.l.b16 %v3972
        %v4330 = vunpack.c.h.b16 %v3972
        %v4331 = vunpack.c.l.b16 %v3973
        %v4332 = vunpack.c.h.b16 %v3973
        %v4333 = vunpack.c.l.b16 %v3974
        %v4334 = vunpack.c.h.b16 %v3974
        %v4335 = vunpack.c.l.b16 %v3975
        %v4336 = vunpack.c.h.b16 %v3975
        %v4337 = vunpack.c.l.b16 %v3976
        %v4338 = vunpack.c.h.b16 %v3976
        %v4339 = vunpack.c.l.b16 %v3977
        %v4340 = vunpack.c.h.b16 %v3977
        %v4341 = vunpack.c.l.b16 %v3978
        %v4342 = vunpack.c.h.b16 %v3978
        %v4343 = vunpack.c.l.b16 %v3979
        %v4344 = vunpack.c.h.b16 %v3979
        %v4345 = vunpack.c.l.b16 %v3980
        %v4346 = vunpack.c.h.b16 %v3980
        %v4347 = vunpack.c.l.b16 %v3981
        %v4348 = vunpack.c.h.b16 %v3981
        %v4349 = vunpack.c.l.b16 %v3982
        %v4350 = vunpack.c.h.b16 %v3982
        %v4351 = vunpack.c.l.b16 %v3983
        %v4352 = vunpack.c.h.b16 %v3983
        %v4353 = vunpack.c.l.b16 %v3984
        %v4354 = vunpack.c.h.b16 %v3984
        %v4355 = vunpack.c.l.b16 %v3985
        %v4356 = vunpack.c.h.b16 %v3985
        %v4357 = vunpack.c.l.b16 %v3986
        %v4358 = vunpack.c.h.b16 %v3986
        %v4359 = vunpack.c.l.b16 %v3987
        %v4360 = vunpack.c.h.b16 %v3987
        %v4361 = vunpack.c.l.b16 %v3988
        %v4362 = vunpack.c.h.b16 %v3988
        %v4363 = vunpack.c.l.b16 %v3989
        %v4364 = vunpack.c.h.b16 %v3989
        %v4365 = vunpack.c.l.b16 %v3990
        %v4366 = vunpack.c.h.b16 %v3990
        %v4367 = vunpack.c.l.b16 %v3991
        %v4368 = vunpack.c.h.b16 %v3991
        %v4369 = vunpack.c.l.b16 %v3992
        %v4370 = vunpack.c.h.b16 %v3992
        %v4371 = vunpack.c.l.b16 %v3993
        %v4372 = vunpack.c.h.b16 %v3993
        %v4373 = vunpack.c.l.b16 %v3994
        %v4374 = vunpack.c.h.b16 %v3994
        %v4375 = vunpack.c.l.b16 %v3995
        %v4376 = vunpack.c.h.b16 %v3995
        %v4377 = vunpack.c.l.b16 %v3996
        %v4378 = vunpack.c.h.b16 %v3996
        %v4379 = vunpack.c.l.b16 %v3997
        %v4380 = vunpack.c.h.b16 %v3997
        %v4381 = vunpack.c.l.b16 %v3998
        %v4382 = vunpack.c.h.b16 %v3998
        %v4383 = vunpack.c.l.b16 %v3999
        %v4384 = vunpack.c.h.b16 %v3999
        %v4385 = vunpack.c.l.b16 %v4000
        %v4386 = vunpack.c.h.b16 %v4000
        %v4387 = vunpack.c.l.b16 %v4001
        %v4388 = vunpack.c.h.b16 %v4001
        %v4389 = vunpack.c.l.b16 %v4002
        %v4390 = vunpack.c.h.b16 %v4002
        %v4391 = vunpack.c.l.b16 %v4003
        %v4392 = vunpack.c.h.b16 %v4003
        %v4393 = vunpack.c.l.b16 %v4004
        %v4394 = vunpack.c.h.b16 %v4004
        %v4395 = vunpack.c.l.b16 %v4005
        %v4396 = vunpack.c.h.b16 %v4005
        %v4397 = vunpack.c.l.b16 %v4006
        %v4398 = vunpack.c.h.b16 %v4006
        %v4399 = vunpack.c.l.b16 %v4007
        %v4400 = vunpack.c.h.b16 %v4007
        %v4401 = vunpack.c.l.b16 %v4008
        %v4402 = vunpack.c.h.b16 %v4008
        %v4403 = vunpack.c.l.b16 %v4009
        %v4404 = vunpack.c.h.b16 %v4009
        %v4405 = vunpack.c.l.b16 %v4010
        %v4406 = vunpack.c.h.b16 %v4010
        %v4407 = vunpack.c.l.b16 %v4011
        %v4408 = vunpack.c.h.b16 %v4011
        %v4409 = vunpack.c.l.b16 %v4012
        %v4410 = vunpack.c.h.b16 %v4012
        %v4411 = vunpack.c.l.b16 %v4013
        %v4412 = vunpack.c.h.b16 %v4013
        %v4413 = vunpack.c.l.b16 %v4014
        %v4414 = vunpack.c.h.b16 %v4014
        %v4415 = vunpack.c.l.b16 %v4015
        %v4416 = vunpack.c.h.b16 %v4015
        %v4417 = vunpack.c.l.b16 %v4016
        %v4418 = vunpack.c.h.b16 %v4016
        %v4419 = vunpack.c.l.b16 %v4017
        %v4420 = vunpack.c.h.b16 %v4017
        %v4421 = vunpack.c.l.b16 %v4018
        %v4422 = vunpack.c.h.b16 %v4018
        %v4423 = vunpack.c.l.b16 %v4019
        %v4424 = vunpack.c.h.b16 %v4019
        %v4425 = vunpack.c.l.b16 %v4020
        %v4426 = vunpack.c.h.b16 %v4020
        %v4427 = vunpack.c.l.b16 %v4021
        %v4428 = vunpack.c.h.b16 %v4021
        %v4429 = vunpack.c.l.b16 %v4022
        %v4430 = vunpack.c.h.b16 %v4022
        %v4431 = vunpack.c.l.b16 %v4023
        %v4432 = vunpack.c.h.b16 %v4023
        %v4433 = vunpack.c.l.b16 %v4024
        %v4434 = vunpack.c.h.b16 %v4024
        %v4435 = vunpack.c.l.b16 %v4025
        %v4436 = vunpack.c.h.b16 %v4025
        %v4437 = vunpack.c.l.b16 %v4026
        %v4438 = vunpack.c.h.b16 %v4026
        %v4439 = vpack.c.b16 %v4185, %v4183
        %v4440 = vpack.c.b16 %v4186, %v4184
        %v4441 = vpack.c.b16 %v4189, %v4187
        %v4442 = vpack.c.b16 %v4190, %v4188
        %v4443 = vpack.c.b16 %v4193, %v4191
        %v4444 = vpack.c.b16 %v4194, %v4192
        %v4445 = vpack.c.b16 %v4197, %v4195
        %v4446 = vpack.c.b16 %v4198, %v4196
        %v4447 = vpack.c.b16 %v4201, %v4199
        %v4448 = vpack.c.b16 %v4202, %v4200
        %v4449 = vpack.c.b16 %v4205, %v4203
        %v4450 = vpack.c.b16 %v4206, %v4204
        %v4451 = vpack.c.b16 %v4209, %v4207
        %v4452 = vpack.c.b16 %v4210, %v4208
        %v4453 = vpack.c.b16 %v4213, %v4211
        %v4454 = vpack.c.b16 %v4214, %v4212
        %v4455 = vpack.c.b16 %v4217, %v4215
        %v4456 = vpack.c.b16 %v4218, %v4216
        %v4457 = vpack.c.b16 %v4221, %v4219
        %v4458 = vpack.c.b16 %v4222, %v4220
        %v4459 = vpack.c.b16 %v4225, %v4223
        %v4460 = vpack.c.b16 %v4226, %v4224
        %v4461 = vpack.c.b16 %v4229, %v4227
        %v4462 = vpack.c.b16 %v4230, %v4228
        %v4463 = vpack.c.b16 %v4233, %v4231
        %v4464 = vpack.c.b16 %v4234, %v4232
        %v4465 = vpack.c.b16 %v4237, %v4235
        %v4466 = vpack.c.b16 %v4238, %v4236
        %v4467 = vpack.c.b16 %v4241, %v4239
        %v4468 = vpack.c.b16 %v4242, %v4240
        %v4469 = vpack.c.b16 %v4245, %v4243
        %v4470 = vpack.c.b16 %v4246, %v4244
        %v4471 = vpack.c.b16 %v4249, %v4247
        %v4472 = vpack.c.b16 %v4250, %v4248
        %v4473 = vpack.c.b16 %v4253, %v4251
        %v4474 = vpack.c.b16 %v4254, %v4252
        %v4475 = vpack.c.b16 %v4257, %v4255
        %v4476 = vpack.c.b16 %v4258, %v4256
        %v4477 = vpack.c.b16 %v4261, %v4259
        %v4478 = vpack.c.b16 %v4262, %v4260
        %v4479 = vpack.c.b16 %v4265, %v4263
        %v4480 = vpack.c.b16 %v4266, %v4264
        %v4481 = vpack.c.b16 %v4269, %v4267
        %v4482 = vpack.c.b16 %v4270, %v4268
        %v4483 = vpack.c.b16 %v4273, %v4271
        %v4484 = vpack.c.b16 %v4274, %v4272
        %v4485 = vpack.c.b16 %v4277, %v4275
        %v4486 = vpack.c.b16 %v4278, %v4276
        %v4487 = vpack.c.b16 %v4281, %v4279
        %v4488 = vpack.c.b16 %v4282, %v4280
        %v4489 = vpack.c.b16 %v4285, %v4283
        %v4490 = vpack.c.b16 %v4286, %v4284
        %v4491 = vpack.c.b16 %v4289, %v4287
        %v4492 = vpack.c.b16 %v4290, %v4288
        %v4493 = vpack.c.b16 %v4293, %v4291
        %v4494 = vpack.c.b16 %v4294, %v4292
        %v4495 = vpack.c.b16 %v4297, %v4295
        %v4496 = vpack.c.b16 %v4298, %v4296
        %v4497 = vpack.c.b16 %v4301, %v4299
        %v4498 = vpack.c.b16 %v4302, %v4300
        %v4499 = vpack.c.b16 %v4305, %v4303
        %v4500 = vpack.c.b16 %v4306, %v4304
        %v4501 = vpack.c.b16 %v4309, %v4307
        %v4502 = vpack.c.b16 %v4310, %v4308
        %v4503 = vpack.c.b16 %v4313, %v4311
        %v4504 = vpack.c.b16 %v4314, %v4312
        %v4505 = vpack.c.b16 %v4317, %v4315
        %v4506 = vpack.c.b16 %v4318, %v4316
        %v4507 = vpack.c.b16 %v4321, %v4319
        %v4508 = vpack.c.b16 %v4322, %v4320
        %v4509 = vpack.c.b16 %v4325, %v4323
        %v4510 = vpack.c.b16 %v4326, %v4324
        %v4511 = vpack.c.b16 %v4329, %v4327
        %v4512 = vpack.c.b16 %v4330, %v4328
        %v4513 = vpack.c.b16 %v4333, %v4331
        %v4514 = vpack.c.b16 %v4334, %v4332
        %v4515 = vpack.c.b16 %v4337, %v4335
        %v4516 = vpack.c.b16 %v4338, %v4336
        %v4517 = vpack.c.b16 %v4341, %v4339
        %v4518 = vpack.c.b16 %v4342, %v4340
        %v4519 = vpack.c.b16 %v4345, %v4343
        %v4520 = vpack.c.b16 %v4346, %v4344
        %v4521 = vpack.c.b16 %v4349, %v4347
        %v4522 = vpack.c.b16 %v4350, %v4348
        %v4523 = vpack.c.b16 %v4353, %v4351
        %v4524 = vpack.c.b16 %v4354, %v4352
        %v4525 = vpack.c.b16 %v4357, %v4355
        %v4526 = vpack.c.b16 %v4358, %v4356
        %v4527 = vpack.c.b16 %v4361, %v4359
        %v4528 = vpack.c.b16 %v4362, %v4360
        %v4529 = vpack.c.b16 %v4365, %v4363
        %v4530 = vpack.c.b16 %v4366, %v4364
        %v4531 = vpack.c.b16 %v4369, %v4367
        %v4532 = vpack.c.b16 %v4370, %v4368
        %v4533 = vpack.c.b16 %v4373, %v4371
        %v4534 = vpack.c.b16 %v4374, %v4372
        %v4535 = vpack.c.b16 %v4377, %v4375
        %v4536 = vpack.c.b16 %v4378, %v4376
        %v4537 = vpack.c.b16 %v4381, %v4379
        %v4538 = vpack.c.b16 %v4382, %v4380
        %v4539 = vpack.c.b16 %v4385, %v4383
        %v4540 = vpack.c.b16 %v4386, %v4384
        %v4541 = vpack.c.b16 %v4389, %v4387
        %v4542 = vpack.c.b16 %v4390, %v4388
        %v4543 = vpack.c.b16 %v4393, %v4391
        %v4544 = vpack.c.b16 %v4394, %v4392
        %v4545 = vpack.c.b16 %v4397, %v4395
        %v4546 = vpack.c.b16 %v4398, %v4396
        %v4547 = vpack.c.b16 %v4401, %v4399
        %v4548 = vpack.c.b16 %v4402, %v4400
        %v4549 = vpack.c.b16 %v4405, %v4403
        %v4550 = vpack.c.b16 %v4406, %v4404
        %v4551 = vpack.c.b16 %v4409, %v4407
        %v4552 = vpack.c.b16 %v4410, %v4408
        %v4553 = vpack.c.b16 %v4413, %v4411
        %v4554 = vpack.c.b16 %v4414, %v4412
        %v4555 = vpack.c.b16 %v4417, %v4415
        %v4556 = vpack.c.b16 %v4418, %v4416
        %v4557 = vpack.c.b16 %v4421, %v4419
        %v4558 = vpack.c.b16 %v4422, %v4420
        %v4559 = vpack.c.b16 %v4425, %v4423
        %v4560 = vpack.c.b16 %v4426, %v4424
        %v4561 = vpack.c.b16 %v4429, %v4427
        %v4562 = vpack.c.b16 %v4430, %v4428
        %v4563 = vpack.c.b16 %v4433, %v4431
        %v4564 = vpack.c.b16 %v4434, %v4432
        %v4565 = vpack.c.b16 %v4437, %v4435
        %v4566 = vpack.c.b16 %v4438, %v4436
        %4695 = vmatpush.bf16.msra.mxu0 %v4453
        %4696 = vmatpush.bf16.msra.mxu0 %v4451
        %4697 = vmatpush.bf16.msra.mxu0 %v4449
        %4698 = vmatpush.bf16.msra.mxu0 %v4447
        %4699 = vmatpush.bf16.msra.mxu0 %v4445
        %4700 = vmatpush.bf16.msra.mxu0 %v4443
        %4701 = vmatpush.bf16.msra.mxu0 %v4441
        %4702 = vmatpush.bf16.msra.mxu0 %v4439
        %4703 = vmatmul.bf16.gmra.mxu0 %v4039
        %v4704 = vpop.f32.mrf.mxu0
        %v4705 = vadd.f32 0.0, %v4704
        %v4706 = vpop.f32.mrf.mxu0
        %4707 = vdwg.mxu0
        %4708 = vmatpush.bf16.msra.mxu0 %v4469
        %4709 = vmatpush.bf16.msra.mxu0 %v4467
        %4710 = vmatpush.bf16.msra.mxu0 %v4465
        %4711 = vmatpush.bf16.msra.mxu0 %v4463
        %4712 = vmatpush.bf16.msra.mxu0 %v4461
        %4713 = vmatpush.bf16.msra.mxu0 %v4459
        %4714 = vmatpush.bf16.msra.mxu0 %v4457
        %4715 = vmatpush.bf16.msra.mxu0 %v4455
        %4716 = vmatmul.bf16.gmra.mxu0 %v4040
        %v4717 = vpop.f32.mrf.mxu0
        %v4718 = vadd.f32 %v4705, %v4717
        %v4719 = vpop.f32.mrf.mxu0
        %4720 = vdwg.mxu0
        %4721 = vmatpush.bf16.msra.mxu0 %v4485
        %4722 = vmatpush.bf16.msra.mxu0 %v4483
        %4723 = vmatpush.bf16.msra.mxu0 %v4481
        %4724 = vmatpush.bf16.msra.mxu0 %v4479
        %4725 = vmatpush.bf16.msra.mxu0 %v4477
        %4726 = vmatpush.bf16.msra.mxu0 %v4475
        %4727 = vmatpush.bf16.msra.mxu0 %v4473
        %4728 = vmatpush.bf16.msra.mxu0 %v4471
        %4729 = vmatmul.bf16.gmra.mxu0 %v4041
        %v4730 = vpop.f32.mrf.mxu0
        %v4731 = vadd.f32 %v4718, %v4730
        %v4732 = vpop.f32.mrf.mxu0
        %4733 = vdwg.mxu0
        %4734 = vmatpush.bf16.msra.mxu0 %v4501
        %4735 = vmatpush.bf16.msra.mxu0 %v4499
        %4736 = vmatpush.bf16.msra.mxu0 %v4497
        %4737 = vmatpush.bf16.msra.mxu0 %v4495
        %4738 = vmatpush.bf16.msra.mxu0 %v4493
        %4739 = vmatpush.bf16.msra.mxu0 %v4491
        %4740 = vmatpush.bf16.msra.mxu0 %v4489
        %4741 = vmatpush.bf16.msra.mxu0 %v4487
        %4742 = vmatmul.bf16.gmra.mxu0 %v4042
        %v4743 = vpop.f32.mrf.mxu0
        %v4744 = vadd.f32 %v4731, %v4743
        %v4745 = vpop.f32.mrf.mxu0
        %4746 = vdwg.mxu0
        %4747 = vmatpush.bf16.msra.mxu0 %v4517
        %4748 = vmatpush.bf16.msra.mxu0 %v4515
        %4749 = vmatpush.bf16.msra.mxu0 %v4513
        %4750 = vmatpush.bf16.msra.mxu0 %v4511
        %4751 = vmatpush.bf16.msra.mxu0 %v4509
        %4752 = vmatpush.bf16.msra.mxu0 %v4507
        %4753 = vmatpush.bf16.msra.mxu0 %v4505
        %4754 = vmatpush.bf16.msra.mxu0 %v4503
        %4755 = vmatmul.bf16.gmra.mxu0 %v4043
        %v4756 = vpop.f32.mrf.mxu0
        %v4757 = vadd.f32 %v4744, %v4756
        %v4758 = vpop.f32.mrf.mxu0
        %4759 = vdwg.mxu0
        %4760 = vmatpush.bf16.msra.mxu0 %v4533
        %4761 = vmatpush.bf16.msra.mxu0 %v4531
        %4762 = vmatpush.bf16.msra.mxu0 %v4529
        %4763 = vmatpush.bf16.msra.mxu0 %v4527
        %4764 = vmatpush.bf16.msra.mxu0 %v4525
        %4765 = vmatpush.bf16.msra.mxu0 %v4523
        %4766 = vmatpush.bf16.msra.mxu0 %v4521
        %4767 = vmatpush.bf16.msra.mxu0 %v4519
        %4768 = vmatmul.bf16.gmra.mxu0 %v4044
        %v4769 = vpop.f32.mrf.mxu0
        %v4770 = vadd.f32 %v4757, %v4769
        %v4771 = vpop.f32.mrf.mxu0
        %4772 = vdwg.mxu0
        %4773 = vmatpush.bf16.msra.mxu0 %v4549
        %4774 = vmatpush.bf16.msra.mxu0 %v4547
        %4775 = vmatpush.bf16.msra.mxu0 %v4545
        %4776 = vmatpush.bf16.msra.mxu0 %v4543
        %4777 = vmatpush.bf16.msra.mxu0 %v4541
        %4778 = vmatpush.bf16.msra.mxu0 %v4539
        %4779 = vmatpush.bf16.msra.mxu0 %v4537
        %4780 = vmatpush.bf16.msra.mxu0 %v4535
        %4781 = vmatmul.bf16.gmra.mxu0 %v4045
        %v4782 = vpop.f32.mrf.mxu0
        %v4783 = vadd.f32 %v4770, %v4782
        %v4784 = vpop.f32.mrf.mxu0
        %4785 = vdwg.mxu0
        %4786 = vmatpush.bf16.msra.mxu0 %v4565
        %4787 = vmatpush.bf16.msra.mxu0 %v4563
        %4788 = vmatpush.bf16.msra.mxu0 %v4561
        %4789 = vmatpush.bf16.msra.mxu0 %v4559
        %4790 = vmatpush.bf16.msra.mxu0 %v4557
        %4791 = vmatpush.bf16.msra.mxu0 %v4555
        %4792 = vmatpush.bf16.msra.mxu0 %v4553
        %4793 = vmatpush.bf16.msra.mxu0 %v4551
        %4794 = vmatmul.bf16.gmra.mxu0 %v4046
        %v4795 = vpop.f32.mrf.mxu0
        %v4796 = vadd.f32 %v4783, %v4795
        %v4797 = vpop.f32.mrf.mxu0
        %4798 = vdwg.mxu0
        %4799 = vmatpush.bf16.msra.mxu0 %v4454
        %4800 = vmatpush.bf16.msra.mxu0 %v4452
        %4801 = vmatpush.bf16.msra.mxu0 %v4450
        %4802 = vmatpush.bf16.msra.mxu0 %v4448
        %4803 = vmatpush.bf16.msra.mxu0 %v4446
        %4804 = vmatpush.bf16.msra.mxu0 %v4444
        %4805 = vmatpush.bf16.msra.mxu0 %v4442
        %4806 = vmatpush.bf16.msra.mxu0 %v4440
        %4807 = vmatmul.bf16.gmra.mxu0 %v4039
        %v4808 = vpop.f32.mrf.mxu0
        %v4809 = vadd.f32 0.0, %v4808
        %v4810 = vpop.f32.mrf.mxu0
        %4811 = vdwg.mxu0
        %4812 = vmatpush.bf16.msra.mxu0 %v4470
        %4813 = vmatpush.bf16.msra.mxu0 %v4468
        %4814 = vmatpush.bf16.msra.mxu0 %v4466
        %4815 = vmatpush.bf16.msra.mxu0 %v4464
        %4816 = vmatpush.bf16.msra.mxu0 %v4462
        %4817 = vmatpush.bf16.msra.mxu0 %v4460
        %4818 = vmatpush.bf16.msra.mxu0 %v4458
        %4819 = vmatpush.bf16.msra.mxu0 %v4456
        %4820 = vmatmul.bf16.gmra.mxu0 %v4040
        %v4821 = vpop.f32.mrf.mxu0
        %v4822 = vadd.f32 %v4809, %v4821
        %v4823 = vpop.f32.mrf.mxu0
        %4824 = vdwg.mxu0
        %4825 = vmatpush.bf16.msra.mxu0 %v4486
        %4826 = vmatpush.bf16.msra.mxu0 %v4484
        %4827 = vmatpush.bf16.msra.mxu0 %v4482
        %4828 = vmatpush.bf16.msra.mxu0 %v4480
        %4829 = vmatpush.bf16.msra.mxu0 %v4478
        %4830 = vmatpush.bf16.msra.mxu0 %v4476
        %4831 = vmatpush.bf16.msra.mxu0 %v4474
        %4832 = vmatpush.bf16.msra.mxu0 %v4472
        %4833 = vmatmul.bf16.gmra.mxu0 %v4041
        %v4834 = vpop.f32.mrf.mxu0
        %v4835 = vadd.f32 %v4822, %v4834
        %v4836 = vpop.f32.mrf.mxu0
        %4837 = vdwg.mxu0
        %4838 = vmatpush.bf16.msra.mxu0 %v4502
        %4839 = vmatpush.bf16.msra.mxu0 %v4500
        %4840 = vmatpush.bf16.msra.mxu0 %v4498
        %4841 = vmatpush.bf16.msra.mxu0 %v4496
        %4842 = vmatpush.bf16.msra.mxu0 %v4494
        %4843 = vmatpush.bf16.msra.mxu0 %v4492
        %4844 = vmatpush.bf16.msra.mxu0 %v4490
        %4845 = vmatpush.bf16.msra.mxu0 %v4488
        %4846 = vmatmul.bf16.gmra.mxu0 %v4042
        %v4847 = vpop.f32.mrf.mxu0
        %v4848 = vadd.f32 %v4835, %v4847
        %v4849 = vpop.f32.mrf.mxu0
        %4850 = vdwg.mxu0
        %4851 = vmatpush.bf16.msra.mxu0 %v4518
        %4852 = vmatpush.bf16.msra.mxu0 %v4516
        %4853 = vmatpush.bf16.msra.mxu0 %v4514
        %4854 = vmatpush.bf16.msra.mxu0 %v4512
        %4855 = vmatpush.bf16.msra.mxu0 %v4510
        %4856 = vmatpush.bf16.msra.mxu0 %v4508
        %4857 = vmatpush.bf16.msra.mxu0 %v4506
        %4858 = vmatpush.bf16.msra.mxu0 %v4504
        %4859 = vmatmul.bf16.gmra.mxu0 %v4043
        %v4860 = vpop.f32.mrf.mxu0
        %v4861 = vadd.f32 %v4848, %v4860
        %v4862 = vpop.f32.mrf.mxu0
        %4863 = vdwg.mxu0
        %4864 = vmatpush.bf16.msra.mxu0 %v4534
        %4865 = vmatpush.bf16.msra.mxu0 %v4532
        %4866 = vmatpush.bf16.msra.mxu0 %v4530
        %4867 = vmatpush.bf16.msra.mxu0 %v4528
        %4868 = vmatpush.bf16.msra.mxu0 %v4526
        %4869 = vmatpush.bf16.msra.mxu0 %v4524
        %4870 = vmatpush.bf16.msra.mxu0 %v4522
        %4871 = vmatpush.bf16.msra.mxu0 %v4520
        %4872 = vmatmul.bf16.gmra.mxu0 %v4044
        %v4873 = vpop.f32.mrf.mxu0
        %v4874 = vadd.f32 %v4861, %v4873
        %v4875 = vpop.f32.mrf.mxu0
        %4876 = vdwg.mxu0
        %4877 = vmatpush.bf16.msra.mxu0 %v4550
        %4878 = vmatpush.bf16.msra.mxu0 %v4548
        %4879 = vmatpush.bf16.msra.mxu0 %v4546
        %4880 = vmatpush.bf16.msra.mxu0 %v4544
        %4881 = vmatpush.bf16.msra.mxu0 %v4542
        %4882 = vmatpush.bf16.msra.mxu0 %v4540
        %4883 = vmatpush.bf16.msra.mxu0 %v4538
        %4884 = vmatpush.bf16.msra.mxu0 %v4536
        %4885 = vmatmul.bf16.gmra.mxu0 %v4045
        %v4886 = vpop.f32.mrf.mxu0
        %v4887 = vadd.f32 %v4874, %v4886
        %v4888 = vpop.f32.mrf.mxu0
        %4889 = vdwg.mxu0
        %4890 = vmatpush.bf16.msra.mxu0 %v4566
        %4891 = vmatpush.bf16.msra.mxu0 %v4564
        %4892 = vmatpush.bf16.msra.mxu0 %v4562
        %4893 = vmatpush.bf16.msra.mxu0 %v4560
        %4894 = vmatpush.bf16.msra.mxu0 %v4558
        %4895 = vmatpush.bf16.msra.mxu0 %v4556
        %4896 = vmatpush.bf16.msra.mxu0 %v4554
        %4897 = vmatpush.bf16.msra.mxu0 %v4552
        %4898 = vmatmul.bf16.gmra.mxu0 %v4046
        %v4899 = vpop.f32.mrf.mxu0
        %v4900 = vadd.f32 %v4887, %v4899
        %v4901 = vpop.f32.mrf.mxu0
        %4902 = vdwg.mxu0
        %v4903 = vrot.slane %v4796, 4
        %v4904 = vadd.f32 %v4796, %v4903
        %v4905 = vrot.slane %v4904, 2
        %v4906 = vadd.f32 %v4904, %v4905
        %v4907 = vrot.slane %v4906, 1
        %v4908 = vadd.f32 %v4906, %v4907
        %v4909 = vrot.slane %v4900, 4
        %v4910 = vadd.f32 %v4900, %v4909
        %v4911 = vrot.slane %v4910, 2
        %v4912 = vadd.f32 %v4910, %v4911
        %v4913 = vrot.slane %v4912, 1
        %v4914 = vadd.f32 %v4912, %v4913
        %v4915 = vrcp.pop 8.0
        %v4916 = vmul.f32 8.0, %v4915
        %v4917 = vsub.f32 1.0, %v4916
        %v4918 = vmul.f32 %v4915, %v4917
        %v4919 = vadd.f32 %v4915, %v4918
        %vm4920 = vweird.f32 %v4915
        %v4921 = vsel %vm4920, %v4915, %v4919
        %v4922 = vmul.f32 %v4908, %v4921
        %v4923 = vmul.f32 %v4914, %v4921
        %v4924 = vsub.f32 %v4796, %v4922
        %v4925 = vsub.f32 %v4900, %v4923
        %v4926 = vmul.f32 %v4924, %v4924
        %v4927 = vmul.f32 %v4925, %v4925
        %v4928 = vrot.slane %v4926, 4
        %v4929 = vadd.f32 %v4926, %v4928
        %v4930 = vrot.slane %v4929, 2
        %v4931 = vadd.f32 %v4929, %v4930
        %v4932 = vrot.slane %v4931, 1
        %v4933 = vadd.f32 %v4931, %v4932
        %v4934 = vrot.slane %v4927, 4
        %v4935 = vadd.f32 %v4927, %v4934
        %v4936 = vrot.slane %v4935, 2
        %v4937 = vadd.f32 %v4935, %v4936
        %v4938 = vrot.slane %v4937, 1
        %v4939 = vadd.f32 %v4937, %v4938
        %v4940 = vmul.f32 %v4933, %v4921
        %v4941 = vmul.f32 %v4939, %v4921
        %v4942 = vadd.f32 %v4940, 1e-05
        %v4943 = vadd.f32 %v4941, 1e-05
        %v4944 = vrsqrt.pop %v4942
        %v4945 = vmul.f32 %v4944, %v4942
        %v4946 = vmul.f32 %v4945, %v4944
        %v4947 = vmul.f32 0.5, %v4946
        %v4948 = vsub.f32 1.5, %v4947
        %v4949 = vmul.f32 %v4944, %v4948
        %vm4950 = vweird.f32 %v4942
        %vm4951 = vweird.f32 %v4944
        %vm4952 = vmor %vm4950, %vm4951
        %v4953 = vsel %vm4952, %v4944, %v4949
        %v4954 = vrsqrt.pop %v4943
        %v4955 = vmul.f32 %v4954, %v4943
        %v4956 = vmul.f32 %v4955, %v4954
        %v4957 = vmul.f32 0.5, %v4956
        %v4958 = vsub.f32 1.5, %v4957
        %v4959 = vmul.f32 %v4954, %v4958
        %vm4960 = vweird.f32 %v4943
        %vm4961 = vweird.f32 %v4954
        %vm4962 = vmor %vm4960, %vm4961
        %v4963 = vsel %vm4962, %v4954, %v4959
        %v4964 = vmul.f32 %v4924, %v4953
        %v4965 = vmul.f32 %v4925, %v4963
        %vm4966 = vcmp.gt.f32.partialorder %v4964, 0.0
        %vm4967 = vcmp.gt.f32.partialorder %v4965, 0.0
        %v4968 = vmul.f32 %v4964, 0.2
        %v4969 = vmul.f32 %v4965, 0.2
        %v4970 = vsel %vm4966, %v4964, %v4968
        %v4971 = vsel %vm4967, %v4965, %v4969
        %v4972 = vld [vmem:[%s394] sm:$0x3]
        %v4973 = vunpack.c.l.bf16 %v4972
        %v4974 = vld [vmem:[%s8] sm:$0xff]
        %v4976 = vperm.slane %v4973, 0
        %v4977 = vperm.slane %v4973, 2
        %v4980 = vperm.slane %v4976, 0
        %v4981 = vperm.slane %v4977, 0
        %v4982 = vmul.f32 %v4970, %v4980
        %v4983 = vmul.f32 %v4971, %v4981
        %v4984 = vadd.f32 %v4982, %v4983
        %4985 = vadd.xlane.f32.xlu0 %v4984
        %v4986 = vpop.xlane.xlu0 %4985
        %v4987 = vadd.f32 %v4974, %v4986
        %vm4988 = vcmask 7168
        %4989 = vst.msk [vmem:[%s8] sm:$0xff] %vm4988, %v4987
        %p4990 = scmp.eq.s32.totalorder %s27, 3
        // Predicated region
        $region85: #{tpu_custom_call.1} parent=51 // pred_check
          %p4991 = pneg %p4990
        $region86: #{tpu_custom_call.1} parent=51 // pred_check_branch
          %4993 = sbr.rel (%p4991) target = $region88
        $region87: #{tpu_custom_call.1} parent=51 // pred_region
          %v4994 = vld [vmem:[%s8] sm:$0xff]
          %v4995 = vld [vmem:[#allocation3] sm:$0x1]
          %v4997 = vperm.slane %v4995, 0
          %v4999 = vadd.f32 %v4994, %v4997
          %v5000 = vsub.f32 0.0, %v4999
          %v5001 = vmul.f32 %v5000, 1.442695
          %v5002 = vpow.pop %v5001
          %v5003 = vadd.f32 %v5002, 1.0
          %v5004 = vrcp.pop %v5003
          %v5005 = vmul.f32 %v5003, %v5004
          %v5006 = vsub.f32 1.0, %v5005
          %v5007 = vmul.f32 %v5004, %v5006
          %v5008 = vadd.f32 %v5004, %v5007
          %vm5009 = vweird.f32 %v5003
          %vm5010 = vweird.f32 %v5004
          %vm5011 = vmor %vm5009, %vm5010
          %v5012 = vsel %vm5011, %v5004, %v5008
          %v5013 = vand.u32 2147483647, %v5003
          %vm5014 = vcmp.eq.f32.partialorder %v5013, 8.507059e+37
          %v5015 = vand.u32 %v5003, 2147483648
          %v5016 = vor.u32 1.1754944e-38, %v5015
          %v5017 = vsel %vm5014, %v5016, %v5012
          %v5018 = vmul.f32 1.0, %v5017
          %5019 = vst.msk [vmem:[%s8] sm:$0xff] %vm4988, %v5018
        $region88: #{tpu_custom_call.1} parent=51 // pred_fallthru
          _
        // Predicated region
        $region89: #{tpu_custom_call.1} parent=51 // pred_check
          %p5020 = pneg %p218
        $region90: #{tpu_custom_call.1} parent=51 // pred_check_branch
          %5022 = sbr.rel (%p5020) target = $region92
        $region91: #{tpu_custom_call.1} parent=51 // pred_region
          _
        $region92: #{tpu_custom_call.1} parent=51 // pred_fallthru
          _
        // Predicated region
        $region93: #{tpu_custom_call.1} parent=51 // pred_check
          %p5023 = pneg %p218
        $region94: #{tpu_custom_call.1} parent=51 // pred_check_branch
          %5025 = sbr.rel (%p5023) target = $region96
        $region95: #{tpu_custom_call.1} parent=51 // pred_region
          _
        $region96: #{tpu_custom_call.1} parent=51 // pred_fallthru
          _
      $region52: #{tpu_custom_call.1} parent=5 // pred_fallthru
        _
      %p5026 = scmp.le.s32.totalorder 2, %s22
      // Predicated region
      $region97: #{tpu_custom_call.1} parent=5 // pred_check
        %p5027 = pneg %p5026
      $region98: #{tpu_custom_call.1} parent=5 // pred_check_branch
        %5029 = sbr.rel (%p5027) target = $region100
      $region99: #{tpu_custom_call.1} parent=5 // pred_region
        %s5030 = ssub.s32 %s22, 2
      $region100: #{tpu_custom_call.1} parent=5 // pred_fallthru
        _
    $region6: #{tpu_custom_call.1} parent=1 // loop_footer
      %s26 = sadd.s32 1, %s22
    $region7: #{tpu_custom_call.1} parent=1 // loop_footer_branch
      %21 = sbr.rel target = $region3
    $region8: #{tpu_custom_call.1} parent=1 // loop_exit
      _
    %5031 = vsyncpa [#allocation5], 1
    %s5032 = scalar_lea.sflag [#allocation5], 1
    %5033 = vsyncpa %s5032, 1
    %5034 = vsyncpa [#allocation7], 1
    %5035 = vsyncpa [#allocation10], 1
    %5036 = vsyncpa [#allocation13], 1
    %s5037 = scalar_lea.sflag [#allocation13], 1
    %5038 = vsyncpa %s5037, 1

</llo_original>
